<compile_context>
chip_gen: v7x
topology: tpu7x:2x2x1
jax: 0.10.0
libtpu: 0.0.40
codegen_flags: <defaults>
</compile_context>

<pallas_src>
import functools
import math

import jax
import jax.numpy as jnp
from jax import lax
from jax.experimental import pallas as pl
from jax.experimental.pallas import tpu as pltpu


# ---------------------------------------------------------------------------
# Pallas kernel: one batch block per grid step, full routing done in-kernel
# ---------------------------------------------------------------------------
def routing_kernel(n_iters, normalize,
                   x_ref, W_A_ref, B_A_ref, W_F1_ref, W_F2_ref, B_F2_ref,
                   W_G1_ref, W_G2_ref, B_G2_ref, W_S_ref, B_S_ref,
                   beta_sum_ref, beta_ign_ref, o_ref):
    x = x_ref[...]                                   # (Bb, n_inp, d_inp), input dtype
    Bb, n_inp, d_inp = x.shape
    n_out, d_out = B_F2_ref.shape
    mx_dtype = x.dtype                               # MXU operand dtype (bf16 stays bf16)

    scaled_x = x * (float(n_inp) ** -0.5)            # scaled_x_inp (input dtype)

    # a_inp = (scaled_x * W_A).sum(-1) + B_A ; f_a = sigmoid(a_inp)  (f32 elementwise)
    a_inp = (jnp.sum(scaled_x.astype(jnp.float32) * W_A_ref[...],
                     axis=-1, keepdims=True)
             + B_A_ref[...])                         # (Bb, n_inp, 1) f32
    f_a = jax.nn.sigmoid(a_inp)                      # (Bb, n_inp, 1) f32

    # Hoisted loop invariants:
    #   phi = beta_use*(f_a*R) - beta_ign*(f_a - f_a*R) = bsf*R - bias
    bsf = beta_sum_ref[...] * f_a                    # (Bb, n_inp, n_out) f32
    bias = beta_ign_ref[...] * f_a                   # (Bb, n_inp, n_out) f32

    def layer_norm(v, eps=1e-5):
        mu = jnp.mean(v, axis=-1, keepdims=True)
        var = jnp.mean(jnp.square(v - mu), axis=-1, keepdims=True)
        return (v - mu) * lax.rsqrt(var + eps)

    def x_out_from_phi(phi):
        # memory-efficient path (V never materialized):
        # e[b,j,d] = sum_i phi[b,i,j] * scaled_x[b,i,d]   (batched contraction)
        e = lax.dot_general(phi.astype(mx_dtype), scaled_x,
                            (((1,), (1,)), ((0,), (0,))),
                            preferred_element_type=jnp.float32)    # (Bb,n_out,d_inp) f32
        ew = (e * W_F1_ref[...]).astype(mx_dtype)                  # (Bb,n_out,d_inp)
        # Fold (Bb, n_out) -> M so the MXU sees one tall 2-D matmul.
        main = jnp.dot(ew.reshape(Bb * n_out, d_inp),
                       W_F2_ref[...].astype(mx_dtype),
                       preferred_element_type=jnp.float32
                       ).reshape(Bb, n_out, d_out)                 # (Bb,n_out,d_out) f32
        phi_sum = jnp.sum(phi, axis=1, keepdims=True)              # (Bb, 1, n_out)
        return main + jnp.swapaxes(phi_sum, -1, -2) * B_F2_ref[...]

    # --- iteration 0: uniform routing coefficients ---
    phi = bsf * (1.0 / float(n_out)) - bias
    x_out = x_out_from_phi(phi)

    # --- iterations 1 .. n_iters-1 (n_iters is a static Python int) ---
    for _ in range(n_iters - 1):
        # pred_x_inp = einsum('bjh,hd,jd->bjd', LN(x_out), W_G1, W_G2) + B_G2
        ln = layer_norm(x_out).astype(mx_dtype)                    # (Bb,n_out,d_out)
        g = jnp.dot(ln.reshape(Bb * n_out, d_out),
                    W_G1_ref[...].astype(mx_dtype),
                    preferred_element_type=jnp.float32
                    ).reshape(Bb, n_out, d_inp)                    # (Bb,n_out,d_inp) f32
        pred = g * W_G2_ref[...] + B_G2_ref[...]                   # (Bb,n_out,d_inp) f32
        # logits[b,i,j] = sum_d x[b,i,d] * pred[b,j,d]
        logits = lax.dot_general(x, pred.astype(mx_dtype),
                                 (((2,), (2,)), ((0,), (0,))),
                                 preferred_element_type=jnp.float32)  # (Bb,n_inp,n_out)
        z = logits * W_S_ref[...] + B_S_ref[...]
        # softmax(log_sigmoid(z)) == sigmoid(z) / sum_j sigmoid(z); exact division.
        # TODO(synk): if |z| can exceed ~80 (all sigmoids underflow), fall back to the
        # log-sigmoid + max-subtracted softmax form to avoid 0/0.
        sig = jax.nn.sigmoid(z)
        R = sig / jnp.sum(sig, axis=-1, keepdims=True)             # (Bb,n_inp,n_out)
        phi = bsf * R - bias
        x_out = x_out_from_phi(phi)

    if normalize:
        x_out = layer_norm(x_out)
    o_ref[...] = x_out.astype(o_ref.dtype)


# ---------------------------------------------------------------------------
# Wrapper
# ---------------------------------------------------------------------------
def efficient_vector_routing(x_inp, params, n_iters=2, normalize=True,
                             batch_block=None,
                             vmem_budget_bytes=40 * 1024 * 1024):
    B, n_inp, d_inp = x_inp.shape
    n_out, d_out = params["B_F2"].shape

    # Module uses Identity instead of LayerNorm when d_out == 1.
    normalize = bool(normalize) and d_out > 1

    # Precompute beta_sum once (review: don't re-add per grid step / iteration).
    beta_sum = params["beta_use"] + params["beta_ign"]

    param_order = ["W_A", "B_A", "W_F1", "W_F2", "B_F2", "W_G1", "W_G2",
                   "B_G2", "W_S", "B_S"]
    param_arrays = [params[k] for k in param_order] + [beta_sum, params["beta_ign"]]

    # --- VMEM-budget-driven batch_block sizing ---------------------------------
    param_bytes = sum(math.prod(a.shape) * a.dtype.itemsize for a in param_arrays)
    per_batch_bytes = 4 * (
        3 * n_inp * d_inp          # x block (double-buffered) + scaled_x
        + 5 * n_inp * n_out        # bsf, bias, phi, logits/z, R
        + 3 * n_out * d_inp        # e, ew, pred
        + 4 * n_out * d_out        # x_out, main, ln, out block (double-buffered)
    )
    if batch_block is None:
        avail = max(vmem_budget_bytes - 2 * param_bytes, per_batch_bytes)
        batch_block = int(max(1, min(B, avail // per_batch_bytes)))
        # TODO(synk): on v7x (2 TensorCores) prefer an even number of grid steps
        # when B is large; single step is optimal on 1-TC v5e/v6e.

    # Pad batch to a multiple of the block (padded rows are sliced off below).
    B_pad = pl.cdiv(B, batch_block) * batch_block
    if B_pad != B:
        x_inp = jnp.pad(x_inp, ((0, B_pad - B), (0, 0), (0, 0)))

    def const_spec(arr):
        # Constant block index: params stay resident across the whole grid.
        # TODO(synk): pipeline_mode=pl.Buffered(1) would halve param VMEM on v7x.
        nd = arr.ndim
        return pl.BlockSpec(arr.shape, lambda b, _nd=nd: (0,) * _nd)

    # Conservative scoped-VMEM limit, valid on v5e/v6e/v7x (<= 64 MiB physical).
    vmem_limit = int(min(max(2 * param_bytes + 2 * batch_block * per_batch_bytes
                             + (8 << 20), 32 << 20), 48 << 20))

    kernel = functools.partial(routing_kernel, n_iters, normalize)

    out = pl.pallas_call(
        kernel,
        out_shape=jax.ShapeDtypeStruct((B_pad, n_out, d_out), x_inp.dtype),
        grid=(B_pad // batch_block,),
        in_specs=[pl.BlockSpec((batch_block, n_inp, d_inp), lambda b: (b, 0, 0))]
                 + [const_spec(a) for a in param_arrays],
        out_specs=pl.BlockSpec((batch_block, n_out, d_out), lambda b: (b, 0, 0)),
        compiler_params=pltpu.CompilerParams(
            dimension_semantics=("parallel",),
            vmem_limit_bytes=vmem_limit),
    )(x_inp, *param_arrays)

    return out[:B] if B_pad != B else out


# ---------------------------------------------------------------------------
# Pure-JAX reference (mirrors the PyTorch forward) for correctness check
# ---------------------------------------------------------------------------
def reference_forward(x_inp, p, n_iters=2, normalize=True):
    n_inp = x_inp.shape[-2]
    n_out = p["W_F1"].shape[0]

    def ln(v, eps=1e-5):
        mu = v.mean(-1, keepdims=True)
        var = ((v - mu) ** 2).mean(-1, keepdims=True)
        return (v - mu) / jnp.sqrt(var + eps)

    scaled = x_inp * n_inp ** -0.5
    a_inp = jnp.sum(scaled * p["W_A"], axis=-1, keepdims=True) + p["B_A"]
    f_a = jax.nn.sigmoid(a_inp)                       # (..., n_inp, 1)
    x_out = None
    for it in range(n_iters):
        if it == 0:
            R = jnp.full((n_out,), 1.0 / n_out, dtype=x_inp.dtype)
        else:
            pred = jnp.einsum("...jh,hd,jd->...jd", ln(x_out), p["W_G1"], p["W_G2"]) + p["B_G2"]
            S = jax.nn.log_sigmoid(
                jnp.einsum("...id,...jd->...ij", x_inp, pred) * p["W_S"] + p["B_S"])
            R = jax.nn.softmax(S, axis=-1)
        D_use = f_a * R
        D_ign = f_a - D_use
        phi = p["beta_use"] * D_use - p["beta_ign"] * D_ign
        e = jnp.einsum("...ij,...id->...jd", phi, scaled)
        x_out = (jnp.einsum("...jd,jd,dh->...jh", e, p["W_F1"], p["W_F2"])
                 + jnp.einsum("...ij,jh->...jh", phi, p["B_F2"]))
    if normalize:
        x_out = ln(x_out)
    return x_out


# ---------------------------------------------------------------------------
# Deterministic parameter init (shapes from the module's __init__)
# ---------------------------------------------------------------------------
def init_params(key, n_inp, n_out, d_inp, d_out):
    ks = jax.random.split(key, 8)
    f32 = jnp.float32
    return {
        "W_A": jax.random.normal(ks[0], (n_inp, d_inp), f32) * (2.0 * d_inp ** -0.5),
        "B_A": jnp.zeros((n_inp, 1), f32),                    # stored 2-D (n_inp, 1)
        "W_F1": jax.random.normal(ks[1], (n_out, d_inp), f32),
        "W_F2": jax.random.normal(ks[2], (d_inp, d_out), f32) * (2.0 * d_inp ** -0.5),
        "B_F2": jnp.zeros((n_out, d_out), f32),
        "W_G1": jax.random.normal(ks[3], (d_out, d_inp), f32) * (d_out ** -0.5),
        "W_G2": jax.random.normal(ks[4], (n_out, d_inp), f32),
        "B_G2": jnp.zeros((n_out, d_inp), f32),
        "W_S": jax.random.normal(ks[5], (n_inp, n_out), f32) * (d_inp ** -0.5),
        "B_S": jnp.zeros((n_inp, n_out), f32),
        "beta_use": jax.random.normal(ks[6], (n_inp, n_out), f32),
        "beta_ign": jax.random.normal(ks[7], (n_inp, n_out), f32),
    }


if __name__ == "__main__":
    # TODO(synk): optional mask, return_dict, and n_inp=-1 (Linear beta) paths
    # of the PyTorch module are not implemented (defaults only).
    B, n_inp, n_out, d_inp, d_out = 8, 8, 4, 32, 16
    n_iters = 2

    key = jax.random.PRNGKey(0)
    k_x, k_p = jax.random.split(key)
    x_inp = jax.random.normal(k_x, (B, n_inp, d_inp), jnp.float32)
    params = init_params(k_p, n_inp, n_out, d_inp, d_out)

    out = efficient_vector_routing(x_inp, params, n_iters=n_iters, normalize=True)
    out = jax.block_until_ready(out)

    ref = jax.block_until_ready(
        reference_forward(x_inp, params, n_iters=n_iters, normalize=True))
    assert out.shape == (B, n_out, d_out)
    # Tolerance accounts for TPU MXU f32 matmul precision (bf16-pass inputs) and
    # the final per-row layer-norm bringing outputs to O(1) scale.
    assert jnp.allclose(out, ref, rtol=2e-2, atol=2e-2), "Pallas kernel mismatch vs reference"

    print("KERNEL_OK")
</pallas_src>

<mosaic_0001>
module attributes {stable_mosaic.version = 11 : i64} {
  func.func @routing_kernel(%arg0: i32, %arg1: memref<8x8x32xf32, #tpu.memory_space<vmem>>, %arg2: memref<8x32xf32, #tpu.memory_space<vmem>>, %arg3: memref<8x1xf32, #tpu.memory_space<vmem>>, %arg4: memref<4x32xf32, #tpu.memory_space<vmem>>, %arg5: memref<32x16xf32, #tpu.memory_space<vmem>>, %arg6: memref<4x16xf32, #tpu.memory_space<vmem>>, %arg7: memref<16x32xf32, #tpu.memory_space<vmem>>, %arg8: memref<4x32xf32, #tpu.memory_space<vmem>>, %arg9: memref<4x32xf32, #tpu.memory_space<vmem>>, %arg10: memref<8x4xf32, #tpu.memory_space<vmem>>, %arg11: memref<8x4xf32, #tpu.memory_space<vmem>>, %arg12: memref<8x4xf32, #tpu.memory_space<vmem>>, %arg13: memref<8x4xf32, #tpu.memory_space<vmem>>, %arg14: memref<8x4x16xf32, #tpu.memory_space<vmem>>) attributes {dimension_semantics = [#tpu.dimension_semantics<parallel>], iteration_bounds = array<i64: 1>, scalar_prefetch = 0 : i64, scratch_operands = 0 : i64, tpu.core_type = #tpu.core_type<tc>, window_params = [{transform_indices = @transform_0, window_bounds = array<i64: 8, 8, 32>}, {pipeline_mode = #tpu.pipeline_mode<synchronous>, transform_indices = @transform_1, window_bounds = array<i64: 8, 32>}, {pipeline_mode = #tpu.pipeline_mode<synchronous>, transform_indices = @transform_2, window_bounds = array<i64: 8, 1>}, {pipeline_mode = #tpu.pipeline_mode<synchronous>, transform_indices = @transform_3, window_bounds = array<i64: 4, 32>}, {pipeline_mode = #tpu.pipeline_mode<synchronous>, transform_indices = @transform_4, window_bounds = array<i64: 32, 16>}, {pipeline_mode = #tpu.pipeline_mode<synchronous>, transform_indices = @transform_5, window_bounds = array<i64: 4, 16>}, {pipeline_mode = #tpu.pipeline_mode<synchronous>, transform_indices = @transform_6, window_bounds = array<i64: 16, 32>}, {pipeline_mode = #tpu.pipeline_mode<synchronous>, transform_indices = @transform_7, window_bounds = array<i64: 4, 32>}, {pipeline_mode = #tpu.pipeline_mode<synchronous>, transform_indices = @transform_8, window_bounds = array<i64: 4, 32>}, {pipeline_mode = #tpu.pipeline_mode<synchronous>, transform_indices = @transform_9, window_bounds = array<i64: 8, 4>}, {pipeline_mode = #tpu.pipeline_mode<synchronous>, transform_indices = @transform_10, window_bounds = array<i64: 8, 4>}, {pipeline_mode = #tpu.pipeline_mode<synchronous>, transform_indices = @transform_11, window_bounds = array<i64: 8, 4>}, {pipeline_mode = #tpu.pipeline_mode<synchronous>, transform_indices = @transform_12, window_bounds = array<i64: 8, 4>}, {transform_indices = @transform_13, window_bounds = array<i64: 8, 4, 16>}]} {
    %c0 = arith.constant 0 : index
    %c0_0 = arith.constant 0 : index
    %c0_1 = arith.constant 0 : index
    %0 = vector.load %arg1[%c0, %c0_0, %c0_1] : memref<8x8x32xf32, #tpu.memory_space<vmem>>, vector<8x8x32xf32>
    %cst = arith.constant 0.353553385 : f32
    %1 = vector.broadcast %cst : f32 to vector<8x8x32xf32>
    %2 = arith.mulf %0, %1 : vector<8x8x32xf32>
    %c0_2 = arith.constant 0 : index
    %c0_3 = arith.constant 0 : index
    %3 = vector.load %arg2[%c0_2, %c0_3] : memref<8x32xf32, #tpu.memory_space<vmem>>, vector<8x32xf32>
    %4 = vector.shape_cast %3 : vector<8x32xf32> to vector<1x8x32xf32>
    %5 = vector.broadcast %4 : vector<1x8x32xf32> to vector<8x8x32xf32>
    %6 = arith.mulf %2, %5 : vector<8x8x32xf32>
    %cst_4 = arith.constant dense<0.000000e+00> : vector<8x8xf32>
    %7 = vector.multi_reduction <add>, %6, %cst_4 [2] : vector<8x8x32xf32> to vector<8x8xf32>
    %8 = vector.shape_cast %7 : vector<8x8xf32> to vector<8x8x1xf32>
    %c0_5 = arith.constant 0 : index
    %c0_6 = arith.constant 0 : index
    %9 = vector.load %arg3[%c0_5, %c0_6] : memref<8x1xf32, #tpu.memory_space<vmem>>, vector<8x1xf32>
    %10 = vector.shape_cast %9 : vector<8x1xf32> to vector<1x8x1xf32>
    %11 = vector.broadcast %10 : vector<1x8x1xf32> to vector<8x8x1xf32>
    %12 = arith.addf %8, %11 : vector<8x8x1xf32>
    %13 = arith.negf %12 : vector<8x8x1xf32>
    %14 = math.exp %13 : vector<8x8x1xf32>
    %cst_7 = arith.constant 1.000000e+00 : f32
    %15 = vector.broadcast %cst_7 : f32 to vector<8x8x1xf32>
    %16 = arith.addf %15, %14 : vector<8x8x1xf32>
    %17 = arith.divf %15, %16 : vector<8x8x1xf32>
    %c0_8 = arith.constant 0 : index
    %c0_9 = arith.constant 0 : index
    %18 = vector.load %arg12[%c0_8, %c0_9] : memref<8x4xf32, #tpu.memory_space<vmem>>, vector<8x4xf32>
    %19 = vector.shape_cast %18 : vector<8x4xf32> to vector<1x8x4xf32>
    %20 = vector.broadcast %19 : vector<1x8x4xf32> to vector<8x8x4xf32>
    %21 = vector.broadcast %17 : vector<8x8x1xf32> to vector<8x8x4xf32>
    %22 = arith.mulf %20, %21 : vector<8x8x4xf32>
    %c0_10 = arith.constant 0 : index
    %c0_11 = arith.constant 0 : index
    %23 = vector.load %arg13[%c0_10, %c0_11] : memref<8x4xf32, #tpu.memory_space<vmem>>, vector<8x4xf32>
    %24 = vector.shape_cast %23 : vector<8x4xf32> to vector<1x8x4xf32>
    %25 = vector.broadcast %24 : vector<1x8x4xf32> to vector<8x8x4xf32>
    %26 = vector.broadcast %17 : vector<8x8x1xf32> to vector<8x8x4xf32>
    %27 = arith.mulf %25, %26 : vector<8x8x4xf32>
    %cst_12 = arith.constant 2.500000e-01 : f32
    %28 = vector.broadcast %cst_12 : f32 to vector<8x8x4xf32>
    %29 = arith.mulf %22, %28 : vector<8x8x4xf32>
    %30 = arith.subf %29, %27 : vector<8x8x4xf32>
    %cst_13 = arith.constant dense<0.000000e+00> : vector<8x4x32xf32>
    %31 = tpu.matmul %30, %2, %cst_13 {dimension_numbers = #tpu.dot_dimension_numbers<[1], [1], [2], [2], [0, 0, 0, 2, 1, 2], [0], [0]>} : vector<8x8x4xf32>, vector<8x8x32xf32>, vector<8x4x32xf32> -> vector<8x4x32xf32>
    %c0_14 = arith.constant 0 : index
    %c0_15 = arith.constant 0 : index
    %32 = vector.load %arg4[%c0_14, %c0_15] : memref<4x32xf32, #tpu.memory_space<vmem>>, vector<4x32xf32>
    %33 = vector.shape_cast %32 : vector<4x32xf32> to vector<1x4x32xf32>
    %34 = vector.broadcast %33 : vector<1x4x32xf32> to vector<8x4x32xf32>
    %35 = arith.mulf %31, %34 : vector<8x4x32xf32>
    %36 = vector.shape_cast %35 : vector<8x4x32xf32> to vector<32x32xf32>
    %c0_16 = arith.constant 0 : index
    %c0_17 = arith.constant 0 : index
    %37 = vector.load %arg5[%c0_16, %c0_17] : memref<32x16xf32, #tpu.memory_space<vmem>>, vector<32x16xf32>
    %cst_18 = arith.constant dense<0.000000e+00> : vector<32x16xf32>
    %38 = tpu.matmul %36, %37, %cst_18 {dimension_numbers = #tpu.dot_dimension_numbers<[1], [0], [0], [1], [0, 0, 1, 1], [], []>} : vector<32x32xf32>, vector<32x16xf32>, vector<32x16xf32> -> vector<32x16xf32>
    %39 = vector.shape_cast %38 : vector<32x16xf32> to vector<8x4x16xf32>
    %cst_19 = arith.constant dense<0.000000e+00> : vector<8x4xf32>
    %40 = vector.multi_reduction <add>, %30, %cst_19 [1] : vector<8x8x4xf32> to vector<8x4xf32>
    %41 = vector.shape_cast %40 : vector<8x4xf32> to vector<8x1x4xf32>
    %42 = tpu.transpose %41, [0, 2, 1] : vector<8x1x4xf32> -> vector<8x4x1xf32>
    %c0_20 = arith.constant 0 : index
    %c0_21 = arith.constant 0 : index
    %43 = vector.load %arg6[%c0_20, %c0_21] : memref<4x16xf32, #tpu.memory_space<vmem>>, vector<4x16xf32>
    %44 = vector.shape_cast %43 : vector<4x16xf32> to vector<1x4x16xf32>
    %45 = vector.broadcast %42 : vector<8x4x1xf32> to vector<8x4x16xf32>
    %46 = vector.broadcast %44 : vector<1x4x16xf32> to vector<8x4x16xf32>
    %47 = arith.mulf %45, %46 : vector<8x4x16xf32>
    %48 = arith.addf %39, %47 : vector<8x4x16xf32>
    %cst_22 = arith.constant dense<0.000000e+00> : vector<8x4xf32>
    %49 = vector.multi_reduction <add>, %48, %cst_22 [2] : vector<8x4x16xf32> to vector<8x4xf32>
    %50 = vector.shape_cast %49 : vector<8x4xf32> to vector<8x4x1xf32>
    %cst_23 = arith.constant 1.600000e+01 : f32
    %51 = vector.broadcast %cst_23 : f32 to vector<8x4x1xf32>
    %52 = arith.divf %50, %51 : vector<8x4x1xf32>
    %53 = vector.broadcast %52 : vector<8x4x1xf32> to vector<8x4x16xf32>
    %54 = arith.subf %48, %53 : vector<8x4x16xf32>
    %55 = arith.mulf %54, %54 : vector<8x4x16xf32>
    %cst_24 = arith.constant dense<0.000000e+00> : vector<8x4xf32>
    %56 = vector.multi_reduction <add>, %55, %cst_24 [2] : vector<8x4x16xf32> to vector<8x4xf32>
    %57 = vector.shape_cast %56 : vector<8x4xf32> to vector<8x4x1xf32>
    %cst_25 = arith.constant 1.600000e+01 : f32
    %58 = vector.broadcast %cst_25 : f32 to vector<8x4x1xf32>
    %59 = arith.divf %57, %58 : vector<8x4x1xf32>
    %60 = vector.broadcast %52 : vector<8x4x1xf32> to vector<8x4x16xf32>
    %61 = arith.subf %48, %60 : vector<8x4x16xf32>
    %cst_26 = arith.constant 9.99999974E-6 : f32
    %62 = vector.broadcast %cst_26 : f32 to vector<8x4x1xf32>
    %63 = arith.addf %59, %62 : vector<8x4x1xf32>
    %64 = math.rsqrt %63 : vector<8x4x1xf32>
    %65 = vector.broadcast %64 : vector<8x4x1xf32> to vector<8x4x16xf32>
    %66 = arith.mulf %61, %65 : vector<8x4x16xf32>
    %67 = vector.shape_cast %66 : vector<8x4x16xf32> to vector<32x16xf32>
    %c0_27 = arith.constant 0 : index
    %c0_28 = arith.constant 0 : index
    %68 = vector.load %arg7[%c0_27, %c0_28] : memref<16x32xf32, #tpu.memory_space<vmem>>, vector<16x32xf32>
    %cst_29 = arith.constant dense<0.000000e+00> : vector<32x32xf32>
    %69 = tpu.matmul %67, %68, %cst_29 {dimension_numbers = #tpu.dot_dimension_numbers<[1], [0], [0], [1], [0, 0, 1, 1], [], []>} : vector<32x16xf32>, vector<16x32xf32>, vector<32x32xf32> -> vector<32x32xf32>
    %70 = vector.shape_cast %69 : vector<32x32xf32> to vector<8x4x32xf32>
    %c0_30 = arith.constant 0 : index
    %c0_31 = arith.constant 0 : index
    %71 = vector.load %arg8[%c0_30, %c0_31] : memref<4x32xf32, #tpu.memory_space<vmem>>, vector<4x32xf32>
    %72 = vector.shape_cast %71 : vector<4x32xf32> to vector<1x4x32xf32>
    %73 = vector.broadcast %72 : vector<1x4x32xf32> to vector<8x4x32xf32>
    %74 = arith.mulf %70, %73 : vector<8x4x32xf32>
    %c0_32 = arith.constant 0 : index
    %c0_33 = arith.constant 0 : index
    %75 = vector.load %arg9[%c0_32, %c0_33] : memref<4x32xf32, #tpu.memory_space<vmem>>, vector<4x32xf32>
    %76 = vector.shape_cast %75 : vector<4x32xf32> to vector<1x4x32xf32>
    %77 = vector.broadcast %76 : vector<1x4x32xf32> to vector<8x4x32xf32>
    %78 = arith.addf %74, %77 : vector<8x4x32xf32>
    %cst_34 = arith.constant dense<0.000000e+00> : vector<8x8x4xf32>
    %79 = tpu.matmul %0, %78, %cst_34 {dimension_numbers = #tpu.dot_dimension_numbers<[2], [2], [1], [1], [0, 0, 0, 1, 1, 1], [0], [0]>} : vector<8x8x32xf32>, vector<8x4x32xf32>, vector<8x8x4xf32> -> vector<8x8x4xf32>
    %c0_35 = arith.constant 0 : index
    %c0_36 = arith.constant 0 : index
    %80 = vector.load %arg10[%c0_35, %c0_36] : memref<8x4xf32, #tpu.memory_space<vmem>>, vector<8x4xf32>
    %81 = vector.shape_cast %80 : vector<8x4xf32> to vector<1x8x4xf32>
    %82 = vector.broadcast %81 : vector<1x8x4xf32> to vector<8x8x4xf32>
    %83 = arith.mulf %79, %82 : vector<8x8x4xf32>
    %c0_37 = arith.constant 0 : index
    %c0_38 = arith.constant 0 : index
    %84 = vector.load %arg11[%c0_37, %c0_38] : memref<8x4xf32, #tpu.memory_space<vmem>>, vector<8x4xf32>
    %85 = vector.shape_cast %84 : vector<8x4xf32> to vector<1x8x4xf32>
    %86 = vector.broadcast %85 : vector<1x8x4xf32> to vector<8x8x4xf32>
    %87 = arith.addf %83, %86 : vector<8x8x4xf32>
    %88 = arith.negf %87 : vector<8x8x4xf32>
    %89 = math.exp %88 : vector<8x8x4xf32>
    %cst_39 = arith.constant 1.000000e+00 : f32
    %90 = vector.broadcast %cst_39 : f32 to vector<8x8x4xf32>
    %91 = arith.addf %90, %89 : vector<8x8x4xf32>
    %92 = arith.divf %90, %91 : vector<8x8x4xf32>
    %cst_40 = arith.constant dense<0.000000e+00> : vector<8x8xf32>
    %93 = vector.multi_reduction <add>, %92, %cst_40 [2] : vector<8x8x4xf32> to vector<8x8xf32>
    %94 = vector.shape_cast %93 : vector<8x8xf32> to vector<8x8x1xf32>
    %95 = vector.broadcast %94 : vector<8x8x1xf32> to vector<8x8x4xf32>
    %96 = arith.divf %92, %95 : vector<8x8x4xf32>
    %97 = arith.mulf %22, %96 : vector<8x8x4xf32>
    %98 = arith.subf %97, %27 : vector<8x8x4xf32>
    %cst_41 = arith.constant dense<0.000000e+00> : vector<8x4x32xf32>
    %99 = tpu.matmul %98, %2, %cst_41 {dimension_numbers = #tpu.dot_dimension_numbers<[1], [1], [2], [2], [0, 0, 0, 2, 1, 2], [0], [0]>} : vector<8x8x4xf32>, vector<8x8x32xf32>, vector<8x4x32xf32> -> vector<8x4x32xf32>
    %c0_42 = arith.constant 0 : index
    %c0_43 = arith.constant 0 : index
    %100 = vector.load %arg4[%c0_42, %c0_43] : memref<4x32xf32, #tpu.memory_space<vmem>>, vector<4x32xf32>
    %101 = vector.shape_cast %100 : vector<4x32xf32> to vector<1x4x32xf32>
    %102 = vector.broadcast %101 : vector<1x4x32xf32> to vector<8x4x32xf32>
    %103 = arith.mulf %99, %102 : vector<8x4x32xf32>
    %104 = vector.shape_cast %103 : vector<8x4x32xf32> to vector<32x32xf32>
    %c0_44 = arith.constant 0 : index
    %c0_45 = arith.constant 0 : index
    %105 = vector.load %arg5[%c0_44, %c0_45] : memref<32x16xf32, #tpu.memory_space<vmem>>, vector<32x16xf32>
    %cst_46 = arith.constant dense<0.000000e+00> : vector<32x16xf32>
    %106 = tpu.matmul %104, %105, %cst_46 {dimension_numbers = #tpu.dot_dimension_numbers<[1], [0], [0], [1], [0, 0, 1, 1], [], []>} : vector<32x32xf32>, vector<32x16xf32>, vector<32x16xf32> -> vector<32x16xf32>
    %107 = vector.shape_cast %106 : vector<32x16xf32> to vector<8x4x16xf32>
    %cst_47 = arith.constant dense<0.000000e+00> : vector<8x4xf32>
    %108 = vector.multi_reduction <add>, %98, %cst_47 [1] : vector<8x8x4xf32> to vector<8x4xf32>
    %109 = vector.shape_cast %108 : vector<8x4xf32> to vector<8x1x4xf32>
    %110 = tpu.transpose %109, [0, 2, 1] : vector<8x1x4xf32> -> vector<8x4x1xf32>
    %c0_48 = arith.constant 0 : index
    %c0_49 = arith.constant 0 : index
    %111 = vector.load %arg6[%c0_48, %c0_49] : memref<4x16xf32, #tpu.memory_space<vmem>>, vector<4x16xf32>
    %112 = vector.shape_cast %111 : vector<4x16xf32> to vector<1x4x16xf32>
    %113 = vector.broadcast %110 : vector<8x4x1xf32> to vector<8x4x16xf32>
    %114 = vector.broadcast %112 : vector<1x4x16xf32> to vector<8x4x16xf32>
    %115 = arith.mulf %113, %114 : vector<8x4x16xf32>
    %116 = arith.addf %107, %115 : vector<8x4x16xf32>
    %cst_50 = arith.constant dense<0.000000e+00> : vector<8x4xf32>
    %117 = vector.multi_reduction <add>, %116, %cst_50 [2] : vector<8x4x16xf32> to vector<8x4xf32>
    %118 = vector.shape_cast %117 : vector<8x4xf32> to vector<8x4x1xf32>
    %cst_51 = arith.constant 1.600000e+01 : f32
    %119 = vector.broadcast %cst_51 : f32 to vector<8x4x1xf32>
    %120 = arith.divf %118, %119 : vector<8x4x1xf32>
    %121 = vector.broadcast %120 : vector<8x4x1xf32> to vector<8x4x16xf32>
    %122 = arith.subf %116, %121 : vector<8x4x16xf32>
    %123 = arith.mulf %122, %122 : vector<8x4x16xf32>
    %cst_52 = arith.constant dense<0.000000e+00> : vector<8x4xf32>
    %124 = vector.multi_reduction <add>, %123, %cst_52 [2] : vector<8x4x16xf32> to vector<8x4xf32>
    %125 = vector.shape_cast %124 : vector<8x4xf32> to vector<8x4x1xf32>
    %cst_53 = arith.constant 1.600000e+01 : f32
    %126 = vector.broadcast %cst_53 : f32 to vector<8x4x1xf32>
    %127 = arith.divf %125, %126 : vector<8x4x1xf32>
    %128 = vector.broadcast %120 : vector<8x4x1xf32> to vector<8x4x16xf32>
    %129 = arith.subf %116, %128 : vector<8x4x16xf32>
    %cst_54 = arith.constant 9.99999974E-6 : f32
    %130 = vector.broadcast %cst_54 : f32 to vector<8x4x1xf32>
    %131 = arith.addf %127, %130 : vector<8x4x1xf32>
    %132 = math.rsqrt %131 : vector<8x4x1xf32>
    %133 = vector.broadcast %132 : vector<8x4x1xf32> to vector<8x4x16xf32>
    %134 = arith.mulf %129, %133 : vector<8x4x16xf32>
    %c0_55 = arith.constant 0 : index
    %c0_56 = arith.constant 0 : index
    %c0_57 = arith.constant 0 : index
    %135 = vector.load %arg14[%c0_55, %c0_56, %c0_57] : memref<8x4x16xf32, #tpu.memory_space<vmem>>, vector<8x4x16xf32>
    tpu.vector_store %arg14[%c0_55, %c0_56, %c0_57], %134 {strides = array<i32>} : memref<8x4x16xf32, #tpu.memory_space<vmem>>, vector<8x4x16xf32>,
    return
  }
  func.func @transform_0(%arg0: i32) -> (i32, i32, i32) {
    %c0_i32 = arith.constant 0 : i32
    %c0_i32_0 = arith.constant 0 : i32
    %c0_i32_1 = arith.constant 0 : i32
    return %arg0, %c0_i32, %c0_i32_0 : i32, i32, i32
  }
  func.func @transform_1(%arg0: i32) -> (i32, i32) {
    %c0_i32 = arith.constant 0 : i32
    %c0_i32_0 = arith.constant 0 : i32
    %c0_i32_1 = arith.constant 0 : i32
    return %c0_i32, %c0_i32_0 : i32, i32
  }
  func.func @transform_2(%arg0: i32) -> (i32, i32) {
    %c0_i32 = arith.constant 0 : i32
    %c0_i32_0 = arith.constant 0 : i32
    %c0_i32_1 = arith.constant 0 : i32
    return %c0_i32, %c0_i32_0 : i32, i32
  }
  func.func @transform_3(%arg0: i32) -> (i32, i32) {
    %c0_i32 = arith.constant 0 : i32
    %c0_i32_0 = arith.constant 0 : i32
    %c0_i32_1 = arith.constant 0 : i32
    return %c0_i32, %c0_i32_0 : i32, i32
  }
  func.func @transform_4(%arg0: i32) -> (i32, i32) {
    %c0_i32 = arith.constant 0 : i32
    %c0_i32_0 = arith.constant 0 : i32
    %c0_i32_1 = arith.constant 0 : i32
    return %c0_i32, %c0_i32_0 : i32, i32
  }
  func.func @transform_5(%arg0: i32) -> (i32, i32) {
    %c0_i32 = arith.constant 0 : i32
    %c0_i32_0 = arith.constant 0 : i32
    %c0_i32_1 = arith.constant 0 : i32
    return %c0_i32, %c0_i32_0 : i32, i32
  }
  func.func @transform_6(%arg0: i32) -> (i32, i32) {
    %c0_i32 = arith.constant 0 : i32
    %c0_i32_0 = arith.constant 0 : i32
    %c0_i32_1 = arith.constant 0 : i32
    return %c0_i32, %c0_i32_0 : i32, i32
  }
  func.func @transform_7(%arg0: i32) -> (i32, i32) {
    %c0_i32 = arith.constant 0 : i32
    %c0_i32_0 = arith.constant 0 : i32
    %c0_i32_1 = arith.constant 0 : i32
    return %c0_i32, %c0_i32_0 : i32, i32
  }
  func.func @transform_8(%arg0: i32) -> (i32, i32) {
    %c0_i32 = arith.constant 0 : i32
    %c0_i32_0 = arith.constant 0 : i32
    %c0_i32_1 = arith.constant 0 : i32
    return %c0_i32, %c0_i32_0 : i32, i32
  }
  func.func @transform_9(%arg0: i32) -> (i32, i32) {
    %c0_i32 = arith.constant 0 : i32
    %c0_i32_0 = arith.constant 0 : i32
    %c0_i32_1 = arith.constant 0 : i32
    return %c0_i32, %c0_i32_0 : i32, i32
  }
  func.func @transform_10(%arg0: i32) -> (i32, i32) {
    %c0_i32 = arith.constant 0 : i32
    %c0_i32_0 = arith.constant 0 : i32
    %c0_i32_1 = arith.constant 0 : i32
    return %c0_i32, %c0_i32_0 : i32, i32
  }
  func.func @transform_11(%arg0: i32) -> (i32, i32) {
    %c0_i32 = arith.constant 0 : i32
    %c0_i32_0 = arith.constant 0 : i32
    %c0_i32_1 = arith.constant 0 : i32
    return %c0_i32, %c0_i32_0 : i32, i32
  }
  func.func @transform_12(%arg0: i32) -> (i32, i32) {
    %c0_i32 = arith.constant 0 : i32
    %c0_i32_0 = arith.constant 0 : i32
    %c0_i32_1 = arith.constant 0 : i32
    return %c0_i32, %c0_i32_0 : i32, i32
  }
  func.func @transform_13(%arg0: i32) -> (i32, i32, i32) {
    %c0_i32 = arith.constant 0 : i32
    %c0_i32_0 = arith.constant 0 : i32
    %c0_i32_1 = arith.constant 0 : i32
    return %arg0, %c0_i32, %c0_i32_0 : i32, i32, i32
  }
}

</mosaic_0001>

<llo_original>
// kernel: tpu_custom_call.1
$region0: #{tpu_custom_call.1}
  #allocation0 [shape = 'u32[]', space=smem, size = 0x4, offset = 0x4, fixed_abs, tag = 'smem constant byte address 0x4 - core index']
  #allocation1 [shape = 'u32[144,128]{1,0:T(1,128)}', space=vmem, size = 0x12000, scoped, tag = 'internal scratch']
  %s0 = inlined_call_operand.vmem [shape: f32[8,8,32], index: 0, kind: input, shape index: {}]
  %s1 = inlined_call_operand.vmem [shape: f32[8,32], index: 1, kind: input, shape index: {}]
  %s2 = inlined_call_operand.vmem [shape: f32[8,1], index: 2, kind: input, shape index: {}]
  %s3 = inlined_call_operand.hbm [shape: f32[4,32], index: 3, kind: input, shape index: {}]
  %s4 = inlined_call_operand.vmem [shape: f32[32,16], index: 4, kind: input, shape index: {}]
  %s5 = inlined_call_operand.hbm [shape: f32[4,16], index: 5, kind: input, shape index: {}]
  %s6 = inlined_call_operand.vmem [shape: f32[16,32], index: 6, kind: input, shape index: {}]
  %s7 = inlined_call_operand.vmem [shape: f32[4,32], index: 7, kind: input, shape index: {}]
  %s8 = inlined_call_operand.vmem [shape: f32[4,32], index: 8, kind: input, shape index: {}]
  %s9 = inlined_call_operand.vmem [shape: f32[8,4], index: 9, kind: input, shape index: {}]
  %s10 = inlined_call_operand.vmem [shape: f32[8,4], index: 10, kind: input, shape index: {}]
  %s11 = inlined_call_operand.vmem [shape: f32[8,4], index: 11, kind: input, shape index: {}]
  %s12 = inlined_call_operand.vmem [shape: f32[8,4], index: 12, kind: input, shape index: {}]
  %s13 = inlined_call_operand.hbm [shape: f32[8,4,16], index: 13, kind: output, shape index: {}]
  %s14 = sld [smem:[#allocation0]]
  $region70: #{tpu_custom_call.1} parent=0
    _
  %s16 = ssub.s32 1, %s14
  %s17 = scalar_select 0, %s16, %s14
  $region1: #{tpu_custom_call.1} parent=0
    #allocation2 [shape = 'u8[2048]{0}', space=vmem, size = 0x800, scoped, tag = 'input window, operand 3, single buffered']
    #allocation3 [shape = 's32[1]{0}', space=sflag, size = 0x4, scoped, tag = 'scoped memory for tpu_custom_call.1']
    #allocation4 [shape = 's32[1]{0}', space=sflag, size = 0x4, scoped, tag = 'scoped memory for tpu_custom_call.1']
    #allocation5 [shape = 'u8[2048]{0}', space=vmem, size = 0x800, scoped, tag = 'input window, operand 5, single buffered']
    #allocation6 [shape = 's32[1]{0}', space=sflag, size = 0x4, scoped, tag = 'scoped memory for tpu_custom_call.1']
    #allocation7 [shape = 'u8[16384]{0}', space=vmem, size = 0x4000, scoped, tag = 'output window, operand 0, single buffered']
    %18 = vsyncpa [#allocation3], 0
    %19 = vsyncpa [#allocation6], 0
    %20 = vsyncpa [#allocation4], 0
    // Predicated region
    $region2: #{tpu_custom_call.1} parent=1 // pred_check
      _
    $region3: #{tpu_custom_call.1} parent=1 // pred_check_branch
      %22 = sbr.rel (0) target = $region5
    $region4: #{tpu_custom_call.1} parent=1 // pred_region
      _
    $region5: #{tpu_custom_call.1} parent=1 // pred_fallthru
      _
    // Predicated region
    $region6: #{tpu_custom_call.1} parent=1 // pred_check
      _
    $region7: #{tpu_custom_call.1} parent=1 // pred_check_branch
      %24 = sbr.rel (0) target = $region9
    $region8: #{tpu_custom_call.1} parent=1 // pred_region
      _
    $region9: #{tpu_custom_call.1} parent=1 // pred_fallthru
      _
    // Predicated region
    $region10: #{tpu_custom_call.1} parent=1 // pred_check
      _
    $region11: #{tpu_custom_call.1} parent=1 // pred_check_branch
      %26 = sbr.rel (0) target = $region13
    $region12: #{tpu_custom_call.1} parent=1 // pred_region
      _
    $region13: #{tpu_custom_call.1} parent=1 // pred_fallthru
      _
    // Predicated region
    $region14: #{tpu_custom_call.1} parent=1 // pred_check
      _
    $region15: #{tpu_custom_call.1} parent=1 // pred_check_branch
      %28 = sbr.rel (0) target = $region17
    $region16: #{tpu_custom_call.1} parent=1 // pred_region
      %s30 = ssub.s32 64, 64
      %31 = vsyncadd [#allocation3], %s30
      %s33 = sshll.u32 [#allocation2], 4
      %s34 = int_to_ptr.vmem [resolvable:$true] %s33
      %36 = dma.hbm_to_vmem [thread:$0]  %s3, 64, %s34, [#allocation3]
    $region17: #{tpu_custom_call.1} parent=1 // pred_fallthru
      _
    // Predicated region
    $region18: #{tpu_custom_call.1} parent=1 // pred_check
      _
    $region19: #{tpu_custom_call.1} parent=1 // pred_check_branch
      %38 = sbr.rel (0) target = $region21
    $region20: #{tpu_custom_call.1} parent=1 // pred_region
      _
    $region21: #{tpu_custom_call.1} parent=1 // pred_fallthru
      _
    // Predicated region
    $region22: #{tpu_custom_call.1} parent=1 // pred_check
      _
    $region23: #{tpu_custom_call.1} parent=1 // pred_check_branch
      %40 = sbr.rel (0) target = $region25
    $region24: #{tpu_custom_call.1} parent=1 // pred_region
      %s42 = ssub.s32 64, 64
      %43 = vsyncadd [#allocation6], %s42
      %s45 = sshll.u32 [#allocation5], 4
      %s46 = int_to_ptr.vmem [resolvable:$true] %s45
      %48 = dma.hbm_to_vmem [thread:$0]  %s5, 64, %s46, [#allocation6]
    $region25: #{tpu_custom_call.1} parent=1 // pred_fallthru
      _
    // Predicated region
    $region26: #{tpu_custom_call.1} parent=1 // pred_check
      _
    $region27: #{tpu_custom_call.1} parent=1 // pred_check_branch
      %50 = sbr.rel (0) target = $region29
    $region28: #{tpu_custom_call.1} parent=1 // pred_region
      _
    $region29: #{tpu_custom_call.1} parent=1 // pred_fallthru
      _
    // Predicated region
    $region30: #{tpu_custom_call.1} parent=1 // pred_check
      _
    $region31: #{tpu_custom_call.1} parent=1 // pred_check_branch
      %52 = sbr.rel (0) target = $region33
    $region32: #{tpu_custom_call.1} parent=1 // pred_region
      _
    $region33: #{tpu_custom_call.1} parent=1 // pred_fallthru
      _
    // Predicated region
    $region34: #{tpu_custom_call.1} parent=1 // pred_check
      _
    $region35: #{tpu_custom_call.1} parent=1 // pred_check_branch
      %54 = sbr.rel (0) target = $region37
    $region36: #{tpu_custom_call.1} parent=1 // pred_region
      _
    $region37: #{tpu_custom_call.1} parent=1 // pred_fallthru
      _
    // Predicated region
    $region38: #{tpu_custom_call.1} parent=1 // pred_check
      _
    $region39: #{tpu_custom_call.1} parent=1 // pred_check_branch
      %56 = sbr.rel (0) target = $region41
    $region40: #{tpu_custom_call.1} parent=1 // pred_region
      _
    $region41: #{tpu_custom_call.1} parent=1 // pred_fallthru
      _
    // Predicated region
    $region42: #{tpu_custom_call.1} parent=1 // pred_check
      _
    $region43: #{tpu_custom_call.1} parent=1 // pred_check_branch
      %58 = sbr.rel (0) target = $region45
    $region44: #{tpu_custom_call.1} parent=1 // pred_region
      _
    $region45: #{tpu_custom_call.1} parent=1 // pred_fallthru
      _
    // Predicated region
    $region46: #{tpu_custom_call.1} parent=1 // pred_check
      _
    $region47: #{tpu_custom_call.1} parent=1 // pred_check_branch
      %60 = sbr.rel (0) target = $region49
    $region48: #{tpu_custom_call.1} parent=1 // pred_region
      _
    $region49: #{tpu_custom_call.1} parent=1 // pred_fallthru
      _
    // Predicated region
    $region50: #{tpu_custom_call.1} parent=1 // pred_check
      _
    $region51: #{tpu_custom_call.1} parent=1 // pred_check_branch
      %62 = sbr.rel (0) target = $region53
    $region52: #{tpu_custom_call.1} parent=1 // pred_region
      _
    $region53: #{tpu_custom_call.1} parent=1 // pred_fallthru
      _
    // Predicated region
    $region54: #{tpu_custom_call.1} parent=1 // pred_check
      _
    $region55: #{tpu_custom_call.1} parent=1 // pred_check_branch
      %64 = sbr.rel (0) target = $region57
    $region56: #{tpu_custom_call.1} parent=1 // pred_region
      %65 = dma.done [#allocation3], 64
    $region57: #{tpu_custom_call.1} parent=1 // pred_fallthru
      _
    // Predicated region
    $region58: #{tpu_custom_call.1} parent=1 // pred_check
      _
    $region59: #{tpu_custom_call.1} parent=1 // pred_check_branch
      %67 = sbr.rel (0) target = $region61
    $region60: #{tpu_custom_call.1} parent=1 // pred_region
      %68 = dma.done [#allocation6], 64
    $region61: #{tpu_custom_call.1} parent=1 // pred_fallthru
      _
    %v69 = vld [vmem:[%s0] sm:$0xff]
    %v70 = vld [vmem:[%s0 + $0x8] sm:$0xff]
    %v71 = vld [vmem:[%s0 + $0x10] sm:$0xff]
    %v72 = vld [vmem:[%s0 + $0x18] sm:$0xff]
    %v73 = vld [vmem:[%s0 + $0x20] sm:$0xff]
    %v74 = vld [vmem:[%s0 + $0x28] sm:$0xff]
    %v75 = vld [vmem:[%s0 + $0x30] sm:$0xff]
    %v76 = vld [vmem:[%s0 + $0x38] sm:$0xff]
    %v77 = vmul.f32 %v69, 0.35355338
    %v78 = vmul.f32 %v70, 0.35355338
    %v79 = vmul.f32 %v71, 0.35355338
    %v80 = vmul.f32 %v72, 0.35355338
    %v81 = vmul.f32 %v73, 0.35355338
    %v82 = vmul.f32 %v74, 0.35355338
    %v83 = vmul.f32 %v75, 0.35355338
    %v84 = vmul.f32 %v76, 0.35355338
    %v85 = vld [vmem:[%s1] sm:$0xff]
    %v86 = vmul.f32 %v77, %v85
    %v87 = vmul.f32 %v78, %v85
    %v88 = vmul.f32 %v79, %v85
    %v89 = vmul.f32 %v80, %v85
    %v90 = vmul.f32 %v81, %v85
    %v91 = vmul.f32 %v82, %v85
    %v92 = vmul.f32 %v83, %v85
    %v93 = vmul.f32 %v84, %v85
    %vm94 = vcmask 261120
    %v95 = vsel %vm94, %v86, 0.0
    %96 = vadd.xlane.f32.xlu0 %v95
    %v97 = vpop.xlane.xlu0 %96
    %v98 = vsel %vm94, %v87, 0.0
    %99 = vadd.xlane.f32.xlu0 %v98
    %v100 = vpop.xlane.xlu0 %99
    %v101 = vsel %vm94, %v88, 0.0
    %102 = vadd.xlane.f32.xlu0 %v101
    %v103 = vpop.xlane.xlu0 %102
    %v104 = vsel %vm94, %v89, 0.0
    %105 = vadd.xlane.f32.xlu0 %v104
    %v106 = vpop.xlane.xlu0 %105
    %v107 = vsel %vm94, %v90, 0.0
    %108 = vadd.xlane.f32.xlu0 %v107
    %v109 = vpop.xlane.xlu0 %108
    %v110 = vsel %vm94, %v91, 0.0
    %111 = vadd.xlane.f32.xlu0 %v110
    %v112 = vpop.xlane.xlu0 %111
    %v113 = vsel %vm94, %v92, 0.0
    %114 = vadd.xlane.f32.xlu0 %v113
    %v115 = vpop.xlane.xlu0 %114
    %v116 = vsel %vm94, %v93, 0.0
    %117 = vadd.xlane.f32.xlu0 %v116
    %v118 = vpop.xlane.xlu0 %117
    %v119 = vld [vmem:[%s2] sm:$0xff]
    %v120 = vadd.f32 %v97, %v119
    %v121 = vadd.f32 %v100, %v119
    %v122 = vadd.f32 %v103, %v119
    %v123 = vadd.f32 %v106, %v119
    %v124 = vadd.f32 %v109, %v119
    %v125 = vadd.f32 %v112, %v119
    %v126 = vadd.f32 %v115, %v119
    %v127 = vadd.f32 %v118, %v119
    %v128 = vxor.u32 %v120, 2147483648
    %v129 = vxor.u32 %v121, 2147483648
    %v130 = vxor.u32 %v122, 2147483648
    %v131 = vxor.u32 %v123, 2147483648
    %v132 = vxor.u32 %v124, 2147483648
    %v133 = vxor.u32 %v125, 2147483648
    %v134 = vxor.u32 %v126, 2147483648
    %v135 = vxor.u32 %v127, 2147483648
    %v136 = vmul.f32 %v128, 1.442695
    %v137 = vpow.pop %v136
    %v138 = vmul.f32 %v129, 1.442695
    %v139 = vpow.pop %v138
    %v140 = vmul.f32 %v130, 1.442695
    %v141 = vpow.pop %v140
    %v142 = vmul.f32 %v131, 1.442695
    %v143 = vpow.pop %v142
    %v144 = vmul.f32 %v132, 1.442695
    %v145 = vpow.pop %v144
    %v146 = vmul.f32 %v133, 1.442695
    %v147 = vpow.pop %v146
    %v148 = vmul.f32 %v134, 1.442695
    %v149 = vpow.pop %v148
    %v150 = vmul.f32 %v135, 1.442695
    %v151 = vpow.pop %v150
    %v152 = vadd.f32 %v137, 1.0
    %v153 = vadd.f32 %v139, 1.0
    %v154 = vadd.f32 %v141, 1.0
    %v155 = vadd.f32 %v143, 1.0
    %v156 = vadd.f32 %v145, 1.0
    %v157 = vadd.f32 %v147, 1.0
    %v158 = vadd.f32 %v149, 1.0
    %v159 = vadd.f32 %v151, 1.0
    %v160 = vrcp.pop %v152
    %v161 = vmul.f32 1.0, %v160
    %v162 = vrcp.pop %v153
    %v163 = vmul.f32 1.0, %v162
    %v164 = vrcp.pop %v154
    %v165 = vmul.f32 1.0, %v164
    %v166 = vrcp.pop %v155
    %v167 = vmul.f32 1.0, %v166
    %v168 = vrcp.pop %v156
    %v169 = vmul.f32 1.0, %v168
    %v170 = vrcp.pop %v157
    %v171 = vmul.f32 1.0, %v170
    %v172 = vrcp.pop %v158
    %v173 = vmul.f32 1.0, %v172
    %v174 = vrcp.pop %v159
    %v175 = vmul.f32 1.0, %v174
    %v176 = vld [vmem:[%s11] sm:$0xff]
    %178 = vset.pattern.permute.xlu0 0
    %179 = vperm.xlu0 %178, %v161
    %v180 = vpop.permute.xlu0 %179
    %183 = vset.pattern.permute.xlu0 0
    %184 = vperm.xlu0 %183, %v163
    %v185 = vpop.permute.xlu0 %184
    %188 = vset.pattern.permute.xlu0 0
    %189 = vperm.xlu0 %188, %v165
    %v190 = vpop.permute.xlu0 %189
    %193 = vset.pattern.permute.xlu0 0
    %194 = vperm.xlu0 %193, %v167
    %v195 = vpop.permute.xlu0 %194
    %198 = vset.pattern.permute.xlu0 0
    %199 = vperm.xlu0 %198, %v169
    %v200 = vpop.permute.xlu0 %199
    %203 = vset.pattern.permute.xlu0 0
    %204 = vperm.xlu0 %203, %v171
    %v205 = vpop.permute.xlu0 %204
    %208 = vset.pattern.permute.xlu0 0
    %209 = vperm.xlu0 %208, %v173
    %v210 = vpop.permute.xlu0 %209
    %213 = vset.pattern.permute.xlu0 0
    %214 = vperm.xlu0 %213, %v175
    %v215 = vpop.permute.xlu0 %214
    %v217 = vmul.f32 %v176, %v180
    %v218 = vmul.f32 %v176, %v185
    %v219 = vmul.f32 %v176, %v190
    %v220 = vmul.f32 %v176, %v195
    %v221 = vmul.f32 %v176, %v200
    %v222 = vmul.f32 %v176, %v205
    %v223 = vmul.f32 %v176, %v210
    %v224 = vmul.f32 %v176, %v215
    %v225 = vld [vmem:[%s12] sm:$0xff]
    %v226 = vmul.f32 %v225, %v180
    %v227 = vmul.f32 %v225, %v185
    %v228 = vmul.f32 %v225, %v190
    %v229 = vmul.f32 %v225, %v195
    %v230 = vmul.f32 %v225, %v200
    %v231 = vmul.f32 %v225, %v205
    %v232 = vmul.f32 %v225, %v210
    %v233 = vmul.f32 %v225, %v215
    %v234 = vmul.f32 %v217, 0.25
    %v235 = vmul.f32 %v218, 0.25
    %v236 = vmul.f32 %v219, 0.25
    %v237 = vmul.f32 %v220, 0.25
    %v238 = vmul.f32 %v221, 0.25
    %v239 = vmul.f32 %v222, 0.25
    %v240 = vmul.f32 %v223, 0.25
    %v241 = vmul.f32 %v224, 0.25
    %v242 = vsub.f32 %v234, %v226
    %v243 = vsub.f32 %v235, %v227
    %v244 = vsub.f32 %v236, %v228
    %v245 = vsub.f32 %v237, %v229
    %v246 = vsub.f32 %v238, %v230
    %v247 = vsub.f32 %v239, %v231
    %v248 = vsub.f32 %v240, %v232
    %v249 = vsub.f32 %v241, %v233
    %250 = vxpose.xlu0.b32.start [1/16] %v242, 128
    %251 = vxpose.xlu0.b32.cont [2/16] 0.0, 128
    %252 = vxpose.xlu0.b32.cont [3/16] 0.0, 128
    %253 = vxpose.xlu0.b32.cont [4/16] 0.0, 128
    %254 = vxpose.xlu0.b32.cont [5/16] 0.0, 128
    %255 = vxpose.xlu0.b32.cont [6/16] 0.0, 128
    %256 = vxpose.xlu0.b32.cont [7/16] 0.0, 128
    %257 = vxpose.xlu0.b32.cont [8/16] 0.0, 128
    %258 = vxpose.xlu0.b32.cont [9/16] 0.0, 128
    %259 = vxpose.xlu0.b32.cont [10/16] 0.0, 128
    %260 = vxpose.xlu0.b32.cont [11/16] 0.0, 128
    %261 = vxpose.xlu0.b32.cont [12/16] 0.0, 128
    %262 = vxpose.xlu0.b32.cont [13/16] 0.0, 128
    %263 = vxpose.xlu0.b32.cont [14/16] 0.0, 128
    %264 = vxpose.xlu0.b32.cont [15/16] 0.0, 128
    %265 = vxpose.xlu0.b32.end [16/16] 0.0, 128
    %v266 = vpop.trf.xlu0
    %v267 = vpop.trf.xlu0
    %v268 = vpop.trf.xlu0
    %v269 = vpop.trf.xlu0
    %v270 = vpop.trf.xlu0
    %v271 = vpop.trf.xlu0
    %v272 = vpop.trf.xlu0
    %v273 = vpop.trf.xlu0
    %v274 = vpop.trf.xlu0
    %v275 = vpop.trf.xlu0
    %v276 = vpop.trf.xlu0
    %v277 = vpop.trf.xlu0
    %v278 = vpop.trf.xlu0
    %v279 = vpop.trf.xlu0
    %v280 = vpop.trf.xlu0
    %v281 = vpop.trf.xlu0
    %vm282 = vcmask 64512
    %v284 = vsel %vm282, %v266, 0
    %286 = vmatprep.subr.mxu0 0.0
    %287 = vmatpush1.msra.mxu0 %v77
    %288 = vmatprep.subr.mxu0 0.0
    %289 = vmatpush1.msra.mxu0 0.0
    %290 = vmatprep.subr.mxu0 0.0
    %291 = vmatpush1.msra.mxu0 0.0
    %292 = vmatprep.subr.mxu0 0.0
    %293 = vmatpush1.msra.mxu0 0.0
    %294 = vmatprep.subr.mxu0 0.0
    %295 = vmatpush1.msra.mxu0 0.0
    %296 = vmatprep.subr.mxu0 0.0
    %297 = vmatpush1.msra.mxu0 0.0
    %298 = vmatprep.subr.mxu0 0.0
    %299 = vmatpush1.msra.mxu0 0.0
    %300 = vmatprep.subr.mxu0 0.0
    %301 = vmatpush1.msra.mxu0 0.0
    %302 = vmatprep.subr.mxu0 0.0
    %303 = vmatpush1.msra.mxu0 0.0
    %304 = vmatprep.subr.mxu0 0.0
    %305 = vmatpush1.msra.mxu0 0.0
    %306 = vmatprep.subr.mxu0 0.0
    %307 = vmatpush1.msra.mxu0 0.0
    %308 = vmatprep.subr.mxu0 0.0
    %309 = vmatpush1.msra.mxu0 0.0
    %310 = vmatprep.subr.mxu0 0.0
    %311 = vmatpush1.msra.mxu0 0.0
    %312 = vmatprep.subr.mxu0 0.0
    %313 = vmatpush1.msra.mxu0 0.0
    %314 = vmatprep.subr.mxu0 0.0
    %315 = vmatpush1.msra.mxu0 0.0
    %316 = vmatprep.subr.mxu0 0.0
    %317 = vmatpush1.msra.mxu0 0.0
    %318 = vmatprep.subr.mxu0 0.0
    %319 = vmatpush1.msra.mxu0 0.0
    %320 = vmatprep.subr.mxu0 0.0
    %321 = vmatpush1.msra.mxu0 0.0
    %322 = vmatprep.subr.mxu0 0.0
    %323 = vmatpush1.msra.mxu0 0.0
    %324 = vmatprep.subr.mxu0 0.0
    %325 = vmatpush1.msra.mxu0 0.0
    %326 = vmatprep.subr.mxu0 0.0
    %327 = vmatpush1.msra.mxu0 0.0
    %328 = vmatprep.subr.mxu0 0.0
    %329 = vmatpush1.msra.mxu0 0.0
    %330 = vmatprep.subr.mxu0 0.0
    %331 = vmatpush1.msra.mxu0 0.0
    %332 = vmatprep.subr.mxu0 0.0
    %333 = vmatpush1.msra.mxu0 0.0
    %334 = vmatprep.subr.mxu0 0.0
    %335 = vmatpush1.msra.mxu0 0.0
    %336 = vmatprep.subr.mxu0 0.0
    %337 = vmatpush1.msra.mxu0 0.0
    %338 = vmatprep.subr.mxu0 0.0
    %339 = vmatpush1.msra.mxu0 0.0
    %340 = vmatprep.subr.mxu0 0.0
    %341 = vmatpush1.msra.mxu0 0.0
    %342 = vmatprep.subr.mxu0 0.0
    %343 = vmatpush1.msra.mxu0 0.0
    %344 = vmatprep.subr.mxu0 0.0
    %345 = vmatpush1.msra.mxu0 0.0
    %346 = vmatprep.subr.mxu0 0.0
    %347 = vmatpush1.msra.mxu0 0.0
    %348 = vmatprep.subr.mxu0 0.0
    %349 = vmatpush1.msra.mxu0 0.0
    %350 = vmatprep.mubr.f32.mxu0 0.0
    %351 = vmatmul.mubr.f32.gmra.mrb[0].mxu0 %v284
    %v352 = vpop.f32.mrb[0].mxu0
    %v353 = vadd.f32 0.0, %v352
    %v354 = vpop.f32.mrb[0].mxu0
    %355 = vdwg.mxu0
    %356 = vxpose.xlu0.b32.start [1/16] %v243, 128
    %357 = vxpose.xlu0.b32.cont [2/16] 0.0, 128
    %358 = vxpose.xlu0.b32.cont [3/16] 0.0, 128
    %359 = vxpose.xlu0.b32.cont [4/16] 0.0, 128
    %360 = vxpose.xlu0.b32.cont [5/16] 0.0, 128
    %361 = vxpose.xlu0.b32.cont [6/16] 0.0, 128
    %362 = vxpose.xlu0.b32.cont [7/16] 0.0, 128
    %363 = vxpose.xlu0.b32.cont [8/16] 0.0, 128
    %364 = vxpose.xlu0.b32.cont [9/16] 0.0, 128
    %365 = vxpose.xlu0.b32.cont [10/16] 0.0, 128
    %366 = vxpose.xlu0.b32.cont [11/16] 0.0, 128
    %367 = vxpose.xlu0.b32.cont [12/16] 0.0, 128
    %368 = vxpose.xlu0.b32.cont [13/16] 0.0, 128
    %369 = vxpose.xlu0.b32.cont [14/16] 0.0, 128
    %370 = vxpose.xlu0.b32.cont [15/16] 0.0, 128
    %371 = vxpose.xlu0.b32.end [16/16] 0.0, 128
    %v372 = vpop.trf.xlu0
    %v373 = vpop.trf.xlu0
    %v374 = vpop.trf.xlu0
    %v375 = vpop.trf.xlu0
    %v376 = vpop.trf.xlu0
    %v377 = vpop.trf.xlu0
    %v378 = vpop.trf.xlu0
    %v379 = vpop.trf.xlu0
    %v380 = vpop.trf.xlu0
    %v381 = vpop.trf.xlu0
    %v382 = vpop.trf.xlu0
    %v383 = vpop.trf.xlu0
    %v384 = vpop.trf.xlu0
    %v385 = vpop.trf.xlu0
    %v386 = vpop.trf.xlu0
    %v387 = vpop.trf.xlu0
    %v389 = vsel %vm282, %v372, 0
    %391 = vmatprep.subr.mxu0 0.0
    %392 = vmatpush1.msra.mxu0 %v78
    %393 = vmatprep.subr.mxu0 0.0
    %394 = vmatpush1.msra.mxu0 0.0
    %395 = vmatprep.subr.mxu0 0.0
    %396 = vmatpush1.msra.mxu0 0.0
    %397 = vmatprep.subr.mxu0 0.0
    %398 = vmatpush1.msra.mxu0 0.0
    %399 = vmatprep.subr.mxu0 0.0
    %400 = vmatpush1.msra.mxu0 0.0
    %401 = vmatprep.subr.mxu0 0.0
    %402 = vmatpush1.msra.mxu0 0.0
    %403 = vmatprep.subr.mxu0 0.0
    %404 = vmatpush1.msra.mxu0 0.0
    %405 = vmatprep.subr.mxu0 0.0
    %406 = vmatpush1.msra.mxu0 0.0
    %407 = vmatprep.subr.mxu0 0.0
    %408 = vmatpush1.msra.mxu0 0.0
    %409 = vmatprep.subr.mxu0 0.0
    %410 = vmatpush1.msra.mxu0 0.0
    %411 = vmatprep.subr.mxu0 0.0
    %412 = vmatpush1.msra.mxu0 0.0
    %413 = vmatprep.subr.mxu0 0.0
    %414 = vmatpush1.msra.mxu0 0.0
    %415 = vmatprep.subr.mxu0 0.0
    %416 = vmatpush1.msra.mxu0 0.0
    %417 = vmatprep.subr.mxu0 0.0
    %418 = vmatpush1.msra.mxu0 0.0
    %419 = vmatprep.subr.mxu0 0.0
    %420 = vmatpush1.msra.mxu0 0.0
    %421 = vmatprep.subr.mxu0 0.0
    %422 = vmatpush1.msra.mxu0 0.0
    %423 = vmatprep.subr.mxu0 0.0
    %424 = vmatpush1.msra.mxu0 0.0
    %425 = vmatprep.subr.mxu0 0.0
    %426 = vmatpush1.msra.mxu0 0.0
    %427 = vmatprep.subr.mxu0 0.0
    %428 = vmatpush1.msra.mxu0 0.0
    %429 = vmatprep.subr.mxu0 0.0
    %430 = vmatpush1.msra.mxu0 0.0
    %431 = vmatprep.subr.mxu0 0.0
    %432 = vmatpush1.msra.mxu0 0.0
    %433 = vmatprep.subr.mxu0 0.0
    %434 = vmatpush1.msra.mxu0 0.0
    %435 = vmatprep.subr.mxu0 0.0
    %436 = vmatpush1.msra.mxu0 0.0
    %437 = vmatprep.subr.mxu0 0.0
    %438 = vmatpush1.msra.mxu0 0.0
    %439 = vmatprep.subr.mxu0 0.0
    %440 = vmatpush1.msra.mxu0 0.0
    %441 = vmatprep.subr.mxu0 0.0
    %442 = vmatpush1.msra.mxu0 0.0
    %443 = vmatprep.subr.mxu0 0.0
    %444 = vmatpush1.msra.mxu0 0.0
    %445 = vmatprep.subr.mxu0 0.0
    %446 = vmatpush1.msra.mxu0 0.0
    %447 = vmatprep.subr.mxu0 0.0
    %448 = vmatpush1.msra.mxu0 0.0
    %449 = vmatprep.subr.mxu0 0.0
    %450 = vmatpush1.msra.mxu0 0.0
    %451 = vmatprep.subr.mxu0 0.0
    %452 = vmatpush1.msra.mxu0 0.0
    %453 = vmatprep.subr.mxu0 0.0
    %454 = vmatpush1.msra.mxu0 0.0
    %455 = vmatprep.mubr.f32.mxu0 0.0
    %456 = vmatmul.mubr.f32.gmra.mrb[0].mxu0 %v389
    %v457 = vpop.f32.mrb[0].mxu0
    %v458 = vadd.f32 0.0, %v457
    %v459 = vpop.f32.mrb[0].mxu0
    %460 = vdwg.mxu0
    %461 = vxpose.xlu0.b32.start [1/16] %v244, 128
    %462 = vxpose.xlu0.b32.cont [2/16] 0.0, 128
    %463 = vxpose.xlu0.b32.cont [3/16] 0.0, 128
    %464 = vxpose.xlu0.b32.cont [4/16] 0.0, 128
    %465 = vxpose.xlu0.b32.cont [5/16] 0.0, 128
    %466 = vxpose.xlu0.b32.cont [6/16] 0.0, 128
    %467 = vxpose.xlu0.b32.cont [7/16] 0.0, 128
    %468 = vxpose.xlu0.b32.cont [8/16] 0.0, 128
    %469 = vxpose.xlu0.b32.cont [9/16] 0.0, 128
    %470 = vxpose.xlu0.b32.cont [10/16] 0.0, 128
    %471 = vxpose.xlu0.b32.cont [11/16] 0.0, 128
    %472 = vxpose.xlu0.b32.cont [12/16] 0.0, 128
    %473 = vxpose.xlu0.b32.cont [13/16] 0.0, 128
    %474 = vxpose.xlu0.b32.cont [14/16] 0.0, 128
    %475 = vxpose.xlu0.b32.cont [15/16] 0.0, 128
    %476 = vxpose.xlu0.b32.end [16/16] 0.0, 128
    %v477 = vpop.trf.xlu0
    %v478 = vpop.trf.xlu0
    %v479 = vpop.trf.xlu0
    %v480 = vpop.trf.xlu0
    %v481 = vpop.trf.xlu0
    %v482 = vpop.trf.xlu0
    %v483 = vpop.trf.xlu0
    %v484 = vpop.trf.xlu0
    %v485 = vpop.trf.xlu0
    %v486 = vpop.trf.xlu0
    %v487 = vpop.trf.xlu0
    %v488 = vpop.trf.xlu0
    %v489 = vpop.trf.xlu0
    %v490 = vpop.trf.xlu0
    %v491 = vpop.trf.xlu0
    %v492 = vpop.trf.xlu0
    %v494 = vsel %vm282, %v477, 0
    %496 = vmatprep.subr.mxu0 0.0
    %497 = vmatpush1.msra.mxu0 %v79
    %498 = vmatprep.subr.mxu0 0.0
    %499 = vmatpush1.msra.mxu0 0.0
    %500 = vmatprep.subr.mxu0 0.0
    %501 = vmatpush1.msra.mxu0 0.0
    %502 = vmatprep.subr.mxu0 0.0
    %503 = vmatpush1.msra.mxu0 0.0
    %504 = vmatprep.subr.mxu0 0.0
    %505 = vmatpush1.msra.mxu0 0.0
    %506 = vmatprep.subr.mxu0 0.0
    %507 = vmatpush1.msra.mxu0 0.0
    %508 = vmatprep.subr.mxu0 0.0
    %509 = vmatpush1.msra.mxu0 0.0
    %510 = vmatprep.subr.mxu0 0.0
    %511 = vmatpush1.msra.mxu0 0.0
    %512 = vmatprep.subr.mxu0 0.0
    %513 = vmatpush1.msra.mxu0 0.0
    %514 = vmatprep.subr.mxu0 0.0
    %515 = vmatpush1.msra.mxu0 0.0
    %516 = vmatprep.subr.mxu0 0.0
    %517 = vmatpush1.msra.mxu0 0.0
    %518 = vmatprep.subr.mxu0 0.0
    %519 = vmatpush1.msra.mxu0 0.0
    %520 = vmatprep.subr.mxu0 0.0
    %521 = vmatpush1.msra.mxu0 0.0
    %522 = vmatprep.subr.mxu0 0.0
    %523 = vmatpush1.msra.mxu0 0.0
    %524 = vmatprep.subr.mxu0 0.0
    %525 = vmatpush1.msra.mxu0 0.0
    %526 = vmatprep.subr.mxu0 0.0
    %527 = vmatpush1.msra.mxu0 0.0
    %528 = vmatprep.subr.mxu0 0.0
    %529 = vmatpush1.msra.mxu0 0.0
    %530 = vmatprep.subr.mxu0 0.0
    %531 = vmatpush1.msra.mxu0 0.0
    %532 = vmatprep.subr.mxu0 0.0
    %533 = vmatpush1.msra.mxu0 0.0
    %534 = vmatprep.subr.mxu0 0.0
    %535 = vmatpush1.msra.mxu0 0.0
    %536 = vmatprep.subr.mxu0 0.0
    %537 = vmatpush1.msra.mxu0 0.0
    %538 = vmatprep.subr.mxu0 0.0
    %539 = vmatpush1.msra.mxu0 0.0
    %540 = vmatprep.subr.mxu0 0.0
    %541 = vmatpush1.msra.mxu0 0.0
    %542 = vmatprep.subr.mxu0 0.0
    %543 = vmatpush1.msra.mxu0 0.0
    %544 = vmatprep.subr.mxu0 0.0
    %545 = vmatpush1.msra.mxu0 0.0
    %546 = vmatprep.subr.mxu0 0.0
    %547 = vmatpush1.msra.mxu0 0.0
    %548 = vmatprep.subr.mxu0 0.0
    %549 = vmatpush1.msra.mxu0 0.0
    %550 = vmatprep.subr.mxu0 0.0
    %551 = vmatpush1.msra.mxu0 0.0
    %552 = vmatprep.subr.mxu0 0.0
    %553 = vmatpush1.msra.mxu0 0.0
    %554 = vmatprep.subr.mxu0 0.0
    %555 = vmatpush1.msra.mxu0 0.0
    %556 = vmatprep.subr.mxu0 0.0
    %557 = vmatpush1.msra.mxu0 0.0
    %558 = vmatprep.subr.mxu0 0.0
    %559 = vmatpush1.msra.mxu0 0.0
    %560 = vmatprep.mubr.f32.mxu0 0.0
    %561 = vmatmul.mubr.f32.gmra.mrb[0].mxu0 %v494
    %v562 = vpop.f32.mrb[0].mxu0
    %v563 = vadd.f32 0.0, %v562
    %v564 = vpop.f32.mrb[0].mxu0
    %565 = vdwg.mxu0
    %566 = vxpose.xlu0.b32.start [1/16] %v245, 128
    %567 = vxpose.xlu0.b32.cont [2/16] 0.0, 128
    %568 = vxpose.xlu0.b32.cont [3/16] 0.0, 128
    %569 = vxpose.xlu0.b32.cont [4/16] 0.0, 128
    %570 = vxpose.xlu0.b32.cont [5/16] 0.0, 128
    %571 = vxpose.xlu0.b32.cont [6/16] 0.0, 128
    %572 = vxpose.xlu0.b32.cont [7/16] 0.0, 128
    %573 = vxpose.xlu0.b32.cont [8/16] 0.0, 128
    %574 = vxpose.xlu0.b32.cont [9/16] 0.0, 128
    %575 = vxpose.xlu0.b32.cont [10/16] 0.0, 128
    %576 = vxpose.xlu0.b32.cont [11/16] 0.0, 128
    %577 = vxpose.xlu0.b32.cont [12/16] 0.0, 128
    %578 = vxpose.xlu0.b32.cont [13/16] 0.0, 128
    %579 = vxpose.xlu0.b32.cont [14/16] 0.0, 128
    %580 = vxpose.xlu0.b32.cont [15/16] 0.0, 128
    %581 = vxpose.xlu0.b32.end [16/16] 0.0, 128
    %v582 = vpop.trf.xlu0
    %v583 = vpop.trf.xlu0
    %v584 = vpop.trf.xlu0
    %v585 = vpop.trf.xlu0
    %v586 = vpop.trf.xlu0
    %v587 = vpop.trf.xlu0
    %v588 = vpop.trf.xlu0
    %v589 = vpop.trf.xlu0
    %v590 = vpop.trf.xlu0
    %v591 = vpop.trf.xlu0
    %v592 = vpop.trf.xlu0
    %v593 = vpop.trf.xlu0
    %v594 = vpop.trf.xlu0
    %v595 = vpop.trf.xlu0
    %v596 = vpop.trf.xlu0
    %v597 = vpop.trf.xlu0
    %v599 = vsel %vm282, %v582, 0
    %601 = vmatprep.subr.mxu0 0.0
    %602 = vmatpush1.msra.mxu0 %v80
    %603 = vmatprep.subr.mxu0 0.0
    %604 = vmatpush1.msra.mxu0 0.0
    %605 = vmatprep.subr.mxu0 0.0
    %606 = vmatpush1.msra.mxu0 0.0
    %607 = vmatprep.subr.mxu0 0.0
    %608 = vmatpush1.msra.mxu0 0.0
    %609 = vmatprep.subr.mxu0 0.0
    %610 = vmatpush1.msra.mxu0 0.0
    %611 = vmatprep.subr.mxu0 0.0
    %612 = vmatpush1.msra.mxu0 0.0
    %613 = vmatprep.subr.mxu0 0.0
    %614 = vmatpush1.msra.mxu0 0.0
    %615 = vmatprep.subr.mxu0 0.0
    %616 = vmatpush1.msra.mxu0 0.0
    %617 = vmatprep.subr.mxu0 0.0
    %618 = vmatpush1.msra.mxu0 0.0
    %619 = vmatprep.subr.mxu0 0.0
    %620 = vmatpush1.msra.mxu0 0.0
    %621 = vmatprep.subr.mxu0 0.0
    %622 = vmatpush1.msra.mxu0 0.0
    %623 = vmatprep.subr.mxu0 0.0
    %624 = vmatpush1.msra.mxu0 0.0
    %625 = vmatprep.subr.mxu0 0.0
    %626 = vmatpush1.msra.mxu0 0.0
    %627 = vmatprep.subr.mxu0 0.0
    %628 = vmatpush1.msra.mxu0 0.0
    %629 = vmatprep.subr.mxu0 0.0
    %630 = vmatpush1.msra.mxu0 0.0
    %631 = vmatprep.subr.mxu0 0.0
    %632 = vmatpush1.msra.mxu0 0.0
    %633 = vmatprep.subr.mxu0 0.0
    %634 = vmatpush1.msra.mxu0 0.0
    %635 = vmatprep.subr.mxu0 0.0
    %636 = vmatpush1.msra.mxu0 0.0
    %637 = vmatprep.subr.mxu0 0.0
    %638 = vmatpush1.msra.mxu0 0.0
    %639 = vmatprep.subr.mxu0 0.0
    %640 = vmatpush1.msra.mxu0 0.0
    %641 = vmatprep.subr.mxu0 0.0
    %642 = vmatpush1.msra.mxu0 0.0
    %643 = vmatprep.subr.mxu0 0.0
    %644 = vmatpush1.msra.mxu0 0.0
    %645 = vmatprep.subr.mxu0 0.0
    %646 = vmatpush1.msra.mxu0 0.0
    %647 = vmatprep.subr.mxu0 0.0
    %648 = vmatpush1.msra.mxu0 0.0
    %649 = vmatprep.subr.mxu0 0.0
    %650 = vmatpush1.msra.mxu0 0.0
    %651 = vmatprep.subr.mxu0 0.0
    %652 = vmatpush1.msra.mxu0 0.0
    %653 = vmatprep.subr.mxu0 0.0
    %654 = vmatpush1.msra.mxu0 0.0
    %655 = vmatprep.subr.mxu0 0.0
    %656 = vmatpush1.msra.mxu0 0.0
    %657 = vmatprep.subr.mxu0 0.0
    %658 = vmatpush1.msra.mxu0 0.0
    %659 = vmatprep.subr.mxu0 0.0
    %660 = vmatpush1.msra.mxu0 0.0
    %661 = vmatprep.subr.mxu0 0.0
    %662 = vmatpush1.msra.mxu0 0.0
    %663 = vmatprep.subr.mxu0 0.0
    %664 = vmatpush1.msra.mxu0 0.0
    %665 = vmatprep.mubr.f32.mxu0 0.0
    %666 = vmatmul.mubr.f32.gmra.mrb[0].mxu0 %v599
    %v667 = vpop.f32.mrb[0].mxu0
    %v668 = vadd.f32 0.0, %v667
    %v669 = vpop.f32.mrb[0].mxu0
    %670 = vdwg.mxu0
    %671 = vxpose.xlu0.b32.start [1/16] %v246, 128
    %672 = vxpose.xlu0.b32.cont [2/16] 0.0, 128
    %673 = vxpose.xlu0.b32.cont [3/16] 0.0, 128
    %674 = vxpose.xlu0.b32.cont [4/16] 0.0, 128
    %675 = vxpose.xlu0.b32.cont [5/16] 0.0, 128
    %676 = vxpose.xlu0.b32.cont [6/16] 0.0, 128
    %677 = vxpose.xlu0.b32.cont [7/16] 0.0, 128
    %678 = vxpose.xlu0.b32.cont [8/16] 0.0, 128
    %679 = vxpose.xlu0.b32.cont [9/16] 0.0, 128
    %680 = vxpose.xlu0.b32.cont [10/16] 0.0, 128
    %681 = vxpose.xlu0.b32.cont [11/16] 0.0, 128
    %682 = vxpose.xlu0.b32.cont [12/16] 0.0, 128
    %683 = vxpose.xlu0.b32.cont [13/16] 0.0, 128
    %684 = vxpose.xlu0.b32.cont [14/16] 0.0, 128
    %685 = vxpose.xlu0.b32.cont [15/16] 0.0, 128
    %686 = vxpose.xlu0.b32.end [16/16] 0.0, 128
    %v687 = vpop.trf.xlu0
    %v688 = vpop.trf.xlu0
    %v689 = vpop.trf.xlu0
    %v690 = vpop.trf.xlu0
    %v691 = vpop.trf.xlu0
    %v692 = vpop.trf.xlu0
    %v693 = vpop.trf.xlu0
    %v694 = vpop.trf.xlu0
    %v695 = vpop.trf.xlu0
    %v696 = vpop.trf.xlu0
    %v697 = vpop.trf.xlu0
    %v698 = vpop.trf.xlu0
    %v699 = vpop.trf.xlu0
    %v700 = vpop.trf.xlu0
    %v701 = vpop.trf.xlu0
    %v702 = vpop.trf.xlu0
    %v704 = vsel %vm282, %v687, 0
    %706 = vmatprep.subr.mxu0 0.0
    %707 = vmatpush1.msra.mxu0 %v81
    %708 = vmatprep.subr.mxu0 0.0
    %709 = vmatpush1.msra.mxu0 0.0
    %710 = vmatprep.subr.mxu0 0.0
    %711 = vmatpush1.msra.mxu0 0.0
    %712 = vmatprep.subr.mxu0 0.0
    %713 = vmatpush1.msra.mxu0 0.0
    %714 = vmatprep.subr.mxu0 0.0
    %715 = vmatpush1.msra.mxu0 0.0
    %716 = vmatprep.subr.mxu0 0.0
    %717 = vmatpush1.msra.mxu0 0.0
    %718 = vmatprep.subr.mxu0 0.0
    %719 = vmatpush1.msra.mxu0 0.0
    %720 = vmatprep.subr.mxu0 0.0
    %721 = vmatpush1.msra.mxu0 0.0
    %722 = vmatprep.subr.mxu0 0.0
    %723 = vmatpush1.msra.mxu0 0.0
    %724 = vmatprep.subr.mxu0 0.0
    %725 = vmatpush1.msra.mxu0 0.0
    %726 = vmatprep.subr.mxu0 0.0
    %727 = vmatpush1.msra.mxu0 0.0
    %728 = vmatprep.subr.mxu0 0.0
    %729 = vmatpush1.msra.mxu0 0.0
    %730 = vmatprep.subr.mxu0 0.0
    %731 = vmatpush1.msra.mxu0 0.0
    %732 = vmatprep.subr.mxu0 0.0
    %733 = vmatpush1.msra.mxu0 0.0
    %734 = vmatprep.subr.mxu0 0.0
    %735 = vmatpush1.msra.mxu0 0.0
    %736 = vmatprep.subr.mxu0 0.0
    %737 = vmatpush1.msra.mxu0 0.0
    %738 = vmatprep.subr.mxu0 0.0
    %739 = vmatpush1.msra.mxu0 0.0
    %740 = vmatprep.subr.mxu0 0.0
    %741 = vmatpush1.msra.mxu0 0.0
    %742 = vmatprep.subr.mxu0 0.0
    %743 = vmatpush1.msra.mxu0 0.0
    %744 = vmatprep.subr.mxu0 0.0
    %745 = vmatpush1.msra.mxu0 0.0
    %746 = vmatprep.subr.mxu0 0.0
    %747 = vmatpush1.msra.mxu0 0.0
    %748 = vmatprep.subr.mxu0 0.0
    %749 = vmatpush1.msra.mxu0 0.0
    %750 = vmatprep.subr.mxu0 0.0
    %751 = vmatpush1.msra.mxu0 0.0
    %752 = vmatprep.subr.mxu0 0.0
    %753 = vmatpush1.msra.mxu0 0.0
    %754 = vmatprep.subr.mxu0 0.0
    %755 = vmatpush1.msra.mxu0 0.0
    %756 = vmatprep.subr.mxu0 0.0
    %757 = vmatpush1.msra.mxu0 0.0
    %758 = vmatprep.subr.mxu0 0.0
    %759 = vmatpush1.msra.mxu0 0.0
    %760 = vmatprep.subr.mxu0 0.0
    %761 = vmatpush1.msra.mxu0 0.0
    %762 = vmatprep.subr.mxu0 0.0
    %763 = vmatpush1.msra.mxu0 0.0
    %764 = vmatprep.subr.mxu0 0.0
    %765 = vmatpush1.msra.mxu0 0.0
    %766 = vmatprep.subr.mxu0 0.0
    %767 = vmatpush1.msra.mxu0 0.0
    %768 = vmatprep.subr.mxu0 0.0
    %769 = vmatpush1.msra.mxu0 0.0
    %770 = vmatprep.mubr.f32.mxu0 0.0
    %771 = vmatmul.mubr.f32.gmra.mrb[0].mxu0 %v704
    %v772 = vpop.f32.mrb[0].mxu0
    %v773 = vadd.f32 0.0, %v772
    %v774 = vpop.f32.mrb[0].mxu0
    %775 = vdwg.mxu0
    %776 = vxpose.xlu0.b32.start [1/16] %v247, 128
    %777 = vxpose.xlu0.b32.cont [2/16] 0.0, 128
    %778 = vxpose.xlu0.b32.cont [3/16] 0.0, 128
    %779 = vxpose.xlu0.b32.cont [4/16] 0.0, 128
    %780 = vxpose.xlu0.b32.cont [5/16] 0.0, 128
    %781 = vxpose.xlu0.b32.cont [6/16] 0.0, 128
    %782 = vxpose.xlu0.b32.cont [7/16] 0.0, 128
    %783 = vxpose.xlu0.b32.cont [8/16] 0.0, 128
    %784 = vxpose.xlu0.b32.cont [9/16] 0.0, 128
    %785 = vxpose.xlu0.b32.cont [10/16] 0.0, 128
    %786 = vxpose.xlu0.b32.cont [11/16] 0.0, 128
    %787 = vxpose.xlu0.b32.cont [12/16] 0.0, 128
    %788 = vxpose.xlu0.b32.cont [13/16] 0.0, 128
    %789 = vxpose.xlu0.b32.cont [14/16] 0.0, 128
    %790 = vxpose.xlu0.b32.cont [15/16] 0.0, 128
    %791 = vxpose.xlu0.b32.end [16/16] 0.0, 128
    %v792 = vpop.trf.xlu0
    %v793 = vpop.trf.xlu0
    %v794 = vpop.trf.xlu0
    %v795 = vpop.trf.xlu0
    %v796 = vpop.trf.xlu0
    %v797 = vpop.trf.xlu0
    %v798 = vpop.trf.xlu0
    %v799 = vpop.trf.xlu0
    %v800 = vpop.trf.xlu0
    %v801 = vpop.trf.xlu0
    %v802 = vpop.trf.xlu0
    %v803 = vpop.trf.xlu0
    %v804 = vpop.trf.xlu0
    %v805 = vpop.trf.xlu0
    %v806 = vpop.trf.xlu0
    %v807 = vpop.trf.xlu0
    %v809 = vsel %vm282, %v792, 0
    %811 = vmatprep.subr.mxu0 0.0
    %812 = vmatpush1.msra.mxu0 %v82
    %813 = vmatprep.subr.mxu0 0.0
    %814 = vmatpush1.msra.mxu0 0.0
    %815 = vmatprep.subr.mxu0 0.0
    %816 = vmatpush1.msra.mxu0 0.0
    %817 = vmatprep.subr.mxu0 0.0
    %818 = vmatpush1.msra.mxu0 0.0
    %819 = vmatprep.subr.mxu0 0.0
    %820 = vmatpush1.msra.mxu0 0.0
    %821 = vmatprep.subr.mxu0 0.0
    %822 = vmatpush1.msra.mxu0 0.0
    %823 = vmatprep.subr.mxu0 0.0
    %824 = vmatpush1.msra.mxu0 0.0
    %825 = vmatprep.subr.mxu0 0.0
    %826 = vmatpush1.msra.mxu0 0.0
    %827 = vmatprep.subr.mxu0 0.0
    %828 = vmatpush1.msra.mxu0 0.0
    %829 = vmatprep.subr.mxu0 0.0
    %830 = vmatpush1.msra.mxu0 0.0
    %831 = vmatprep.subr.mxu0 0.0
    %832 = vmatpush1.msra.mxu0 0.0
    %833 = vmatprep.subr.mxu0 0.0
    %834 = vmatpush1.msra.mxu0 0.0
    %835 = vmatprep.subr.mxu0 0.0
    %836 = vmatpush1.msra.mxu0 0.0
    %837 = vmatprep.subr.mxu0 0.0
    %838 = vmatpush1.msra.mxu0 0.0
    %839 = vmatprep.subr.mxu0 0.0
    %840 = vmatpush1.msra.mxu0 0.0
    %841 = vmatprep.subr.mxu0 0.0
    %842 = vmatpush1.msra.mxu0 0.0
    %843 = vmatprep.subr.mxu0 0.0
    %844 = vmatpush1.msra.mxu0 0.0
    %845 = vmatprep.subr.mxu0 0.0
    %846 = vmatpush1.msra.mxu0 0.0
    %847 = vmatprep.subr.mxu0 0.0
    %848 = vmatpush1.msra.mxu0 0.0
    %849 = vmatprep.subr.mxu0 0.0
    %850 = vmatpush1.msra.mxu0 0.0
    %851 = vmatprep.subr.mxu0 0.0
    %852 = vmatpush1.msra.mxu0 0.0
    %853 = vmatprep.subr.mxu0 0.0
    %854 = vmatpush1.msra.mxu0 0.0
    %855 = vmatprep.subr.mxu0 0.0
    %856 = vmatpush1.msra.mxu0 0.0
    %857 = vmatprep.subr.mxu0 0.0
    %858 = vmatpush1.msra.mxu0 0.0
    %859 = vmatprep.subr.mxu0 0.0
    %860 = vmatpush1.msra.mxu0 0.0
    %861 = vmatprep.subr.mxu0 0.0
    %862 = vmatpush1.msra.mxu0 0.0
    %863 = vmatprep.subr.mxu0 0.0
    %864 = vmatpush1.msra.mxu0 0.0
    %865 = vmatprep.subr.mxu0 0.0
    %866 = vmatpush1.msra.mxu0 0.0
    %867 = vmatprep.subr.mxu0 0.0
    %868 = vmatpush1.msra.mxu0 0.0
    %869 = vmatprep.subr.mxu0 0.0
    %870 = vmatpush1.msra.mxu0 0.0
    %871 = vmatprep.subr.mxu0 0.0
    %872 = vmatpush1.msra.mxu0 0.0
    %873 = vmatprep.subr.mxu0 0.0
    %874 = vmatpush1.msra.mxu0 0.0
    %875 = vmatprep.mubr.f32.mxu0 0.0
    %876 = vmatmul.mubr.f32.gmra.mrb[0].mxu0 %v809
    %v877 = vpop.f32.mrb[0].mxu0
    %v878 = vadd.f32 0.0, %v877
    %v879 = vpop.f32.mrb[0].mxu0
    %880 = vdwg.mxu0
    %881 = vxpose.xlu0.b32.start [1/16] %v248, 128
    %882 = vxpose.xlu0.b32.cont [2/16] 0.0, 128
    %883 = vxpose.xlu0.b32.cont [3/16] 0.0, 128
    %884 = vxpose.xlu0.b32.cont [4/16] 0.0, 128
    %885 = vxpose.xlu0.b32.cont [5/16] 0.0, 128
    %886 = vxpose.xlu0.b32.cont [6/16] 0.0, 128
    %887 = vxpose.xlu0.b32.cont [7/16] 0.0, 128
    %888 = vxpose.xlu0.b32.cont [8/16] 0.0, 128
    %889 = vxpose.xlu0.b32.cont [9/16] 0.0, 128
    %890 = vxpose.xlu0.b32.cont [10/16] 0.0, 128
    %891 = vxpose.xlu0.b32.cont [11/16] 0.0, 128
    %892 = vxpose.xlu0.b32.cont [12/16] 0.0, 128
    %893 = vxpose.xlu0.b32.cont [13/16] 0.0, 128
    %894 = vxpose.xlu0.b32.cont [14/16] 0.0, 128
    %895 = vxpose.xlu0.b32.cont [15/16] 0.0, 128
    %896 = vxpose.xlu0.b32.end [16/16] 0.0, 128
    %v897 = vpop.trf.xlu0
    %v898 = vpop.trf.xlu0
    %v899 = vpop.trf.xlu0
    %v900 = vpop.trf.xlu0
    %v901 = vpop.trf.xlu0
    %v902 = vpop.trf.xlu0
    %v903 = vpop.trf.xlu0
    %v904 = vpop.trf.xlu0
    %v905 = vpop.trf.xlu0
    %v906 = vpop.trf.xlu0
    %v907 = vpop.trf.xlu0
    %v908 = vpop.trf.xlu0
    %v909 = vpop.trf.xlu0
    %v910 = vpop.trf.xlu0
    %v911 = vpop.trf.xlu0
    %v912 = vpop.trf.xlu0
    %v914 = vsel %vm282, %v897, 0
    %916 = vmatprep.subr.mxu0 0.0
    %917 = vmatpush1.msra.mxu0 %v83
    %918 = vmatprep.subr.mxu0 0.0
    %919 = vmatpush1.msra.mxu0 0.0
    %920 = vmatprep.subr.mxu0 0.0
    %921 = vmatpush1.msra.mxu0 0.0
    %922 = vmatprep.subr.mxu0 0.0
    %923 = vmatpush1.msra.mxu0 0.0
    %924 = vmatprep.subr.mxu0 0.0
    %925 = vmatpush1.msra.mxu0 0.0
    %926 = vmatprep.subr.mxu0 0.0
    %927 = vmatpush1.msra.mxu0 0.0
    %928 = vmatprep.subr.mxu0 0.0
    %929 = vmatpush1.msra.mxu0 0.0
    %930 = vmatprep.subr.mxu0 0.0
    %931 = vmatpush1.msra.mxu0 0.0
    %932 = vmatprep.subr.mxu0 0.0
    %933 = vmatpush1.msra.mxu0 0.0
    %934 = vmatprep.subr.mxu0 0.0
    %935 = vmatpush1.msra.mxu0 0.0
    %936 = vmatprep.subr.mxu0 0.0
    %937 = vmatpush1.msra.mxu0 0.0
    %938 = vmatprep.subr.mxu0 0.0
    %939 = vmatpush1.msra.mxu0 0.0
    %940 = vmatprep.subr.mxu0 0.0
    %941 = vmatpush1.msra.mxu0 0.0
    %942 = vmatprep.subr.mxu0 0.0
    %943 = vmatpush1.msra.mxu0 0.0
    %944 = vmatprep.subr.mxu0 0.0
    %945 = vmatpush1.msra.mxu0 0.0
    %946 = vmatprep.subr.mxu0 0.0
    %947 = vmatpush1.msra.mxu0 0.0
    %948 = vmatprep.subr.mxu0 0.0
    %949 = vmatpush1.msra.mxu0 0.0
    %950 = vmatprep.subr.mxu0 0.0
    %951 = vmatpush1.msra.mxu0 0.0
    %952 = vmatprep.subr.mxu0 0.0
    %953 = vmatpush1.msra.mxu0 0.0
    %954 = vmatprep.subr.mxu0 0.0
    %955 = vmatpush1.msra.mxu0 0.0
    %956 = vmatprep.subr.mxu0 0.0
    %957 = vmatpush1.msra.mxu0 0.0
    %958 = vmatprep.subr.mxu0 0.0
    %959 = vmatpush1.msra.mxu0 0.0
    %960 = vmatprep.subr.mxu0 0.0
    %961 = vmatpush1.msra.mxu0 0.0
    %962 = vmatprep.subr.mxu0 0.0
    %963 = vmatpush1.msra.mxu0 0.0
    %964 = vmatprep.subr.mxu0 0.0
    %965 = vmatpush1.msra.mxu0 0.0
    %966 = vmatprep.subr.mxu0 0.0
    %967 = vmatpush1.msra.mxu0 0.0
    %968 = vmatprep.subr.mxu0 0.0
    %969 = vmatpush1.msra.mxu0 0.0
    %970 = vmatprep.subr.mxu0 0.0
    %971 = vmatpush1.msra.mxu0 0.0
    %972 = vmatprep.subr.mxu0 0.0
    %973 = vmatpush1.msra.mxu0 0.0
    %974 = vmatprep.subr.mxu0 0.0
    %975 = vmatpush1.msra.mxu0 0.0
    %976 = vmatprep.subr.mxu0 0.0
    %977 = vmatpush1.msra.mxu0 0.0
    %978 = vmatprep.subr.mxu0 0.0
    %979 = vmatpush1.msra.mxu0 0.0
    %980 = vmatprep.mubr.f32.mxu0 0.0
    %981 = vmatmul.mubr.f32.gmra.mrb[0].mxu0 %v914
    %v982 = vpop.f32.mrb[0].mxu0
    %v983 = vadd.f32 0.0, %v982
    %v984 = vpop.f32.mrb[0].mxu0
    %985 = vdwg.mxu0
    %986 = vxpose.xlu0.b32.start [1/16] %v249, 128
    %987 = vxpose.xlu0.b32.cont [2/16] 0.0, 128
    %988 = vxpose.xlu0.b32.cont [3/16] 0.0, 128
    %989 = vxpose.xlu0.b32.cont [4/16] 0.0, 128
    %990 = vxpose.xlu0.b32.cont [5/16] 0.0, 128
    %991 = vxpose.xlu0.b32.cont [6/16] 0.0, 128
    %992 = vxpose.xlu0.b32.cont [7/16] 0.0, 128
    %993 = vxpose.xlu0.b32.cont [8/16] 0.0, 128
    %994 = vxpose.xlu0.b32.cont [9/16] 0.0, 128
    %995 = vxpose.xlu0.b32.cont [10/16] 0.0, 128
    %996 = vxpose.xlu0.b32.cont [11/16] 0.0, 128
    %997 = vxpose.xlu0.b32.cont [12/16] 0.0, 128
    %998 = vxpose.xlu0.b32.cont [13/16] 0.0, 128
    %999 = vxpose.xlu0.b32.cont [14/16] 0.0, 128
    %1000 = vxpose.xlu0.b32.cont [15/16] 0.0, 128
    %1001 = vxpose.xlu0.b32.end [16/16] 0.0, 128
    %v1002 = vpop.trf.xlu0
    %v1003 = vpop.trf.xlu0
    %v1004 = vpop.trf.xlu0
    %v1005 = vpop.trf.xlu0
    %v1006 = vpop.trf.xlu0
    %v1007 = vpop.trf.xlu0
    %v1008 = vpop.trf.xlu0
    %v1009 = vpop.trf.xlu0
    %v1010 = vpop.trf.xlu0
    %v1011 = vpop.trf.xlu0
    %v1012 = vpop.trf.xlu0
    %v1013 = vpop.trf.xlu0
    %v1014 = vpop.trf.xlu0
    %v1015 = vpop.trf.xlu0
    %v1016 = vpop.trf.xlu0
    %v1017 = vpop.trf.xlu0
    %v1019 = vsel %vm282, %v1002, 0
    %1021 = vmatprep.subr.mxu0 0.0
    %1022 = vmatpush1.msra.mxu0 %v84
    %1023 = vmatprep.subr.mxu0 0.0
    %1024 = vmatpush1.msra.mxu0 0.0
    %1025 = vmatprep.subr.mxu0 0.0
    %1026 = vmatpush1.msra.mxu0 0.0
    %1027 = vmatprep.subr.mxu0 0.0
    %1028 = vmatpush1.msra.mxu0 0.0
    %1029 = vmatprep.subr.mxu0 0.0
    %1030 = vmatpush1.msra.mxu0 0.0
    %1031 = vmatprep.subr.mxu0 0.0
    %1032 = vmatpush1.msra.mxu0 0.0
    %1033 = vmatprep.subr.mxu0 0.0
    %1034 = vmatpush1.msra.mxu0 0.0
    %1035 = vmatprep.subr.mxu0 0.0
    %1036 = vmatpush1.msra.mxu0 0.0
    %1037 = vmatprep.subr.mxu0 0.0
    %1038 = vmatpush1.msra.mxu0 0.0
    %1039 = vmatprep.subr.mxu0 0.0
    %1040 = vmatpush1.msra.mxu0 0.0
    %1041 = vmatprep.subr.mxu0 0.0
    %1042 = vmatpush1.msra.mxu0 0.0
    %1043 = vmatprep.subr.mxu0 0.0
    %1044 = vmatpush1.msra.mxu0 0.0
    %1045 = vmatprep.subr.mxu0 0.0
    %1046 = vmatpush1.msra.mxu0 0.0
    %1047 = vmatprep.subr.mxu0 0.0
    %1048 = vmatpush1.msra.mxu0 0.0
    %1049 = vmatprep.subr.mxu0 0.0
    %1050 = vmatpush1.msra.mxu0 0.0
    %1051 = vmatprep.subr.mxu0 0.0
    %1052 = vmatpush1.msra.mxu0 0.0
    %1053 = vmatprep.subr.mxu0 0.0
    %1054 = vmatpush1.msra.mxu0 0.0
    %1055 = vmatprep.subr.mxu0 0.0
    %1056 = vmatpush1.msra.mxu0 0.0
    %1057 = vmatprep.subr.mxu0 0.0
    %1058 = vmatpush1.msra.mxu0 0.0
    %1059 = vmatprep.subr.mxu0 0.0
    %1060 = vmatpush1.msra.mxu0 0.0
    %1061 = vmatprep.subr.mxu0 0.0
    %1062 = vmatpush1.msra.mxu0 0.0
    %1063 = vmatprep.subr.mxu0 0.0
    %1064 = vmatpush1.msra.mxu0 0.0
    %1065 = vmatprep.subr.mxu0 0.0
    %1066 = vmatpush1.msra.mxu0 0.0
    %1067 = vmatprep.subr.mxu0 0.0
    %1068 = vmatpush1.msra.mxu0 0.0
    %1069 = vmatprep.subr.mxu0 0.0
    %1070 = vmatpush1.msra.mxu0 0.0
    %1071 = vmatprep.subr.mxu0 0.0
    %1072 = vmatpush1.msra.mxu0 0.0
    %1073 = vmatprep.subr.mxu0 0.0
    %1074 = vmatpush1.msra.mxu0 0.0
    %1075 = vmatprep.subr.mxu0 0.0
    %1076 = vmatpush1.msra.mxu0 0.0
    %1077 = vmatprep.subr.mxu0 0.0
    %1078 = vmatpush1.msra.mxu0 0.0
    %1079 = vmatprep.subr.mxu0 0.0
    %1080 = vmatpush1.msra.mxu0 0.0
    %1081 = vmatprep.subr.mxu0 0.0
    %1082 = vmatpush1.msra.mxu0 0.0
    %1083 = vmatprep.subr.mxu0 0.0
    %1084 = vmatpush1.msra.mxu0 0.0
    %1085 = vmatprep.mubr.f32.mxu0 0.0
    %1086 = vmatmul.mubr.f32.gmra.mrb[0].mxu0 %v1019
    %v1087 = vpop.f32.mrb[0].mxu0
    %v1088 = vadd.f32 0.0, %v1087
    %v1089 = vpop.f32.mrb[0].mxu0
    %1090 = vdwg.mxu0
    %v1091 = vld [vmem:[#allocation2] sm:$0xf]
    %v1092 = vmul.f32 %v353, %v1091
    %v1093 = vmul.f32 %v458, %v1091
    %v1094 = vmul.f32 %v563, %v1091
    %v1095 = vmul.f32 %v668, %v1091
    %v1096 = vmul.f32 %v773, %v1091
    %v1097 = vmul.f32 %v878, %v1091
    %v1098 = vmul.f32 %v983, %v1091
    %v1099 = vmul.f32 %v1088, %v1091
    %v1100 = vld [vmem:[%s4] sm:$0xff]
    %v1101 = vld [vmem:[%s4 + $0x8] sm:$0xff]
    %v1102 = vld [vmem:[%s4 + $0x10] sm:$0xff]
    %v1103 = vld [vmem:[%s4 + $0x18] sm:$0xff]
    %v1112 = vcombine.low %v1092, %v1093
    %v1113 = vcombine.low %v1094, %v1095
    %v1114 = vcombine.low %v1096, %v1097
    %v1115 = vcombine.low %v1098, %v1099
    %v1116 = vsel %vm94, %v1112, 0
    %v1118 = vsel %vm94, %v1113, 0
    %v1120 = vsel %vm94, %v1114, 0
    %v1122 = vsel %vm94, %v1115, 0
    %1124 = vmatprep.subr.mxu0 0.0
    %1125 = vmatpush1.msra.mxu0 %v1100
    %1126 = vmatprep.subr.mxu0 0.0
    %1127 = vmatpush1.msra.mxu0 %v1101
    %1128 = vmatprep.subr.mxu0 0.0
    %1129 = vmatpush1.msra.mxu0 %v1102
    %1130 = vmatprep.subr.mxu0 0.0
    %1131 = vmatpush1.msra.mxu0 %v1103
    %1132 = vmatprep.subr.mxu0 0.0
    %1133 = vmatpush1.msra.mxu0 0.0
    %1134 = vmatprep.subr.mxu0 0.0
    %1135 = vmatpush1.msra.mxu0 0.0
    %1136 = vmatprep.subr.mxu0 0.0
    %1137 = vmatpush1.msra.mxu0 0.0
    %1138 = vmatprep.subr.mxu0 0.0
    %1139 = vmatpush1.msra.mxu0 0.0
    %1140 = vmatprep.subr.mxu0 0.0
    %1141 = vmatpush1.msra.mxu0 0.0
    %1142 = vmatprep.subr.mxu0 0.0
    %1143 = vmatpush1.msra.mxu0 0.0
    %1144 = vmatprep.subr.mxu0 0.0
    %1145 = vmatpush1.msra.mxu0 0.0
    %1146 = vmatprep.subr.mxu0 0.0
    %1147 = vmatpush1.msra.mxu0 0.0
    %1148 = vmatprep.subr.mxu0 0.0
    %1149 = vmatpush1.msra.mxu0 0.0
    %1150 = vmatprep.subr.mxu0 0.0
    %1151 = vmatpush1.msra.mxu0 0.0
    %1152 = vmatprep.subr.mxu0 0.0
    %1153 = vmatpush1.msra.mxu0 0.0
    %1154 = vmatprep.subr.mxu0 0.0
    %1155 = vmatpush1.msra.mxu0 0.0
    %1156 = vmatprep.subr.mxu0 0.0
    %1157 = vmatpush1.msra.mxu0 0.0
    %1158 = vmatprep.subr.mxu0 0.0
    %1159 = vmatpush1.msra.mxu0 0.0
    %1160 = vmatprep.subr.mxu0 0.0
    %1161 = vmatpush1.msra.mxu0 0.0
    %1162 = vmatprep.subr.mxu0 0.0
    %1163 = vmatpush1.msra.mxu0 0.0
    %1164 = vmatprep.subr.mxu0 0.0
    %1165 = vmatpush1.msra.mxu0 0.0
    %1166 = vmatprep.subr.mxu0 0.0
    %1167 = vmatpush1.msra.mxu0 0.0
    %1168 = vmatprep.subr.mxu0 0.0
    %1169 = vmatpush1.msra.mxu0 0.0
    %1170 = vmatprep.subr.mxu0 0.0
    %1171 = vmatpush1.msra.mxu0 0.0
    %1172 = vmatprep.subr.mxu0 0.0
    %1173 = vmatpush1.msra.mxu0 0.0
    %1174 = vmatprep.subr.mxu0 0.0
    %1175 = vmatpush1.msra.mxu0 0.0
    %1176 = vmatprep.subr.mxu0 0.0
    %1177 = vmatpush1.msra.mxu0 0.0
    %1178 = vmatprep.subr.mxu0 0.0
    %1179 = vmatpush1.msra.mxu0 0.0
    %1180 = vmatprep.subr.mxu0 0.0
    %1181 = vmatpush1.msra.mxu0 0.0
    %1182 = vmatprep.subr.mxu0 0.0
    %1183 = vmatpush1.msra.mxu0 0.0
    %1184 = vmatprep.subr.mxu0 0.0
    %1185 = vmatpush1.msra.mxu0 0.0
    %1186 = vmatprep.subr.mxu0 0.0
    %1187 = vmatpush1.msra.mxu0 0.0
    %1188 = vmatprep.mubr.f32.mxu0 0.0
    %1189 = vmatmul.mubr.f32.gmra.mrb[0].mxu0 %v1116
    %v1190 = vpop.f32.mrb[0].mxu0
    %v1191 = vadd.f32 0.0, %v1190
    %v1192 = vpop.f32.mrb[0].mxu0
    %1193 = vmatprep.mubr.f32.mxu0 0.0
    %1194 = vmatmul.mubr.f32.gmra.mrb[0].mxu0 %v1118
    %v1195 = vpop.f32.mrb[0].mxu0
    %v1196 = vadd.f32 0.0, %v1195
    %v1197 = vpop.f32.mrb[0].mxu0
    %1198 = vmatprep.mubr.f32.mxu0 0.0
    %1199 = vmatmul.mubr.f32.gmra.mrb[0].mxu0 %v1120
    %v1200 = vpop.f32.mrb[0].mxu0
    %v1201 = vadd.f32 0.0, %v1200
    %v1202 = vpop.f32.mrb[0].mxu0
    %1203 = vmatprep.mubr.f32.mxu0 0.0
    %1204 = vmatmul.mubr.f32.gmra.mrb[0].mxu0 %v1122
    %v1205 = vpop.f32.mrb[0].mxu0
    %v1206 = vadd.f32 0.0, %v1205
    %v1207 = vpop.f32.mrb[0].mxu0
    %1208 = vdwg.mxu0
    %v1213 = vcombine.high %v1191, %v1191
    %v1214 = vcombine.high %v1196, %v1196
    %v1215 = vcombine.high %v1201, %v1201
    %v1216 = vcombine.high %v1206, %v1206
    %vm1221 = vcmask 31744
    %v1222 = vsel %vm1221, %v242, 0.0
    %v1223 = vrot.slane %v1222, 4
    %v1224 = vadd.f32 %v1222, %v1223
    %v1225 = vrot.slane %v1224, 2
    %v1226 = vadd.f32 %v1224, %v1225
    %v1227 = vrot.slane %v1226, 1
    %v1228 = vadd.f32 %v1226, %v1227
    %v1229 = vsel %vm1221, %v243, 0.0
    %v1230 = vrot.slane %v1229, 4
    %v1231 = vadd.f32 %v1229, %v1230
    %v1232 = vrot.slane %v1231, 2
    %v1233 = vadd.f32 %v1231, %v1232
    %v1234 = vrot.slane %v1233, 1
    %v1235 = vadd.f32 %v1233, %v1234
    %v1236 = vsel %vm1221, %v244, 0.0
    %v1237 = vrot.slane %v1236, 4
    %v1238 = vadd.f32 %v1236, %v1237
    %v1239 = vrot.slane %v1238, 2
    %v1240 = vadd.f32 %v1238, %v1239
    %v1241 = vrot.slane %v1240, 1
    %v1242 = vadd.f32 %v1240, %v1241
    %v1243 = vsel %vm1221, %v245, 0.0
    %v1244 = vrot.slane %v1243, 4
    %v1245 = vadd.f32 %v1243, %v1244
    %v1246 = vrot.slane %v1245, 2
    %v1247 = vadd.f32 %v1245, %v1246
    %v1248 = vrot.slane %v1247, 1
    %v1249 = vadd.f32 %v1247, %v1248
    %v1250 = vsel %vm1221, %v246, 0.0
    %v1251 = vrot.slane %v1250, 4
    %v1252 = vadd.f32 %v1250, %v1251
    %v1253 = vrot.slane %v1252, 2
    %v1254 = vadd.f32 %v1252, %v1253
    %v1255 = vrot.slane %v1254, 1
    %v1256 = vadd.f32 %v1254, %v1255
    %v1257 = vsel %vm1221, %v247, 0.0
    %v1258 = vrot.slane %v1257, 4
    %v1259 = vadd.f32 %v1257, %v1258
    %v1260 = vrot.slane %v1259, 2
    %v1261 = vadd.f32 %v1259, %v1260
    %v1262 = vrot.slane %v1261, 1
    %v1263 = vadd.f32 %v1261, %v1262
    %v1264 = vsel %vm1221, %v248, 0.0
    %v1265 = vrot.slane %v1264, 4
    %v1266 = vadd.f32 %v1264, %v1265
    %v1267 = vrot.slane %v1266, 2
    %v1268 = vadd.f32 %v1266, %v1267
    %v1269 = vrot.slane %v1268, 1
    %v1270 = vadd.f32 %v1268, %v1269
    %v1271 = vsel %vm1221, %v249, 0.0
    %v1272 = vrot.slane %v1271, 4
    %v1273 = vadd.f32 %v1271, %v1272
    %v1274 = vrot.slane %v1273, 2
    %v1275 = vadd.f32 %v1273, %v1274
    %v1276 = vrot.slane %v1275, 1
    %v1277 = vadd.f32 %v1275, %v1276
    %1278 = vxpose.xlu0.b32.start [1/16] %v1228, 128
    %1279 = vxpose.xlu0.b32.cont [2/16] 0.0, 128
    %1280 = vxpose.xlu0.b32.cont [3/16] 0.0, 128
    %1281 = vxpose.xlu0.b32.cont [4/16] 0.0, 128
    %1282 = vxpose.xlu0.b32.cont [5/16] 0.0, 128
    %1283 = vxpose.xlu0.b32.cont [6/16] 0.0, 128
    %1284 = vxpose.xlu0.b32.cont [7/16] 0.0, 128
    %1285 = vxpose.xlu0.b32.cont [8/16] 0.0, 128
    %1286 = vxpose.xlu0.b32.cont [9/16] 0.0, 128
    %1287 = vxpose.xlu0.b32.cont [10/16] 0.0, 128
    %1288 = vxpose.xlu0.b32.cont [11/16] 0.0, 128
    %1289 = vxpose.xlu0.b32.cont [12/16] 0.0, 128
    %1290 = vxpose.xlu0.b32.cont [13/16] 0.0, 128
    %1291 = vxpose.xlu0.b32.cont [14/16] 0.0, 128
    %1292 = vxpose.xlu0.b32.cont [15/16] 0.0, 128
    %1293 = vxpose.xlu0.b32.end [16/16] 0.0, 128
    %v1294 = vpop.trf.xlu0
    %v1295 = vpop.trf.xlu0
    %v1296 = vpop.trf.xlu0
    %v1297 = vpop.trf.xlu0
    %v1298 = vpop.trf.xlu0
    %v1299 = vpop.trf.xlu0
    %v1300 = vpop.trf.xlu0
    %v1301 = vpop.trf.xlu0
    %v1302 = vpop.trf.xlu0
    %v1303 = vpop.trf.xlu0
    %v1304 = vpop.trf.xlu0
    %v1305 = vpop.trf.xlu0
    %v1306 = vpop.trf.xlu0
    %v1307 = vpop.trf.xlu0
    %v1308 = vpop.trf.xlu0
    %v1309 = vpop.trf.xlu0
    %1310 = vxpose.xlu0.b32.start [1/16] %v1235, 128
    %1311 = vxpose.xlu0.b32.cont [2/16] 0.0, 128
    %1312 = vxpose.xlu0.b32.cont [3/16] 0.0, 128
    %1313 = vxpose.xlu0.b32.cont [4/16] 0.0, 128
    %1314 = vxpose.xlu0.b32.cont [5/16] 0.0, 128
    %1315 = vxpose.xlu0.b32.cont [6/16] 0.0, 128
    %1316 = vxpose.xlu0.b32.cont [7/16] 0.0, 128
    %1317 = vxpose.xlu0.b32.cont [8/16] 0.0, 128
    %1318 = vxpose.xlu0.b32.cont [9/16] 0.0, 128
    %1319 = vxpose.xlu0.b32.cont [10/16] 0.0, 128
    %1320 = vxpose.xlu0.b32.cont [11/16] 0.0, 128
    %1321 = vxpose.xlu0.b32.cont [12/16] 0.0, 128
    %1322 = vxpose.xlu0.b32.cont [13/16] 0.0, 128
    %1323 = vxpose.xlu0.b32.cont [14/16] 0.0, 128
    %1324 = vxpose.xlu0.b32.cont [15/16] 0.0, 128
    %1325 = vxpose.xlu0.b32.end [16/16] 0.0, 128
    %v1326 = vpop.trf.xlu0
    %v1327 = vpop.trf.xlu0
    %v1328 = vpop.trf.xlu0
    %v1329 = vpop.trf.xlu0
    %v1330 = vpop.trf.xlu0
    %v1331 = vpop.trf.xlu0
    %v1332 = vpop.trf.xlu0
    %v1333 = vpop.trf.xlu0
    %v1334 = vpop.trf.xlu0
    %v1335 = vpop.trf.xlu0
    %v1336 = vpop.trf.xlu0
    %v1337 = vpop.trf.xlu0
    %v1338 = vpop.trf.xlu0
    %v1339 = vpop.trf.xlu0
    %v1340 = vpop.trf.xlu0
    %v1341 = vpop.trf.xlu0
    %1342 = vxpose.xlu0.b32.start [1/16] %v1242, 128
    %1343 = vxpose.xlu0.b32.cont [2/16] 0.0, 128
    %1344 = vxpose.xlu0.b32.cont [3/16] 0.0, 128
    %1345 = vxpose.xlu0.b32.cont [4/16] 0.0, 128
    %1346 = vxpose.xlu0.b32.cont [5/16] 0.0, 128
    %1347 = vxpose.xlu0.b32.cont [6/16] 0.0, 128
    %1348 = vxpose.xlu0.b32.cont [7/16] 0.0, 128
    %1349 = vxpose.xlu0.b32.cont [8/16] 0.0, 128
    %1350 = vxpose.xlu0.b32.cont [9/16] 0.0, 128
    %1351 = vxpose.xlu0.b32.cont [10/16] 0.0, 128
    %1352 = vxpose.xlu0.b32.cont [11/16] 0.0, 128
    %1353 = vxpose.xlu0.b32.cont [12/16] 0.0, 128
    %1354 = vxpose.xlu0.b32.cont [13/16] 0.0, 128
    %1355 = vxpose.xlu0.b32.cont [14/16] 0.0, 128
    %1356 = vxpose.xlu0.b32.cont [15/16] 0.0, 128
    %1357 = vxpose.xlu0.b32.end [16/16] 0.0, 128
    %v1358 = vpop.trf.xlu0
    %v1359 = vpop.trf.xlu0
    %v1360 = vpop.trf.xlu0
    %v1361 = vpop.trf.xlu0
    %v1362 = vpop.trf.xlu0
    %v1363 = vpop.trf.xlu0
    %v1364 = vpop.trf.xlu0
    %v1365 = vpop.trf.xlu0
    %v1366 = vpop.trf.xlu0
    %v1367 = vpop.trf.xlu0
    %v1368 = vpop.trf.xlu0
    %v1369 = vpop.trf.xlu0
    %v1370 = vpop.trf.xlu0
    %v1371 = vpop.trf.xlu0
    %v1372 = vpop.trf.xlu0
    %v1373 = vpop.trf.xlu0
    %1374 = vxpose.xlu0.b32.start [1/16] %v1249, 128
    %1375 = vxpose.xlu0.b32.cont [2/16] 0.0, 128
    %1376 = vxpose.xlu0.b32.cont [3/16] 0.0, 128
    %1377 = vxpose.xlu0.b32.cont [4/16] 0.0, 128
    %1378 = vxpose.xlu0.b32.cont [5/16] 0.0, 128
    %1379 = vxpose.xlu0.b32.cont [6/16] 0.0, 128
    %1380 = vxpose.xlu0.b32.cont [7/16] 0.0, 128
    %1381 = vxpose.xlu0.b32.cont [8/16] 0.0, 128
    %1382 = vxpose.xlu0.b32.cont [9/16] 0.0, 128
    %1383 = vxpose.xlu0.b32.cont [10/16] 0.0, 128
    %1384 = vxpose.xlu0.b32.cont [11/16] 0.0, 128
    %1385 = vxpose.xlu0.b32.cont [12/16] 0.0, 128
    %1386 = vxpose.xlu0.b32.cont [13/16] 0.0, 128
    %1387 = vxpose.xlu0.b32.cont [14/16] 0.0, 128
    %1388 = vxpose.xlu0.b32.cont [15/16] 0.0, 128
    %1389 = vxpose.xlu0.b32.end [16/16] 0.0, 128
    %v1390 = vpop.trf.xlu0
    %v1391 = vpop.trf.xlu0
    %v1392 = vpop.trf.xlu0
    %v1393 = vpop.trf.xlu0
    %v1394 = vpop.trf.xlu0
    %v1395 = vpop.trf.xlu0
    %v1396 = vpop.trf.xlu0
    %v1397 = vpop.trf.xlu0
    %v1398 = vpop.trf.xlu0
    %v1399 = vpop.trf.xlu0
    %v1400 = vpop.trf.xlu0
    %v1401 = vpop.trf.xlu0
    %v1402 = vpop.trf.xlu0
    %v1403 = vpop.trf.xlu0
    %v1404 = vpop.trf.xlu0
    %v1405 = vpop.trf.xlu0
    %1406 = vxpose.xlu0.b32.start [1/16] %v1256, 128
    %1407 = vxpose.xlu0.b32.cont [2/16] 0.0, 128
    %1408 = vxpose.xlu0.b32.cont [3/16] 0.0, 128
    %1409 = vxpose.xlu0.b32.cont [4/16] 0.0, 128
    %1410 = vxpose.xlu0.b32.cont [5/16] 0.0, 128
    %1411 = vxpose.xlu0.b32.cont [6/16] 0.0, 128
    %1412 = vxpose.xlu0.b32.cont [7/16] 0.0, 128
    %1413 = vxpose.xlu0.b32.cont [8/16] 0.0, 128
    %1414 = vxpose.xlu0.b32.cont [9/16] 0.0, 128
    %1415 = vxpose.xlu0.b32.cont [10/16] 0.0, 128
    %1416 = vxpose.xlu0.b32.cont [11/16] 0.0, 128
    %1417 = vxpose.xlu0.b32.cont [12/16] 0.0, 128
    %1418 = vxpose.xlu0.b32.cont [13/16] 0.0, 128
    %1419 = vxpose.xlu0.b32.cont [14/16] 0.0, 128
    %1420 = vxpose.xlu0.b32.cont [15/16] 0.0, 128
    %1421 = vxpose.xlu0.b32.end [16/16] 0.0, 128
    %v1422 = vpop.trf.xlu0
    %v1423 = vpop.trf.xlu0
    %v1424 = vpop.trf.xlu0
    %v1425 = vpop.trf.xlu0
    %v1426 = vpop.trf.xlu0
    %v1427 = vpop.trf.xlu0
    %v1428 = vpop.trf.xlu0
    %v1429 = vpop.trf.xlu0
    %v1430 = vpop.trf.xlu0
    %v1431 = vpop.trf.xlu0
    %v1432 = vpop.trf.xlu0
    %v1433 = vpop.trf.xlu0
    %v1434 = vpop.trf.xlu0
    %v1435 = vpop.trf.xlu0
    %v1436 = vpop.trf.xlu0
    %v1437 = vpop.trf.xlu0
    %1438 = vxpose.xlu0.b32.start [1/16] %v1263, 128
    %1439 = vxpose.xlu0.b32.cont [2/16] 0.0, 128
    %1440 = vxpose.xlu0.b32.cont [3/16] 0.0, 128
    %1441 = vxpose.xlu0.b32.cont [4/16] 0.0, 128
    %1442 = vxpose.xlu0.b32.cont [5/16] 0.0, 128
    %1443 = vxpose.xlu0.b32.cont [6/16] 0.0, 128
    %1444 = vxpose.xlu0.b32.cont [7/16] 0.0, 128
    %1445 = vxpose.xlu0.b32.cont [8/16] 0.0, 128
    %1446 = vxpose.xlu0.b32.cont [9/16] 0.0, 128
    %1447 = vxpose.xlu0.b32.cont [10/16] 0.0, 128
    %1448 = vxpose.xlu0.b32.cont [11/16] 0.0, 128
    %1449 = vxpose.xlu0.b32.cont [12/16] 0.0, 128
    %1450 = vxpose.xlu0.b32.cont [13/16] 0.0, 128
    %1451 = vxpose.xlu0.b32.cont [14/16] 0.0, 128
    %1452 = vxpose.xlu0.b32.cont [15/16] 0.0, 128
    %1453 = vxpose.xlu0.b32.end [16/16] 0.0, 128
    %v1454 = vpop.trf.xlu0
    %v1455 = vpop.trf.xlu0
    %v1456 = vpop.trf.xlu0
    %v1457 = vpop.trf.xlu0
    %v1458 = vpop.trf.xlu0
    %v1459 = vpop.trf.xlu0
    %v1460 = vpop.trf.xlu0
    %v1461 = vpop.trf.xlu0
    %v1462 = vpop.trf.xlu0
    %v1463 = vpop.trf.xlu0
    %v1464 = vpop.trf.xlu0
    %v1465 = vpop.trf.xlu0
    %v1466 = vpop.trf.xlu0
    %v1467 = vpop.trf.xlu0
    %v1468 = vpop.trf.xlu0
    %v1469 = vpop.trf.xlu0
    %1470 = vxpose.xlu0.b32.start [1/16] %v1270, 128
    %1471 = vxpose.xlu0.b32.cont [2/16] 0.0, 128
    %1472 = vxpose.xlu0.b32.cont [3/16] 0.0, 128
    %1473 = vxpose.xlu0.b32.cont [4/16] 0.0, 128
    %1474 = vxpose.xlu0.b32.cont [5/16] 0.0, 128
    %1475 = vxpose.xlu0.b32.cont [6/16] 0.0, 128
    %1476 = vxpose.xlu0.b32.cont [7/16] 0.0, 128
    %1477 = vxpose.xlu0.b32.cont [8/16] 0.0, 128
    %1478 = vxpose.xlu0.b32.cont [9/16] 0.0, 128
    %1479 = vxpose.xlu0.b32.cont [10/16] 0.0, 128
    %1480 = vxpose.xlu0.b32.cont [11/16] 0.0, 128
    %1481 = vxpose.xlu0.b32.cont [12/16] 0.0, 128
    %1482 = vxpose.xlu0.b32.cont [13/16] 0.0, 128
    %1483 = vxpose.xlu0.b32.cont [14/16] 0.0, 128
    %1484 = vxpose.xlu0.b32.cont [15/16] 0.0, 128
    %1485 = vxpose.xlu0.b32.end [16/16] 0.0, 128
    %v1486 = vpop.trf.xlu0
    %v1487 = vpop.trf.xlu0
    %v1488 = vpop.trf.xlu0
    %v1489 = vpop.trf.xlu0
    %v1490 = vpop.trf.xlu0
    %v1491 = vpop.trf.xlu0
    %v1492 = vpop.trf.xlu0
    %v1493 = vpop.trf.xlu0
    %v1494 = vpop.trf.xlu0
    %v1495 = vpop.trf.xlu0
    %v1496 = vpop.trf.xlu0
    %v1497 = vpop.trf.xlu0
    %v1498 = vpop.trf.xlu0
    %v1499 = vpop.trf.xlu0
    %v1500 = vpop.trf.xlu0
    %v1501 = vpop.trf.xlu0
    %1502 = vxpose.xlu0.b32.start [1/16] %v1277, 128
    %1503 = vxpose.xlu0.b32.cont [2/16] 0.0, 128
    %1504 = vxpose.xlu0.b32.cont [3/16] 0.0, 128
    %1505 = vxpose.xlu0.b32.cont [4/16] 0.0, 128
    %1506 = vxpose.xlu0.b32.cont [5/16] 0.0, 128
    %1507 = vxpose.xlu0.b32.cont [6/16] 0.0, 128
    %1508 = vxpose.xlu0.b32.cont [7/16] 0.0, 128
    %1509 = vxpose.xlu0.b32.cont [8/16] 0.0, 128
    %1510 = vxpose.xlu0.b32.cont [9/16] 0.0, 128
    %1511 = vxpose.xlu0.b32.cont [10/16] 0.0, 128
    %1512 = vxpose.xlu0.b32.cont [11/16] 0.0, 128
    %1513 = vxpose.xlu0.b32.cont [12/16] 0.0, 128
    %1514 = vxpose.xlu0.b32.cont [13/16] 0.0, 128
    %1515 = vxpose.xlu0.b32.cont [14/16] 0.0, 128
    %1516 = vxpose.xlu0.b32.cont [15/16] 0.0, 128
    %1517 = vxpose.xlu0.b32.end [16/16] 0.0, 128
    %v1518 = vpop.trf.xlu0
    %v1519 = vpop.trf.xlu0
    %v1520 = vpop.trf.xlu0
    %v1521 = vpop.trf.xlu0
    %v1522 = vpop.trf.xlu0
    %v1523 = vpop.trf.xlu0
    %v1524 = vpop.trf.xlu0
    %v1525 = vpop.trf.xlu0
    %v1526 = vpop.trf.xlu0
    %v1527 = vpop.trf.xlu0
    %v1528 = vpop.trf.xlu0
    %v1529 = vpop.trf.xlu0
    %v1530 = vpop.trf.xlu0
    %v1531 = vpop.trf.xlu0
    %v1532 = vpop.trf.xlu0
    %v1533 = vpop.trf.xlu0
    %v1534 = vld [vmem:[#allocation5] sm:$0xf]
    %1536 = vset.pattern.permute.xlu0 0
    %1537 = vperm.xlu0 %1536, %v1294
    %v1538 = vpop.permute.xlu0 %1537
    %1541 = vset.pattern.permute.xlu0 0
    %1542 = vperm.xlu0 %1541, %v1326
    %v1543 = vpop.permute.xlu0 %1542
    %1546 = vset.pattern.permute.xlu0 0
    %1547 = vperm.xlu0 %1546, %v1358
    %v1548 = vpop.permute.xlu0 %1547
    %1551 = vset.pattern.permute.xlu0 0
    %1552 = vperm.xlu0 %1551, %v1390
    %v1553 = vpop.permute.xlu0 %1552
    %1556 = vset.pattern.permute.xlu0 0
    %1557 = vperm.xlu0 %1556, %v1422
    %v1558 = vpop.permute.xlu0 %1557
    %1561 = vset.pattern.permute.xlu0 0
    %1562 = vperm.xlu0 %1561, %v1454
    %v1563 = vpop.permute.xlu0 %1562
    %1566 = vset.pattern.permute.xlu0 0
    %1567 = vperm.xlu0 %1566, %v1486
    %v1568 = vpop.permute.xlu0 %1567
    %1571 = vset.pattern.permute.xlu0 0
    %1572 = vperm.xlu0 %1571, %v1518
    %v1573 = vpop.permute.xlu0 %1572
    %v1575 = vmul.f32 %v1538, %v1534
    %v1576 = vmul.f32 %v1543, %v1534
    %v1577 = vmul.f32 %v1548, %v1534
    %v1578 = vmul.f32 %v1553, %v1534
    %v1579 = vmul.f32 %v1558, %v1534
    %v1580 = vmul.f32 %v1563, %v1534
    %v1581 = vmul.f32 %v1568, %v1534
    %v1582 = vmul.f32 %v1573, %v1534
    %v1583 = vadd.f32 %v1191, %v1575
    %v1584 = vadd.f32 %v1213, %v1576
    %v1585 = vadd.f32 %v1196, %v1577
    %v1586 = vadd.f32 %v1214, %v1578
    %v1587 = vadd.f32 %v1201, %v1579
    %v1588 = vadd.f32 %v1215, %v1580
    %v1589 = vadd.f32 %v1206, %v1581
    %v1590 = vadd.f32 %v1216, %v1582
    %vm1591 = vcmask 125952
    %v1592 = vsel %vm1591, %v1583, 0.0
    %1593 = vadd.xlane.f32.xlu0 %v1592
    %v1594 = vpop.xlane.xlu0 %1593
    %v1595 = vsel %vm1591, %v1584, 0.0
    %1596 = vadd.xlane.f32.xlu0 %v1595
    %v1597 = vpop.xlane.xlu0 %1596
    %v1598 = vsel %vm1591, %v1585, 0.0
    %1599 = vadd.xlane.f32.xlu0 %v1598
    %v1600 = vpop.xlane.xlu0 %1599
    %v1601 = vsel %vm1591, %v1586, 0.0
    %1602 = vadd.xlane.f32.xlu0 %v1601
    %v1603 = vpop.xlane.xlu0 %1602
    %v1604 = vsel %vm1591, %v1587, 0.0
    %1605 = vadd.xlane.f32.xlu0 %v1604
    %v1606 = vpop.xlane.xlu0 %1605
    %v1607 = vsel %vm1591, %v1588, 0.0
    %1608 = vadd.xlane.f32.xlu0 %v1607
    %v1609 = vpop.xlane.xlu0 %1608
    %v1610 = vsel %vm1591, %v1589, 0.0
    %1611 = vadd.xlane.f32.xlu0 %v1610
    %v1612 = vpop.xlane.xlu0 %1611
    %v1613 = vsel %vm1591, %v1590, 0.0
    %1614 = vadd.xlane.f32.xlu0 %v1613
    %v1615 = vpop.xlane.xlu0 %1614
    %v1616 = vrcp.pop 16.0
    %v1617 = vmul.f32 %v1594, %v1616
    %v1618 = vmul.f32 %v1597, %v1616
    %v1619 = vmul.f32 %v1600, %v1616
    %v1620 = vmul.f32 %v1603, %v1616
    %v1621 = vmul.f32 %v1606, %v1616
    %v1622 = vmul.f32 %v1609, %v1616
    %v1623 = vmul.f32 %v1612, %v1616
    %v1624 = vmul.f32 %v1615, %v1616
    %v1625 = vsub.f32 %v1583, %v1617
    %v1626 = vsub.f32 %v1584, %v1618
    %v1627 = vsub.f32 %v1585, %v1619
    %v1628 = vsub.f32 %v1586, %v1620
    %v1629 = vsub.f32 %v1587, %v1621
    %v1630 = vsub.f32 %v1588, %v1622
    %v1631 = vsub.f32 %v1589, %v1623
    %v1632 = vsub.f32 %v1590, %v1624
    %v1633 = vmul.f32 %v1625, %v1625
    %v1634 = vmul.f32 %v1626, %v1626
    %v1635 = vmul.f32 %v1627, %v1627
    %v1636 = vmul.f32 %v1628, %v1628
    %v1637 = vmul.f32 %v1629, %v1629
    %v1638 = vmul.f32 %v1630, %v1630
    %v1639 = vmul.f32 %v1631, %v1631
    %v1640 = vmul.f32 %v1632, %v1632
    %v1641 = vsel %vm1591, %v1633, 0.0
    %1642 = vadd.xlane.f32.xlu0 %v1641
    %v1643 = vpop.xlane.xlu0 %1642
    %v1644 = vsel %vm1591, %v1634, 0.0
    %1645 = vadd.xlane.f32.xlu0 %v1644
    %v1646 = vpop.xlane.xlu0 %1645
    %v1647 = vsel %vm1591, %v1635, 0.0
    %1648 = vadd.xlane.f32.xlu0 %v1647
    %v1649 = vpop.xlane.xlu0 %1648
    %v1650 = vsel %vm1591, %v1636, 0.0
    %1651 = vadd.xlane.f32.xlu0 %v1650
    %v1652 = vpop.xlane.xlu0 %1651
    %v1653 = vsel %vm1591, %v1637, 0.0
    %1654 = vadd.xlane.f32.xlu0 %v1653
    %v1655 = vpop.xlane.xlu0 %1654
    %v1656 = vsel %vm1591, %v1638, 0.0
    %1657 = vadd.xlane.f32.xlu0 %v1656
    %v1658 = vpop.xlane.xlu0 %1657
    %v1659 = vsel %vm1591, %v1639, 0.0
    %1660 = vadd.xlane.f32.xlu0 %v1659
    %v1661 = vpop.xlane.xlu0 %1660
    %v1662 = vsel %vm1591, %v1640, 0.0
    %1663 = vadd.xlane.f32.xlu0 %v1662
    %v1664 = vpop.xlane.xlu0 %1663
    %v1665 = vmul.f32 %v1643, %v1616
    %v1666 = vmul.f32 %v1646, %v1616
    %v1667 = vmul.f32 %v1649, %v1616
    %v1668 = vmul.f32 %v1652, %v1616
    %v1669 = vmul.f32 %v1655, %v1616
    %v1670 = vmul.f32 %v1658, %v1616
    %v1671 = vmul.f32 %v1661, %v1616
    %v1672 = vmul.f32 %v1664, %v1616
    %v1673 = vadd.f32 %v1665, 1e-05
    %v1674 = vadd.f32 %v1666, 1e-05
    %v1675 = vadd.f32 %v1667, 1e-05
    %v1676 = vadd.f32 %v1668, 1e-05
    %v1677 = vadd.f32 %v1669, 1e-05
    %v1678 = vadd.f32 %v1670, 1e-05
    %v1679 = vadd.f32 %v1671, 1e-05
    %v1680 = vadd.f32 %v1672, 1e-05
    %v1681 = vrsqrt.pop %v1673
    %v1682 = vrsqrt.pop %v1674
    %v1683 = vrsqrt.pop %v1675
    %v1684 = vrsqrt.pop %v1676
    %v1685 = vrsqrt.pop %v1677
    %v1686 = vrsqrt.pop %v1678
    %v1687 = vrsqrt.pop %v1679
    %v1688 = vrsqrt.pop %v1680
    %v1689 = vmul.f32 %v1625, %v1681
    %v1690 = vmul.f32 %v1626, %v1682
    %v1691 = vmul.f32 %v1627, %v1683
    %v1692 = vmul.f32 %v1628, %v1684
    %v1693 = vmul.f32 %v1629, %v1685
    %v1694 = vmul.f32 %v1630, %v1686
    %v1695 = vmul.f32 %v1631, %v1687
    %v1696 = vmul.f32 %v1632, %v1688
    %v1697 = vld [vmem:[%s6] sm:$0xff]
    %v1698 = vld [vmem:[%s6 + $0x8] sm:$0xff]
    %v1707 = vcombine.low %v1689, %v1690
    %v1708 = vcombine.low %v1691, %v1692
    %v1709 = vcombine.low %v1693, %v1694
    %v1710 = vcombine.low %v1695, %v1696
    %vm1711 = vcmask 130048
    %v1712 = vsel %vm1711, %v1707, 0
    %v1714 = vsel %vm1711, %v1708, 0
    %v1716 = vsel %vm1711, %v1709, 0
    %v1718 = vsel %vm1711, %v1710, 0
    %1720 = vmatprep.subr.mxu0 0.0
    %1721 = vmatpush1.msra.mxu0 %v1697
    %1722 = vmatprep.subr.mxu0 0.0
    %1723 = vmatpush1.msra.mxu0 %v1698
    %1724 = vmatprep.subr.mxu0 0.0
    %1725 = vmatpush1.msra.mxu0 0.0
    %1726 = vmatprep.subr.mxu0 0.0
    %1727 = vmatpush1.msra.mxu0 0.0
    %1728 = vmatprep.subr.mxu0 0.0
    %1729 = vmatpush1.msra.mxu0 0.0
    %1730 = vmatprep.subr.mxu0 0.0
    %1731 = vmatpush1.msra.mxu0 0.0
    %1732 = vmatprep.subr.mxu0 0.0
    %1733 = vmatpush1.msra.mxu0 0.0
    %1734 = vmatprep.subr.mxu0 0.0
    %1735 = vmatpush1.msra.mxu0 0.0
    %1736 = vmatprep.subr.mxu0 0.0
    %1737 = vmatpush1.msra.mxu0 0.0
    %1738 = vmatprep.subr.mxu0 0.0
    %1739 = vmatpush1.msra.mxu0 0.0
    %1740 = vmatprep.subr.mxu0 0.0
    %1741 = vmatpush1.msra.mxu0 0.0
    %1742 = vmatprep.subr.mxu0 0.0
    %1743 = vmatpush1.msra.mxu0 0.0
    %1744 = vmatprep.subr.mxu0 0.0
    %1745 = vmatpush1.msra.mxu0 0.0
    %1746 = vmatprep.subr.mxu0 0.0
    %1747 = vmatpush1.msra.mxu0 0.0
    %1748 = vmatprep.subr.mxu0 0.0
    %1749 = vmatpush1.msra.mxu0 0.0
    %1750 = vmatprep.subr.mxu0 0.0
    %1751 = vmatpush1.msra.mxu0 0.0
    %1752 = vmatprep.subr.mxu0 0.0
    %1753 = vmatpush1.msra.mxu0 0.0
    %1754 = vmatprep.subr.mxu0 0.0
    %1755 = vmatpush1.msra.mxu0 0.0
    %1756 = vmatprep.subr.mxu0 0.0
    %1757 = vmatpush1.msra.mxu0 0.0
    %1758 = vmatprep.subr.mxu0 0.0
    %1759 = vmatpush1.msra.mxu0 0.0
    %1760 = vmatprep.subr.mxu0 0.0
    %1761 = vmatpush1.msra.mxu0 0.0
    %1762 = vmatprep.subr.mxu0 0.0
    %1763 = vmatpush1.msra.mxu0 0.0
    %1764 = vmatprep.subr.mxu0 0.0
    %1765 = vmatpush1.msra.mxu0 0.0
    %1766 = vmatprep.subr.mxu0 0.0
    %1767 = vmatpush1.msra.mxu0 0.0
    %1768 = vmatprep.subr.mxu0 0.0
    %1769 = vmatpush1.msra.mxu0 0.0
    %1770 = vmatprep.subr.mxu0 0.0
    %1771 = vmatpush1.msra.mxu0 0.0
    %1772 = vmatprep.subr.mxu0 0.0
    %1773 = vmatpush1.msra.mxu0 0.0
    %1774 = vmatprep.subr.mxu0 0.0
    %1775 = vmatpush1.msra.mxu0 0.0
    %1776 = vmatprep.subr.mxu0 0.0
    %1777 = vmatpush1.msra.mxu0 0.0
    %1778 = vmatprep.subr.mxu0 0.0
    %1779 = vmatpush1.msra.mxu0 0.0
    %1780 = vmatprep.subr.mxu0 0.0
    %1781 = vmatpush1.msra.mxu0 0.0
    %1782 = vmatprep.subr.mxu0 0.0
    %1783 = vmatpush1.msra.mxu0 0.0
    %1784 = vmatprep.mubr.f32.mxu0 0.0
    %1785 = vmatmul.mubr.f32.gmra.mrb[0].mxu0 %v1712
    %v1786 = vpop.f32.mrb[0].mxu0
    %v1787 = vadd.f32 0.0, %v1786
    %v1788 = vpop.f32.mrb[0].mxu0
    %1789 = vmatprep.mubr.f32.mxu0 0.0
    %1790 = vmatmul.mubr.f32.gmra.mrb[0].mxu0 %v1714
    %v1791 = vpop.f32.mrb[0].mxu0
    %v1792 = vadd.f32 0.0, %v1791
    %v1793 = vpop.f32.mrb[0].mxu0
    %1794 = vmatprep.mubr.f32.mxu0 0.0
    %1795 = vmatmul.mubr.f32.gmra.mrb[0].mxu0 %v1716
    %v1796 = vpop.f32.mrb[0].mxu0
    %v1797 = vadd.f32 0.0, %v1796
    %v1798 = vpop.f32.mrb[0].mxu0
    %1799 = vmatprep.mubr.f32.mxu0 0.0
    %1800 = vmatmul.mubr.f32.gmra.mrb[0].mxu0 %v1718
    %v1801 = vpop.f32.mrb[0].mxu0
    %v1802 = vadd.f32 0.0, %v1801
    %v1803 = vpop.f32.mrb[0].mxu0
    %1804 = vdwg.mxu0
    %v1809 = vcombine.high %v1787, %v1787
    %v1810 = vcombine.high %v1792, %v1792
    %v1811 = vcombine.high %v1797, %v1797
    %v1812 = vcombine.high %v1802, %v1802
    %v1817 = vld [vmem:[%s7] sm:$0xf]
    %v1818 = vmul.f32 %v1787, %v1817
    %v1819 = vmul.f32 %v1809, %v1817
    %v1820 = vmul.f32 %v1792, %v1817
    %v1821 = vmul.f32 %v1810, %v1817
    %v1822 = vmul.f32 %v1797, %v1817
    %v1823 = vmul.f32 %v1811, %v1817
    %v1824 = vmul.f32 %v1802, %v1817
    %v1825 = vmul.f32 %v1812, %v1817
    %v1826 = vld [vmem:[%s8] sm:$0xf]
    %v1827 = vadd.f32 %v1818, %v1826
    %v1828 = vadd.f32 %v1819, %v1826
    %v1829 = vadd.f32 %v1820, %v1826
    %v1830 = vadd.f32 %v1821, %v1826
    %v1831 = vadd.f32 %v1822, %v1826
    %v1832 = vadd.f32 %v1823, %v1826
    %v1833 = vadd.f32 %v1824, %v1826
    %v1834 = vadd.f32 %v1825, %v1826
    %v1836 = vsel %vm94, %v69, 0
    %v1839 = vsel %vm94, %v1827, 0
    %1841 = vmatprep.subr.mxu0 0.0
    %1842 = vmatpush1.xpose.msra.mxu0 %v1839
    %1843 = vmatprep.subr.mxu0 0.0
    %1844 = vmatpush1.xpose.msra.mxu0 0.0
    %1845 = vmatprep.subr.mxu0 0.0
    %1846 = vmatpush1.xpose.msra.mxu0 0.0
    %1847 = vmatprep.subr.mxu0 0.0
    %1848 = vmatpush1.xpose.msra.mxu0 0.0
    %1849 = vmatprep.subr.mxu0 0.0
    %1850 = vmatpush1.xpose.msra.mxu0 0.0
    %1851 = vmatprep.subr.mxu0 0.0
    %1852 = vmatpush1.xpose.msra.mxu0 0.0
    %1853 = vmatprep.subr.mxu0 0.0
    %1854 = vmatpush1.xpose.msra.mxu0 0.0
    %1855 = vmatprep.subr.mxu0 0.0
    %1856 = vmatpush1.xpose.msra.mxu0 0.0
    %1857 = vmatprep.subr.mxu0 0.0
    %1858 = vmatpush1.xpose.msra.mxu0 0.0
    %1859 = vmatprep.subr.mxu0 0.0
    %1860 = vmatpush1.xpose.msra.mxu0 0.0
    %1861 = vmatprep.subr.mxu0 0.0
    %1862 = vmatpush1.xpose.msra.mxu0 0.0
    %1863 = vmatprep.subr.mxu0 0.0
    %1864 = vmatpush1.xpose.msra.mxu0 0.0
    %1865 = vmatprep.subr.mxu0 0.0
    %1866 = vmatpush1.xpose.msra.mxu0 0.0
    %1867 = vmatprep.subr.mxu0 0.0
    %1868 = vmatpush1.xpose.msra.mxu0 0.0
    %1869 = vmatprep.subr.mxu0 0.0
    %1870 = vmatpush1.xpose.msra.mxu0 0.0
    %1871 = vmatprep.subr.mxu0 0.0
    %1872 = vmatpush1.xpose.msra.mxu0 0.0
    %1873 = vmatprep.subr.mxu0 0.0
    %1874 = vmatpush1.xpose.msra.mxu0 0.0
    %1875 = vmatprep.subr.mxu0 0.0
    %1876 = vmatpush1.xpose.msra.mxu0 0.0
    %1877 = vmatprep.subr.mxu0 0.0
    %1878 = vmatpush1.xpose.msra.mxu0 0.0
    %1879 = vmatprep.subr.mxu0 0.0
    %1880 = vmatpush1.xpose.msra.mxu0 0.0
    %1881 = vmatprep.subr.mxu0 0.0
    %1882 = vmatpush1.xpose.msra.mxu0 0.0
    %1883 = vmatprep.subr.mxu0 0.0
    %1884 = vmatpush1.xpose.msra.mxu0 0.0
    %1885 = vmatprep.subr.mxu0 0.0
    %1886 = vmatpush1.xpose.msra.mxu0 0.0
    %1887 = vmatprep.subr.mxu0 0.0
    %1888 = vmatpush1.xpose.msra.mxu0 0.0
    %1889 = vmatprep.subr.mxu0 0.0
    %1890 = vmatpush1.xpose.msra.mxu0 0.0
    %1891 = vmatprep.subr.mxu0 0.0
    %1892 = vmatpush1.xpose.msra.mxu0 0.0
    %1893 = vmatprep.subr.mxu0 0.0
    %1894 = vmatpush1.xpose.msra.mxu0 0.0
    %1895 = vmatprep.subr.mxu0 0.0
    %1896 = vmatpush1.xpose.msra.mxu0 0.0
    %1897 = vmatprep.subr.mxu0 0.0
    %1898 = vmatpush1.xpose.msra.mxu0 0.0
    %1899 = vmatprep.subr.mxu0 0.0
    %1900 = vmatpush1.xpose.msra.mxu0 0.0
    %1901 = vmatprep.subr.mxu0 0.0
    %1902 = vmatpush1.xpose.msra.mxu0 0.0
    %1903 = vmatprep.subr.mxu0 0.0
    %1904 = vmatpush1.xpose.msra.mxu0 0.0
    %1905 = vmatprep.mubr.f32.mxu0 0.0
    %1906 = vmatmul.mubr.f32.gmra.mrb[0].mxu0 %v1836
    %v1907 = vpop.f32.mrb[0].mxu0
    %v1908 = vadd.f32 0.0, %v1907
    %v1909 = vpop.f32.mrb[0].mxu0
    %1910 = vdwg.mxu0
    %v1912 = vsel %vm94, %v70, 0
    %v1915 = vsel %vm94, %v1828, 0
    %1917 = vmatprep.subr.mxu0 0.0
    %1918 = vmatpush1.xpose.msra.mxu0 %v1915
    %1919 = vmatprep.subr.mxu0 0.0
    %1920 = vmatpush1.xpose.msra.mxu0 0.0
    %1921 = vmatprep.subr.mxu0 0.0
    %1922 = vmatpush1.xpose.msra.mxu0 0.0
    %1923 = vmatprep.subr.mxu0 0.0
    %1924 = vmatpush1.xpose.msra.mxu0 0.0
    %1925 = vmatprep.subr.mxu0 0.0
    %1926 = vmatpush1.xpose.msra.mxu0 0.0
    %1927 = vmatprep.subr.mxu0 0.0
    %1928 = vmatpush1.xpose.msra.mxu0 0.0
    %1929 = vmatprep.subr.mxu0 0.0
    %1930 = vmatpush1.xpose.msra.mxu0 0.0
    %1931 = vmatprep.subr.mxu0 0.0
    %1932 = vmatpush1.xpose.msra.mxu0 0.0
    %1933 = vmatprep.subr.mxu0 0.0
    %1934 = vmatpush1.xpose.msra.mxu0 0.0
    %1935 = vmatprep.subr.mxu0 0.0
    %1936 = vmatpush1.xpose.msra.mxu0 0.0
    %1937 = vmatprep.subr.mxu0 0.0
    %1938 = vmatpush1.xpose.msra.mxu0 0.0
    %1939 = vmatprep.subr.mxu0 0.0
    %1940 = vmatpush1.xpose.msra.mxu0 0.0
    %1941 = vmatprep.subr.mxu0 0.0
    %1942 = vmatpush1.xpose.msra.mxu0 0.0
    %1943 = vmatprep.subr.mxu0 0.0
    %1944 = vmatpush1.xpose.msra.mxu0 0.0
    %1945 = vmatprep.subr.mxu0 0.0
    %1946 = vmatpush1.xpose.msra.mxu0 0.0
    %1947 = vmatprep.subr.mxu0 0.0
    %1948 = vmatpush1.xpose.msra.mxu0 0.0
    %1949 = vmatprep.subr.mxu0 0.0
    %1950 = vmatpush1.xpose.msra.mxu0 0.0
    %1951 = vmatprep.subr.mxu0 0.0
    %1952 = vmatpush1.xpose.msra.mxu0 0.0
    %1953 = vmatprep.subr.mxu0 0.0
    %1954 = vmatpush1.xpose.msra.mxu0 0.0
    %1955 = vmatprep.subr.mxu0 0.0
    %1956 = vmatpush1.xpose.msra.mxu0 0.0
    %1957 = vmatprep.subr.mxu0 0.0
    %1958 = vmatpush1.xpose.msra.mxu0 0.0
    %1959 = vmatprep.subr.mxu0 0.0
    %1960 = vmatpush1.xpose.msra.mxu0 0.0
    %1961 = vmatprep.subr.mxu0 0.0
    %1962 = vmatpush1.xpose.msra.mxu0 0.0
    %1963 = vmatprep.subr.mxu0 0.0
    %1964 = vmatpush1.xpose.msra.mxu0 0.0
    %1965 = vmatprep.subr.mxu0 0.0
    %1966 = vmatpush1.xpose.msra.mxu0 0.0
    %1967 = vmatprep.subr.mxu0 0.0
    %1968 = vmatpush1.xpose.msra.mxu0 0.0
    %1969 = vmatprep.subr.mxu0 0.0
    %1970 = vmatpush1.xpose.msra.mxu0 0.0
    %1971 = vmatprep.subr.mxu0 0.0
    %1972 = vmatpush1.xpose.msra.mxu0 0.0
    %1973 = vmatprep.subr.mxu0 0.0
    %1974 = vmatpush1.xpose.msra.mxu0 0.0
    %1975 = vmatprep.subr.mxu0 0.0
    %1976 = vmatpush1.xpose.msra.mxu0 0.0
    %1977 = vmatprep.subr.mxu0 0.0
    %1978 = vmatpush1.xpose.msra.mxu0 0.0
    %1979 = vmatprep.subr.mxu0 0.0
    %1980 = vmatpush1.xpose.msra.mxu0 0.0
    %1981 = vmatprep.mubr.f32.mxu0 0.0
    %1982 = vmatmul.mubr.f32.gmra.mrb[0].mxu0 %v1912
    %v1983 = vpop.f32.mrb[0].mxu0
    %v1984 = vadd.f32 0.0, %v1983
    %v1985 = vpop.f32.mrb[0].mxu0
    %1986 = vdwg.mxu0
    %v1988 = vsel %vm94, %v71, 0
    %v1991 = vsel %vm94, %v1829, 0
    %1993 = vmatprep.subr.mxu0 0.0
    %1994 = vmatpush1.xpose.msra.mxu0 %v1991
    %1995 = vmatprep.subr.mxu0 0.0
    %1996 = vmatpush1.xpose.msra.mxu0 0.0
    %1997 = vmatprep.subr.mxu0 0.0
    %1998 = vmatpush1.xpose.msra.mxu0 0.0
    %1999 = vmatprep.subr.mxu0 0.0
    %2000 = vmatpush1.xpose.msra.mxu0 0.0
    %2001 = vmatprep.subr.mxu0 0.0
    %2002 = vmatpush1.xpose.msra.mxu0 0.0
    %2003 = vmatprep.subr.mxu0 0.0
    %2004 = vmatpush1.xpose.msra.mxu0 0.0
    %2005 = vmatprep.subr.mxu0 0.0
    %2006 = vmatpush1.xpose.msra.mxu0 0.0
    %2007 = vmatprep.subr.mxu0 0.0
    %2008 = vmatpush1.xpose.msra.mxu0 0.0
    %2009 = vmatprep.subr.mxu0 0.0
    %2010 = vmatpush1.xpose.msra.mxu0 0.0
    %2011 = vmatprep.subr.mxu0 0.0
    %2012 = vmatpush1.xpose.msra.mxu0 0.0
    %2013 = vmatprep.subr.mxu0 0.0
    %2014 = vmatpush1.xpose.msra.mxu0 0.0
    %2015 = vmatprep.subr.mxu0 0.0
    %2016 = vmatpush1.xpose.msra.mxu0 0.0
    %2017 = vmatprep.subr.mxu0 0.0
    %2018 = vmatpush1.xpose.msra.mxu0 0.0
    %2019 = vmatprep.subr.mxu0 0.0
    %2020 = vmatpush1.xpose.msra.mxu0 0.0
    %2021 = vmatprep.subr.mxu0 0.0
    %2022 = vmatpush1.xpose.msra.mxu0 0.0
    %2023 = vmatprep.subr.mxu0 0.0
    %2024 = vmatpush1.xpose.msra.mxu0 0.0
    %2025 = vmatprep.subr.mxu0 0.0
    %2026 = vmatpush1.xpose.msra.mxu0 0.0
    %2027 = vmatprep.subr.mxu0 0.0
    %2028 = vmatpush1.xpose.msra.mxu0 0.0
    %2029 = vmatprep.subr.mxu0 0.0
    %2030 = vmatpush1.xpose.msra.mxu0 0.0
    %2031 = vmatprep.subr.mxu0 0.0
    %2032 = vmatpush1.xpose.msra.mxu0 0.0
    %2033 = vmatprep.subr.mxu0 0.0
    %2034 = vmatpush1.xpose.msra.mxu0 0.0
    %2035 = vmatprep.subr.mxu0 0.0
    %2036 = vmatpush1.xpose.msra.mxu0 0.0
    %2037 = vmatprep.subr.mxu0 0.0
    %2038 = vmatpush1.xpose.msra.mxu0 0.0
    %2039 = vmatprep.subr.mxu0 0.0
    %2040 = vmatpush1.xpose.msra.mxu0 0.0
    %2041 = vmatprep.subr.mxu0 0.0
    %2042 = vmatpush1.xpose.msra.mxu0 0.0
    %2043 = vmatprep.subr.mxu0 0.0
    %2044 = vmatpush1.xpose.msra.mxu0 0.0
    %2045 = vmatprep.subr.mxu0 0.0
    %2046 = vmatpush1.xpose.msra.mxu0 0.0
    %2047 = vmatprep.subr.mxu0 0.0
    %2048 = vmatpush1.xpose.msra.mxu0 0.0
    %2049 = vmatprep.subr.mxu0 0.0
    %2050 = vmatpush1.xpose.msra.mxu0 0.0
    %2051 = vmatprep.subr.mxu0 0.0
    %2052 = vmatpush1.xpose.msra.mxu0 0.0
    %2053 = vmatprep.subr.mxu0 0.0
    %2054 = vmatpush1.xpose.msra.mxu0 0.0
    %2055 = vmatprep.subr.mxu0 0.0
    %2056 = vmatpush1.xpose.msra.mxu0 0.0
    %2057 = vmatprep.mubr.f32.mxu0 0.0
    %2058 = vmatmul.mubr.f32.gmra.mrb[0].mxu0 %v1988
    %v2059 = vpop.f32.mrb[0].mxu0
    %v2060 = vadd.f32 0.0, %v2059
    %v2061 = vpop.f32.mrb[0].mxu0
    %2062 = vdwg.mxu0
    %v2064 = vsel %vm94, %v72, 0
    %v2067 = vsel %vm94, %v1830, 0
    %2069 = vmatprep.subr.mxu0 0.0
    %2070 = vmatpush1.xpose.msra.mxu0 %v2067
    %2071 = vmatprep.subr.mxu0 0.0
    %2072 = vmatpush1.xpose.msra.mxu0 0.0
    %2073 = vmatprep.subr.mxu0 0.0
    %2074 = vmatpush1.xpose.msra.mxu0 0.0
    %2075 = vmatprep.subr.mxu0 0.0
    %2076 = vmatpush1.xpose.msra.mxu0 0.0
    %2077 = vmatprep.subr.mxu0 0.0
    %2078 = vmatpush1.xpose.msra.mxu0 0.0
    %2079 = vmatprep.subr.mxu0 0.0
    %2080 = vmatpush1.xpose.msra.mxu0 0.0
    %2081 = vmatprep.subr.mxu0 0.0
    %2082 = vmatpush1.xpose.msra.mxu0 0.0
    %2083 = vmatprep.subr.mxu0 0.0
    %2084 = vmatpush1.xpose.msra.mxu0 0.0
    %2085 = vmatprep.subr.mxu0 0.0
    %2086 = vmatpush1.xpose.msra.mxu0 0.0
    %2087 = vmatprep.subr.mxu0 0.0
    %2088 = vmatpush1.xpose.msra.mxu0 0.0
    %2089 = vmatprep.subr.mxu0 0.0
    %2090 = vmatpush1.xpose.msra.mxu0 0.0
    %2091 = vmatprep.subr.mxu0 0.0
    %2092 = vmatpush1.xpose.msra.mxu0 0.0
    %2093 = vmatprep.subr.mxu0 0.0
    %2094 = vmatpush1.xpose.msra.mxu0 0.0
    %2095 = vmatprep.subr.mxu0 0.0
    %2096 = vmatpush1.xpose.msra.mxu0 0.0
    %2097 = vmatprep.subr.mxu0 0.0
    %2098 = vmatpush1.xpose.msra.mxu0 0.0
    %2099 = vmatprep.subr.mxu0 0.0
    %2100 = vmatpush1.xpose.msra.mxu0 0.0
    %2101 = vmatprep.subr.mxu0 0.0
    %2102 = vmatpush1.xpose.msra.mxu0 0.0
    %2103 = vmatprep.subr.mxu0 0.0
    %2104 = vmatpush1.xpose.msra.mxu0 0.0
    %2105 = vmatprep.subr.mxu0 0.0
    %2106 = vmatpush1.xpose.msra.mxu0 0.0
    %2107 = vmatprep.subr.mxu0 0.0
    %2108 = vmatpush1.xpose.msra.mxu0 0.0
    %2109 = vmatprep.subr.mxu0 0.0
    %2110 = vmatpush1.xpose.msra.mxu0 0.0
    %2111 = vmatprep.subr.mxu0 0.0
    %2112 = vmatpush1.xpose.msra.mxu0 0.0
    %2113 = vmatprep.subr.mxu0 0.0
    %2114 = vmatpush1.xpose.msra.mxu0 0.0
    %2115 = vmatprep.subr.mxu0 0.0
    %2116 = vmatpush1.xpose.msra.mxu0 0.0
    %2117 = vmatprep.subr.mxu0 0.0
    %2118 = vmatpush1.xpose.msra.mxu0 0.0
    %2119 = vmatprep.subr.mxu0 0.0
    %2120 = vmatpush1.xpose.msra.mxu0 0.0
    %2121 = vmatprep.subr.mxu0 0.0
    %2122 = vmatpush1.xpose.msra.mxu0 0.0
    %2123 = vmatprep.subr.mxu0 0.0
    %2124 = vmatpush1.xpose.msra.mxu0 0.0
    %2125 = vmatprep.subr.mxu0 0.0
    %2126 = vmatpush1.xpose.msra.mxu0 0.0
    %2127 = vmatprep.subr.mxu0 0.0
    %2128 = vmatpush1.xpose.msra.mxu0 0.0
    %2129 = vmatprep.subr.mxu0 0.0
    %2130 = vmatpush1.xpose.msra.mxu0 0.0
    %2131 = vmatprep.subr.mxu0 0.0
    %2132 = vmatpush1.xpose.msra.mxu0 0.0
    %2133 = vmatprep.mubr.f32.mxu0 0.0
    %2134 = vmatmul.mubr.f32.gmra.mrb[0].mxu0 %v2064
    %v2135 = vpop.f32.mrb[0].mxu0
    %v2136 = vadd.f32 0.0, %v2135
    %v2137 = vpop.f32.mrb[0].mxu0
    %2138 = vdwg.mxu0
    %v2140 = vsel %vm94, %v73, 0
    %v2143 = vsel %vm94, %v1831, 0
    %2145 = vmatprep.subr.mxu0 0.0
    %2146 = vmatpush1.xpose.msra.mxu0 %v2143
    %2147 = vmatprep.subr.mxu0 0.0
    %2148 = vmatpush1.xpose.msra.mxu0 0.0
    %2149 = vmatprep.subr.mxu0 0.0
    %2150 = vmatpush1.xpose.msra.mxu0 0.0
    %2151 = vmatprep.subr.mxu0 0.0
    %2152 = vmatpush1.xpose.msra.mxu0 0.0
    %2153 = vmatprep.subr.mxu0 0.0
    %2154 = vmatpush1.xpose.msra.mxu0 0.0
    %2155 = vmatprep.subr.mxu0 0.0
    %2156 = vmatpush1.xpose.msra.mxu0 0.0
    %2157 = vmatprep.subr.mxu0 0.0
    %2158 = vmatpush1.xpose.msra.mxu0 0.0
    %2159 = vmatprep.subr.mxu0 0.0
    %2160 = vmatpush1.xpose.msra.mxu0 0.0
    %2161 = vmatprep.subr.mxu0 0.0
    %2162 = vmatpush1.xpose.msra.mxu0 0.0
    %2163 = vmatprep.subr.mxu0 0.0
    %2164 = vmatpush1.xpose.msra.mxu0 0.0
    %2165 = vmatprep.subr.mxu0 0.0
    %2166 = vmatpush1.xpose.msra.mxu0 0.0
    %2167 = vmatprep.subr.mxu0 0.0
    %2168 = vmatpush1.xpose.msra.mxu0 0.0
    %2169 = vmatprep.subr.mxu0 0.0
    %2170 = vmatpush1.xpose.msra.mxu0 0.0
    %2171 = vmatprep.subr.mxu0 0.0
    %2172 = vmatpush1.xpose.msra.mxu0 0.0
    %2173 = vmatprep.subr.mxu0 0.0
    %2174 = vmatpush1.xpose.msra.mxu0 0.0
    %2175 = vmatprep.subr.mxu0 0.0
    %2176 = vmatpush1.xpose.msra.mxu0 0.0
    %2177 = vmatprep.subr.mxu0 0.0
    %2178 = vmatpush1.xpose.msra.mxu0 0.0
    %2179 = vmatprep.subr.mxu0 0.0
    %2180 = vmatpush1.xpose.msra.mxu0 0.0
    %2181 = vmatprep.subr.mxu0 0.0
    %2182 = vmatpush1.xpose.msra.mxu0 0.0
    %2183 = vmatprep.subr.mxu0 0.0
    %2184 = vmatpush1.xpose.msra.mxu0 0.0
    %2185 = vmatprep.subr.mxu0 0.0
    %2186 = vmatpush1.xpose.msra.mxu0 0.0
    %2187 = vmatprep.subr.mxu0 0.0
    %2188 = vmatpush1.xpose.msra.mxu0 0.0
    %2189 = vmatprep.subr.mxu0 0.0
    %2190 = vmatpush1.xpose.msra.mxu0 0.0
    %2191 = vmatprep.subr.mxu0 0.0
    %2192 = vmatpush1.xpose.msra.mxu0 0.0
    %2193 = vmatprep.subr.mxu0 0.0
    %2194 = vmatpush1.xpose.msra.mxu0 0.0
    %2195 = vmatprep.subr.mxu0 0.0
    %2196 = vmatpush1.xpose.msra.mxu0 0.0
    %2197 = vmatprep.subr.mxu0 0.0
    %2198 = vmatpush1.xpose.msra.mxu0 0.0
    %2199 = vmatprep.subr.mxu0 0.0
    %2200 = vmatpush1.xpose.msra.mxu0 0.0
    %2201 = vmatprep.subr.mxu0 0.0
    %2202 = vmatpush1.xpose.msra.mxu0 0.0
    %2203 = vmatprep.subr.mxu0 0.0
    %2204 = vmatpush1.xpose.msra.mxu0 0.0
    %2205 = vmatprep.subr.mxu0 0.0
    %2206 = vmatpush1.xpose.msra.mxu0 0.0
    %2207 = vmatprep.subr.mxu0 0.0
    %2208 = vmatpush1.xpose.msra.mxu0 0.0
    %2209 = vmatprep.mubr.f32.mxu0 0.0
    %2210 = vmatmul.mubr.f32.gmra.mrb[0].mxu0 %v2140
    %v2211 = vpop.f32.mrb[0].mxu0
    %v2212 = vadd.f32 0.0, %v2211
    %v2213 = vpop.f32.mrb[0].mxu0
    %2214 = vdwg.mxu0
    %v2216 = vsel %vm94, %v74, 0
    %v2219 = vsel %vm94, %v1832, 0
    %2221 = vmatprep.subr.mxu0 0.0
    %2222 = vmatpush1.xpose.msra.mxu0 %v2219
    %2223 = vmatprep.subr.mxu0 0.0
    %2224 = vmatpush1.xpose.msra.mxu0 0.0
    %2225 = vmatprep.subr.mxu0 0.0
    %2226 = vmatpush1.xpose.msra.mxu0 0.0
    %2227 = vmatprep.subr.mxu0 0.0
    %2228 = vmatpush1.xpose.msra.mxu0 0.0
    %2229 = vmatprep.subr.mxu0 0.0
    %2230 = vmatpush1.xpose.msra.mxu0 0.0
    %2231 = vmatprep.subr.mxu0 0.0
    %2232 = vmatpush1.xpose.msra.mxu0 0.0
    %2233 = vmatprep.subr.mxu0 0.0
    %2234 = vmatpush1.xpose.msra.mxu0 0.0
    %2235 = vmatprep.subr.mxu0 0.0
    %2236 = vmatpush1.xpose.msra.mxu0 0.0
    %2237 = vmatprep.subr.mxu0 0.0
    %2238 = vmatpush1.xpose.msra.mxu0 0.0
    %2239 = vmatprep.subr.mxu0 0.0
    %2240 = vmatpush1.xpose.msra.mxu0 0.0
    %2241 = vmatprep.subr.mxu0 0.0
    %2242 = vmatpush1.xpose.msra.mxu0 0.0
    %2243 = vmatprep.subr.mxu0 0.0
    %2244 = vmatpush1.xpose.msra.mxu0 0.0
    %2245 = vmatprep.subr.mxu0 0.0
    %2246 = vmatpush1.xpose.msra.mxu0 0.0
    %2247 = vmatprep.subr.mxu0 0.0
    %2248 = vmatpush1.xpose.msra.mxu0 0.0
    %2249 = vmatprep.subr.mxu0 0.0
    %2250 = vmatpush1.xpose.msra.mxu0 0.0
    %2251 = vmatprep.subr.mxu0 0.0
    %2252 = vmatpush1.xpose.msra.mxu0 0.0
    %2253 = vmatprep.subr.mxu0 0.0
    %2254 = vmatpush1.xpose.msra.mxu0 0.0
    %2255 = vmatprep.subr.mxu0 0.0
    %2256 = vmatpush1.xpose.msra.mxu0 0.0
    %2257 = vmatprep.subr.mxu0 0.0
    %2258 = vmatpush1.xpose.msra.mxu0 0.0
    %2259 = vmatprep.subr.mxu0 0.0
    %2260 = vmatpush1.xpose.msra.mxu0 0.0
    %2261 = vmatprep.subr.mxu0 0.0
    %2262 = vmatpush1.xpose.msra.mxu0 0.0
    %2263 = vmatprep.subr.mxu0 0.0
    %2264 = vmatpush1.xpose.msra.mxu0 0.0
    %2265 = vmatprep.subr.mxu0 0.0
    %2266 = vmatpush1.xpose.msra.mxu0 0.0
    %2267 = vmatprep.subr.mxu0 0.0
    %2268 = vmatpush1.xpose.msra.mxu0 0.0
    %2269 = vmatprep.subr.mxu0 0.0
    %2270 = vmatpush1.xpose.msra.mxu0 0.0
    %2271 = vmatprep.subr.mxu0 0.0
    %2272 = vmatpush1.xpose.msra.mxu0 0.0
    %2273 = vmatprep.subr.mxu0 0.0
    %2274 = vmatpush1.xpose.msra.mxu0 0.0
    %2275 = vmatprep.subr.mxu0 0.0
    %2276 = vmatpush1.xpose.msra.mxu0 0.0
    %2277 = vmatprep.subr.mxu0 0.0
    %2278 = vmatpush1.xpose.msra.mxu0 0.0
    %2279 = vmatprep.subr.mxu0 0.0
    %2280 = vmatpush1.xpose.msra.mxu0 0.0
    %2281 = vmatprep.subr.mxu0 0.0
    %2282 = vmatpush1.xpose.msra.mxu0 0.0
    %2283 = vmatprep.subr.mxu0 0.0
    %2284 = vmatpush1.xpose.msra.mxu0 0.0
    %2285 = vmatprep.mubr.f32.mxu0 0.0
    %2286 = vmatmul.mubr.f32.gmra.mrb[0].mxu0 %v2216
    %v2287 = vpop.f32.mrb[0].mxu0
    %v2288 = vadd.f32 0.0, %v2287
    %v2289 = vpop.f32.mrb[0].mxu0
    %2290 = vdwg.mxu0
    %v2292 = vsel %vm94, %v75, 0
    %v2295 = vsel %vm94, %v1833, 0
    %2297 = vmatprep.subr.mxu0 0.0
    %2298 = vmatpush1.xpose.msra.mxu0 %v2295
    %2299 = vmatprep.subr.mxu0 0.0
    %2300 = vmatpush1.xpose.msra.mxu0 0.0
    %2301 = vmatprep.subr.mxu0 0.0
    %2302 = vmatpush1.xpose.msra.mxu0 0.0
    %2303 = vmatprep.subr.mxu0 0.0
    %2304 = vmatpush1.xpose.msra.mxu0 0.0
    %2305 = vmatprep.subr.mxu0 0.0
    %2306 = vmatpush1.xpose.msra.mxu0 0.0
    %2307 = vmatprep.subr.mxu0 0.0
    %2308 = vmatpush1.xpose.msra.mxu0 0.0
    %2309 = vmatprep.subr.mxu0 0.0
    %2310 = vmatpush1.xpose.msra.mxu0 0.0
    %2311 = vmatprep.subr.mxu0 0.0
    %2312 = vmatpush1.xpose.msra.mxu0 0.0
    %2313 = vmatprep.subr.mxu0 0.0
    %2314 = vmatpush1.xpose.msra.mxu0 0.0
    %2315 = vmatprep.subr.mxu0 0.0
    %2316 = vmatpush1.xpose.msra.mxu0 0.0
    %2317 = vmatprep.subr.mxu0 0.0
    %2318 = vmatpush1.xpose.msra.mxu0 0.0
    %2319 = vmatprep.subr.mxu0 0.0
    %2320 = vmatpush1.xpose.msra.mxu0 0.0
    %2321 = vmatprep.subr.mxu0 0.0
    %2322 = vmatpush1.xpose.msra.mxu0 0.0
    %2323 = vmatprep.subr.mxu0 0.0
    %2324 = vmatpush1.xpose.msra.mxu0 0.0
    %2325 = vmatprep.subr.mxu0 0.0
    %2326 = vmatpush1.xpose.msra.mxu0 0.0
    %2327 = vmatprep.subr.mxu0 0.0
    %2328 = vmatpush1.xpose.msra.mxu0 0.0
    %2329 = vmatprep.subr.mxu0 0.0
    %2330 = vmatpush1.xpose.msra.mxu0 0.0
    %2331 = vmatprep.subr.mxu0 0.0
    %2332 = vmatpush1.xpose.msra.mxu0 0.0
    %2333 = vmatprep.subr.mxu0 0.0
    %2334 = vmatpush1.xpose.msra.mxu0 0.0
    %2335 = vmatprep.subr.mxu0 0.0
    %2336 = vmatpush1.xpose.msra.mxu0 0.0
    %2337 = vmatprep.subr.mxu0 0.0
    %2338 = vmatpush1.xpose.msra.mxu0 0.0
    %2339 = vmatprep.subr.mxu0 0.0
    %2340 = vmatpush1.xpose.msra.mxu0 0.0
    %2341 = vmatprep.subr.mxu0 0.0
    %2342 = vmatpush1.xpose.msra.mxu0 0.0
    %2343 = vmatprep.subr.mxu0 0.0
    %2344 = vmatpush1.xpose.msra.mxu0 0.0
    %2345 = vmatprep.subr.mxu0 0.0
    %2346 = vmatpush1.xpose.msra.mxu0 0.0
    %2347 = vmatprep.subr.mxu0 0.0
    %2348 = vmatpush1.xpose.msra.mxu0 0.0
    %2349 = vmatprep.subr.mxu0 0.0
    %2350 = vmatpush1.xpose.msra.mxu0 0.0
    %2351 = vmatprep.subr.mxu0 0.0
    %2352 = vmatpush1.xpose.msra.mxu0 0.0
    %2353 = vmatprep.subr.mxu0 0.0
    %2354 = vmatpush1.xpose.msra.mxu0 0.0
    %2355 = vmatprep.subr.mxu0 0.0
    %2356 = vmatpush1.xpose.msra.mxu0 0.0
    %2357 = vmatprep.subr.mxu0 0.0
    %2358 = vmatpush1.xpose.msra.mxu0 0.0
    %2359 = vmatprep.subr.mxu0 0.0
    %2360 = vmatpush1.xpose.msra.mxu0 0.0
    %2361 = vmatprep.mubr.f32.mxu0 0.0
    %2362 = vmatmul.mubr.f32.gmra.mrb[0].mxu0 %v2292
    %v2363 = vpop.f32.mrb[0].mxu0
    %v2364 = vadd.f32 0.0, %v2363
    %v2365 = vpop.f32.mrb[0].mxu0
    %2366 = vdwg.mxu0
    %v2368 = vsel %vm94, %v76, 0
    %v2371 = vsel %vm94, %v1834, 0
    %2373 = vmatprep.subr.mxu0 0.0
    %2374 = vmatpush1.xpose.msra.mxu0 %v2371
    %2375 = vmatprep.subr.mxu0 0.0
    %2376 = vmatpush1.xpose.msra.mxu0 0.0
    %2377 = vmatprep.subr.mxu0 0.0
    %2378 = vmatpush1.xpose.msra.mxu0 0.0
    %2379 = vmatprep.subr.mxu0 0.0
    %2380 = vmatpush1.xpose.msra.mxu0 0.0
    %2381 = vmatprep.subr.mxu0 0.0
    %2382 = vmatpush1.xpose.msra.mxu0 0.0
    %2383 = vmatprep.subr.mxu0 0.0
    %2384 = vmatpush1.xpose.msra.mxu0 0.0
    %2385 = vmatprep.subr.mxu0 0.0
    %2386 = vmatpush1.xpose.msra.mxu0 0.0
    %2387 = vmatprep.subr.mxu0 0.0
    %2388 = vmatpush1.xpose.msra.mxu0 0.0
    %2389 = vmatprep.subr.mxu0 0.0
    %2390 = vmatpush1.xpose.msra.mxu0 0.0
    %2391 = vmatprep.subr.mxu0 0.0
    %2392 = vmatpush1.xpose.msra.mxu0 0.0
    %2393 = vmatprep.subr.mxu0 0.0
    %2394 = vmatpush1.xpose.msra.mxu0 0.0
    %2395 = vmatprep.subr.mxu0 0.0
    %2396 = vmatpush1.xpose.msra.mxu0 0.0
    %2397 = vmatprep.subr.mxu0 0.0
    %2398 = vmatpush1.xpose.msra.mxu0 0.0
    %2399 = vmatprep.subr.mxu0 0.0
    %2400 = vmatpush1.xpose.msra.mxu0 0.0
    %2401 = vmatprep.subr.mxu0 0.0
    %2402 = vmatpush1.xpose.msra.mxu0 0.0
    %2403 = vmatprep.subr.mxu0 0.0
    %2404 = vmatpush1.xpose.msra.mxu0 0.0
    %2405 = vmatprep.subr.mxu0 0.0
    %2406 = vmatpush1.xpose.msra.mxu0 0.0
    %2407 = vmatprep.subr.mxu0 0.0
    %2408 = vmatpush1.xpose.msra.mxu0 0.0
    %2409 = vmatprep.subr.mxu0 0.0
    %2410 = vmatpush1.xpose.msra.mxu0 0.0
    %2411 = vmatprep.subr.mxu0 0.0
    %2412 = vmatpush1.xpose.msra.mxu0 0.0
    %2413 = vmatprep.subr.mxu0 0.0
    %2414 = vmatpush1.xpose.msra.mxu0 0.0
    %2415 = vmatprep.subr.mxu0 0.0
    %2416 = vmatpush1.xpose.msra.mxu0 0.0
    %2417 = vmatprep.subr.mxu0 0.0
    %2418 = vmatpush1.xpose.msra.mxu0 0.0
    %2419 = vmatprep.subr.mxu0 0.0
    %2420 = vmatpush1.xpose.msra.mxu0 0.0
    %2421 = vmatprep.subr.mxu0 0.0
    %2422 = vmatpush1.xpose.msra.mxu0 0.0
    %2423 = vmatprep.subr.mxu0 0.0
    %2424 = vmatpush1.xpose.msra.mxu0 0.0
    %2425 = vmatprep.subr.mxu0 0.0
    %2426 = vmatpush1.xpose.msra.mxu0 0.0
    %2427 = vmatprep.subr.mxu0 0.0
    %2428 = vmatpush1.xpose.msra.mxu0 0.0
    %2429 = vmatprep.subr.mxu0 0.0
    %2430 = vmatpush1.xpose.msra.mxu0 0.0
    %2431 = vmatprep.subr.mxu0 0.0
    %2432 = vmatpush1.xpose.msra.mxu0 0.0
    %2433 = vmatprep.subr.mxu0 0.0
    %2434 = vmatpush1.xpose.msra.mxu0 0.0
    %2435 = vmatprep.subr.mxu0 0.0
    %2436 = vmatpush1.xpose.msra.mxu0 0.0
    %2437 = vmatprep.mubr.f32.mxu0 0.0
    %2438 = vmatmul.mubr.f32.gmra.mrb[0].mxu0 %v2368
    %v2439 = vpop.f32.mrb[0].mxu0
    %v2440 = vadd.f32 0.0, %v2439
    %v2441 = vpop.f32.mrb[0].mxu0
    %2442 = vdwg.mxu0
    %v2443 = vld [vmem:[%s9] sm:$0xff]
    %v2444 = vmul.f32 %v1908, %v2443
    %v2445 = vmul.f32 %v1984, %v2443
    %v2446 = vmul.f32 %v2060, %v2443
    %v2447 = vmul.f32 %v2136, %v2443
    %v2448 = vmul.f32 %v2212, %v2443
    %v2449 = vmul.f32 %v2288, %v2443
    %v2450 = vmul.f32 %v2364, %v2443
    %v2451 = vmul.f32 %v2440, %v2443
    %v2452 = vld [vmem:[%s10] sm:$0xff]
    %v2453 = vadd.f32 %v2444, %v2452
    %v2454 = vadd.f32 %v2445, %v2452
    %v2455 = vadd.f32 %v2446, %v2452
    %v2456 = vadd.f32 %v2447, %v2452
    %v2457 = vadd.f32 %v2448, %v2452
    %v2458 = vadd.f32 %v2449, %v2452
    %v2459 = vadd.f32 %v2450, %v2452
    %v2460 = vadd.f32 %v2451, %v2452
    %v2461 = vxor.u32 %v2453, 2147483648
    %v2462 = vxor.u32 %v2454, 2147483648
    %v2463 = vxor.u32 %v2455, 2147483648
    %v2464 = vxor.u32 %v2456, 2147483648
    %v2465 = vxor.u32 %v2457, 2147483648
    %v2466 = vxor.u32 %v2458, 2147483648
    %v2467 = vxor.u32 %v2459, 2147483648
    %v2468 = vxor.u32 %v2460, 2147483648
    %v2469 = vmul.f32 %v2461, 1.442695
    %v2470 = vpow.pop %v2469
    %v2471 = vmul.f32 %v2462, 1.442695
    %v2472 = vpow.pop %v2471
    %v2473 = vmul.f32 %v2463, 1.442695
    %v2474 = vpow.pop %v2473
    %v2475 = vmul.f32 %v2464, 1.442695
    %v2476 = vpow.pop %v2475
    %v2477 = vmul.f32 %v2465, 1.442695
    %v2478 = vpow.pop %v2477
    %v2479 = vmul.f32 %v2466, 1.442695
    %v2480 = vpow.pop %v2479
    %v2481 = vmul.f32 %v2467, 1.442695
    %v2482 = vpow.pop %v2481
    %v2483 = vmul.f32 %v2468, 1.442695
    %v2484 = vpow.pop %v2483
    %v2485 = vadd.f32 %v2470, 1.0
    %v2486 = vadd.f32 %v2472, 1.0
    %v2487 = vadd.f32 %v2474, 1.0
    %v2488 = vadd.f32 %v2476, 1.0
    %v2489 = vadd.f32 %v2478, 1.0
    %v2490 = vadd.f32 %v2480, 1.0
    %v2491 = vadd.f32 %v2482, 1.0
    %v2492 = vadd.f32 %v2484, 1.0
    %v2493 = vrcp.pop %v2485
    %v2494 = vmul.f32 1.0, %v2493
    %v2495 = vrcp.pop %v2486
    %v2496 = vmul.f32 1.0, %v2495
    %v2497 = vrcp.pop %v2487
    %v2498 = vmul.f32 1.0, %v2497
    %v2499 = vrcp.pop %v2488
    %v2500 = vmul.f32 1.0, %v2499
    %v2501 = vrcp.pop %v2489
    %v2502 = vmul.f32 1.0, %v2501
    %v2503 = vrcp.pop %v2490
    %v2504 = vmul.f32 1.0, %v2503
    %v2505 = vrcp.pop %v2491
    %v2506 = vmul.f32 1.0, %v2505
    %v2507 = vrcp.pop %v2492
    %v2508 = vmul.f32 1.0, %v2507
    %v2509 = vsel %vm1221, %v2494, 0.0
    %2510 = vadd.xlane.f32.xlu0 %v2509
    %v2511 = vpop.xlane.xlu0 %2510
    %v2512 = vsel %vm1221, %v2496, 0.0
    %2513 = vadd.xlane.f32.xlu0 %v2512
    %v2514 = vpop.xlane.xlu0 %2513
    %v2515 = vsel %vm1221, %v2498, 0.0
    %2516 = vadd.xlane.f32.xlu0 %v2515
    %v2517 = vpop.xlane.xlu0 %2516
    %v2518 = vsel %vm1221, %v2500, 0.0
    %2519 = vadd.xlane.f32.xlu0 %v2518
    %v2520 = vpop.xlane.xlu0 %2519
    %v2521 = vsel %vm1221, %v2502, 0.0
    %2522 = vadd.xlane.f32.xlu0 %v2521
    %v2523 = vpop.xlane.xlu0 %2522
    %v2524 = vsel %vm1221, %v2504, 0.0
    %2525 = vadd.xlane.f32.xlu0 %v2524
    %v2526 = vpop.xlane.xlu0 %2525
    %v2527 = vsel %vm1221, %v2506, 0.0
    %2528 = vadd.xlane.f32.xlu0 %v2527
    %v2529 = vpop.xlane.xlu0 %2528
    %v2530 = vsel %vm1221, %v2508, 0.0
    %2531 = vadd.xlane.f32.xlu0 %v2530
    %v2532 = vpop.xlane.xlu0 %2531
    %v2533 = vrcp.pop %v2511
    %v2534 = vmul.f32 %v2494, %v2533
    %v2535 = vrcp.pop %v2514
    %v2536 = vmul.f32 %v2496, %v2535
    %v2537 = vrcp.pop %v2517
    %v2538 = vmul.f32 %v2498, %v2537
    %v2539 = vrcp.pop %v2520
    %v2540 = vmul.f32 %v2500, %v2539
    %v2541 = vrcp.pop %v2523
    %v2542 = vmul.f32 %v2502, %v2541
    %v2543 = vrcp.pop %v2526
    %v2544 = vmul.f32 %v2504, %v2543
    %v2545 = vrcp.pop %v2529
    %v2546 = vmul.f32 %v2506, %v2545
    %v2547 = vrcp.pop %v2532
    %v2548 = vmul.f32 %v2508, %v2547
    %v2549 = vmul.f32 %v217, %v2534
    %v2550 = vmul.f32 %v218, %v2536
    %v2551 = vmul.f32 %v219, %v2538
    %v2552 = vmul.f32 %v220, %v2540
    %v2553 = vmul.f32 %v221, %v2542
    %v2554 = vmul.f32 %v222, %v2544
    %v2555 = vmul.f32 %v223, %v2546
    %v2556 = vmul.f32 %v224, %v2548
    %v2557 = vsub.f32 %v2549, %v226
    %v2558 = vsub.f32 %v2550, %v227
    %v2559 = vsub.f32 %v2551, %v228
    %v2560 = vsub.f32 %v2552, %v229
    %v2561 = vsub.f32 %v2553, %v230
    %v2562 = vsub.f32 %v2554, %v231
    %v2563 = vsub.f32 %v2555, %v232
    %v2564 = vsub.f32 %v2556, %v233
    %2565 = vxpose.xlu0.b32.start [1/16] %v2557, 128
    %2566 = vxpose.xlu0.b32.cont [2/16] 0.0, 128
    %2567 = vxpose.xlu0.b32.cont [3/16] 0.0, 128
    %2568 = vxpose.xlu0.b32.cont [4/16] 0.0, 128
    %2569 = vxpose.xlu0.b32.cont [5/16] 0.0, 128
    %2570 = vxpose.xlu0.b32.cont [6/16] 0.0, 128
    %2571 = vxpose.xlu0.b32.cont [7/16] 0.0, 128
    %2572 = vxpose.xlu0.b32.cont [8/16] 0.0, 128
    %2573 = vxpose.xlu0.b32.cont [9/16] 0.0, 128
    %2574 = vxpose.xlu0.b32.cont [10/16] 0.0, 128
    %2575 = vxpose.xlu0.b32.cont [11/16] 0.0, 128
    %2576 = vxpose.xlu0.b32.cont [12/16] 0.0, 128
    %2577 = vxpose.xlu0.b32.cont [13/16] 0.0, 128
    %2578 = vxpose.xlu0.b32.cont [14/16] 0.0, 128
    %2579 = vxpose.xlu0.b32.cont [15/16] 0.0, 128
    %2580 = vxpose.xlu0.b32.end [16/16] 0.0, 128
    %v2581 = vpop.trf.xlu0
    %v2582 = vpop.trf.xlu0
    %v2583 = vpop.trf.xlu0
    %v2584 = vpop.trf.xlu0
    %v2585 = vpop.trf.xlu0
    %v2586 = vpop.trf.xlu0
    %v2587 = vpop.trf.xlu0
    %v2588 = vpop.trf.xlu0
    %v2589 = vpop.trf.xlu0
    %v2590 = vpop.trf.xlu0
    %v2591 = vpop.trf.xlu0
    %v2592 = vpop.trf.xlu0
    %v2593 = vpop.trf.xlu0
    %v2594 = vpop.trf.xlu0
    %v2595 = vpop.trf.xlu0
    %v2596 = vpop.trf.xlu0
    %v2598 = vsel %vm282, %v2581, 0
    %2600 = vmatprep.subr.mxu0 0.0
    %2601 = vmatpush1.msra.mxu0 %v77
    %2602 = vmatprep.subr.mxu0 0.0
    %2603 = vmatpush1.msra.mxu0 0.0
    %2604 = vmatprep.subr.mxu0 0.0
    %2605 = vmatpush1.msra.mxu0 0.0
    %2606 = vmatprep.subr.mxu0 0.0
    %2607 = vmatpush1.msra.mxu0 0.0
    %2608 = vmatprep.subr.mxu0 0.0
    %2609 = vmatpush1.msra.mxu0 0.0
    %2610 = vmatprep.subr.mxu0 0.0
    %2611 = vmatpush1.msra.mxu0 0.0
    %2612 = vmatprep.subr.mxu0 0.0
    %2613 = vmatpush1.msra.mxu0 0.0
    %2614 = vmatprep.subr.mxu0 0.0
    %2615 = vmatpush1.msra.mxu0 0.0
    %2616 = vmatprep.subr.mxu0 0.0
    %2617 = vmatpush1.msra.mxu0 0.0
    %2618 = vmatprep.subr.mxu0 0.0
    %2619 = vmatpush1.msra.mxu0 0.0
    %2620 = vmatprep.subr.mxu0 0.0
    %2621 = vmatpush1.msra.mxu0 0.0
    %2622 = vmatprep.subr.mxu0 0.0
    %2623 = vmatpush1.msra.mxu0 0.0
    %2624 = vmatprep.subr.mxu0 0.0
    %2625 = vmatpush1.msra.mxu0 0.0
    %2626 = vmatprep.subr.mxu0 0.0
    %2627 = vmatpush1.msra.mxu0 0.0
    %2628 = vmatprep.subr.mxu0 0.0
    %2629 = vmatpush1.msra.mxu0 0.0
    %2630 = vmatprep.subr.mxu0 0.0
    %2631 = vmatpush1.msra.mxu0 0.0
    %2632 = vmatprep.subr.mxu0 0.0
    %2633 = vmatpush1.msra.mxu0 0.0
    %2634 = vmatprep.subr.mxu0 0.0
    %2635 = vmatpush1.msra.mxu0 0.0
    %2636 = vmatprep.subr.mxu0 0.0
    %2637 = vmatpush1.msra.mxu0 0.0
    %2638 = vmatprep.subr.mxu0 0.0
    %2639 = vmatpush1.msra.mxu0 0.0
    %2640 = vmatprep.subr.mxu0 0.0
    %2641 = vmatpush1.msra.mxu0 0.0
    %2642 = vmatprep.subr.mxu0 0.0
    %2643 = vmatpush1.msra.mxu0 0.0
    %2644 = vmatprep.subr.mxu0 0.0
    %2645 = vmatpush1.msra.mxu0 0.0
    %2646 = vmatprep.subr.mxu0 0.0
    %2647 = vmatpush1.msra.mxu0 0.0
    %2648 = vmatprep.subr.mxu0 0.0
    %2649 = vmatpush1.msra.mxu0 0.0
    %2650 = vmatprep.subr.mxu0 0.0
    %2651 = vmatpush1.msra.mxu0 0.0
    %2652 = vmatprep.subr.mxu0 0.0
    %2653 = vmatpush1.msra.mxu0 0.0
    %2654 = vmatprep.subr.mxu0 0.0
    %2655 = vmatpush1.msra.mxu0 0.0
    %2656 = vmatprep.subr.mxu0 0.0
    %2657 = vmatpush1.msra.mxu0 0.0
    %2658 = vmatprep.subr.mxu0 0.0
    %2659 = vmatpush1.msra.mxu0 0.0
    %2660 = vmatprep.subr.mxu0 0.0
    %2661 = vmatpush1.msra.mxu0 0.0
    %2662 = vmatprep.subr.mxu0 0.0
    %2663 = vmatpush1.msra.mxu0 0.0
    %2664 = vmatprep.mubr.f32.mxu0 0.0
    %2665 = vmatmul.mubr.f32.gmra.mrb[0].mxu0 %v2598
    %v2666 = vpop.f32.mrb[0].mxu0
    %v2667 = vadd.f32 0.0, %v2666
    %v2668 = vpop.f32.mrb[0].mxu0
    %2669 = vdwg.mxu0
    %2670 = vxpose.xlu0.b32.start [1/16] %v2558, 128
    %2671 = vxpose.xlu0.b32.cont [2/16] 0.0, 128
    %2672 = vxpose.xlu0.b32.cont [3/16] 0.0, 128
    %2673 = vxpose.xlu0.b32.cont [4/16] 0.0, 128
    %2674 = vxpose.xlu0.b32.cont [5/16] 0.0, 128
    %2675 = vxpose.xlu0.b32.cont [6/16] 0.0, 128
    %2676 = vxpose.xlu0.b32.cont [7/16] 0.0, 128
    %2677 = vxpose.xlu0.b32.cont [8/16] 0.0, 128
    %2678 = vxpose.xlu0.b32.cont [9/16] 0.0, 128
    %2679 = vxpose.xlu0.b32.cont [10/16] 0.0, 128
    %2680 = vxpose.xlu0.b32.cont [11/16] 0.0, 128
    %2681 = vxpose.xlu0.b32.cont [12/16] 0.0, 128
    %2682 = vxpose.xlu0.b32.cont [13/16] 0.0, 128
    %2683 = vxpose.xlu0.b32.cont [14/16] 0.0, 128
    %2684 = vxpose.xlu0.b32.cont [15/16] 0.0, 128
    %2685 = vxpose.xlu0.b32.end [16/16] 0.0, 128
    %v2686 = vpop.trf.xlu0
    %v2687 = vpop.trf.xlu0
    %v2688 = vpop.trf.xlu0
    %v2689 = vpop.trf.xlu0
    %v2690 = vpop.trf.xlu0
    %v2691 = vpop.trf.xlu0
    %v2692 = vpop.trf.xlu0
    %v2693 = vpop.trf.xlu0
    %v2694 = vpop.trf.xlu0
    %v2695 = vpop.trf.xlu0
    %v2696 = vpop.trf.xlu0
    %v2697 = vpop.trf.xlu0
    %v2698 = vpop.trf.xlu0
    %v2699 = vpop.trf.xlu0
    %v2700 = vpop.trf.xlu0
    %v2701 = vpop.trf.xlu0
    %v2703 = vsel %vm282, %v2686, 0
    %2705 = vmatprep.subr.mxu0 0.0
    %2706 = vmatpush1.msra.mxu0 %v78
    %2707 = vmatprep.subr.mxu0 0.0
    %2708 = vmatpush1.msra.mxu0 0.0
    %2709 = vmatprep.subr.mxu0 0.0
    %2710 = vmatpush1.msra.mxu0 0.0
    %2711 = vmatprep.subr.mxu0 0.0
    %2712 = vmatpush1.msra.mxu0 0.0
    %2713 = vmatprep.subr.mxu0 0.0
    %2714 = vmatpush1.msra.mxu0 0.0
    %2715 = vmatprep.subr.mxu0 0.0
    %2716 = vmatpush1.msra.mxu0 0.0
    %2717 = vmatprep.subr.mxu0 0.0
    %2718 = vmatpush1.msra.mxu0 0.0
    %2719 = vmatprep.subr.mxu0 0.0
    %2720 = vmatpush1.msra.mxu0 0.0
    %2721 = vmatprep.subr.mxu0 0.0
    %2722 = vmatpush1.msra.mxu0 0.0
    %2723 = vmatprep.subr.mxu0 0.0
    %2724 = vmatpush1.msra.mxu0 0.0
    %2725 = vmatprep.subr.mxu0 0.0
    %2726 = vmatpush1.msra.mxu0 0.0
    %2727 = vmatprep.subr.mxu0 0.0
    %2728 = vmatpush1.msra.mxu0 0.0
    %2729 = vmatprep.subr.mxu0 0.0
    %2730 = vmatpush1.msra.mxu0 0.0
    %2731 = vmatprep.subr.mxu0 0.0
    %2732 = vmatpush1.msra.mxu0 0.0
    %2733 = vmatprep.subr.mxu0 0.0
    %2734 = vmatpush1.msra.mxu0 0.0
    %2735 = vmatprep.subr.mxu0 0.0
    %2736 = vmatpush1.msra.mxu0 0.0
    %2737 = vmatprep.subr.mxu0 0.0
    %2738 = vmatpush1.msra.mxu0 0.0
    %2739 = vmatprep.subr.mxu0 0.0
    %2740 = vmatpush1.msra.mxu0 0.0
    %2741 = vmatprep.subr.mxu0 0.0
    %2742 = vmatpush1.msra.mxu0 0.0
    %2743 = vmatprep.subr.mxu0 0.0
    %2744 = vmatpush1.msra.mxu0 0.0
    %2745 = vmatprep.subr.mxu0 0.0
    %2746 = vmatpush1.msra.mxu0 0.0
    %2747 = vmatprep.subr.mxu0 0.0
    %2748 = vmatpush1.msra.mxu0 0.0
    %2749 = vmatprep.subr.mxu0 0.0
    %2750 = vmatpush1.msra.mxu0 0.0
    %2751 = vmatprep.subr.mxu0 0.0
    %2752 = vmatpush1.msra.mxu0 0.0
    %2753 = vmatprep.subr.mxu0 0.0
    %2754 = vmatpush1.msra.mxu0 0.0
    %2755 = vmatprep.subr.mxu0 0.0
    %2756 = vmatpush1.msra.mxu0 0.0
    %2757 = vmatprep.subr.mxu0 0.0
    %2758 = vmatpush1.msra.mxu0 0.0
    %2759 = vmatprep.subr.mxu0 0.0
    %2760 = vmatpush1.msra.mxu0 0.0
    %2761 = vmatprep.subr.mxu0 0.0
    %2762 = vmatpush1.msra.mxu0 0.0
    %2763 = vmatprep.subr.mxu0 0.0
    %2764 = vmatpush1.msra.mxu0 0.0
    %2765 = vmatprep.subr.mxu0 0.0
    %2766 = vmatpush1.msra.mxu0 0.0
    %2767 = vmatprep.subr.mxu0 0.0
    %2768 = vmatpush1.msra.mxu0 0.0
    %2769 = vmatprep.mubr.f32.mxu0 0.0
    %2770 = vmatmul.mubr.f32.gmra.mrb[0].mxu0 %v2703
    %v2771 = vpop.f32.mrb[0].mxu0
    %v2772 = vadd.f32 0.0, %v2771
    %v2773 = vpop.f32.mrb[0].mxu0
    %2774 = vdwg.mxu0
    %2775 = vxpose.xlu0.b32.start [1/16] %v2559, 128
    %2776 = vxpose.xlu0.b32.cont [2/16] 0.0, 128
    %2777 = vxpose.xlu0.b32.cont [3/16] 0.0, 128
    %2778 = vxpose.xlu0.b32.cont [4/16] 0.0, 128
    %2779 = vxpose.xlu0.b32.cont [5/16] 0.0, 128
    %2780 = vxpose.xlu0.b32.cont [6/16] 0.0, 128
    %2781 = vxpose.xlu0.b32.cont [7/16] 0.0, 128
    %2782 = vxpose.xlu0.b32.cont [8/16] 0.0, 128
    %2783 = vxpose.xlu0.b32.cont [9/16] 0.0, 128
    %2784 = vxpose.xlu0.b32.cont [10/16] 0.0, 128
    %2785 = vxpose.xlu0.b32.cont [11/16] 0.0, 128
    %2786 = vxpose.xlu0.b32.cont [12/16] 0.0, 128
    %2787 = vxpose.xlu0.b32.cont [13/16] 0.0, 128
    %2788 = vxpose.xlu0.b32.cont [14/16] 0.0, 128
    %2789 = vxpose.xlu0.b32.cont [15/16] 0.0, 128
    %2790 = vxpose.xlu0.b32.end [16/16] 0.0, 128
    %v2791 = vpop.trf.xlu0
    %v2792 = vpop.trf.xlu0
    %v2793 = vpop.trf.xlu0
    %v2794 = vpop.trf.xlu0
    %v2795 = vpop.trf.xlu0
    %v2796 = vpop.trf.xlu0
    %v2797 = vpop.trf.xlu0
    %v2798 = vpop.trf.xlu0
    %v2799 = vpop.trf.xlu0
    %v2800 = vpop.trf.xlu0
    %v2801 = vpop.trf.xlu0
    %v2802 = vpop.trf.xlu0
    %v2803 = vpop.trf.xlu0
    %v2804 = vpop.trf.xlu0
    %v2805 = vpop.trf.xlu0
    %v2806 = vpop.trf.xlu0
    %v2808 = vsel %vm282, %v2791, 0
    %2810 = vmatprep.subr.mxu0 0.0
    %2811 = vmatpush1.msra.mxu0 %v79
    %2812 = vmatprep.subr.mxu0 0.0
    %2813 = vmatpush1.msra.mxu0 0.0
    %2814 = vmatprep.subr.mxu0 0.0
    %2815 = vmatpush1.msra.mxu0 0.0
    %2816 = vmatprep.subr.mxu0 0.0
    %2817 = vmatpush1.msra.mxu0 0.0
    %2818 = vmatprep.subr.mxu0 0.0
    %2819 = vmatpush1.msra.mxu0 0.0
    %2820 = vmatprep.subr.mxu0 0.0
    %2821 = vmatpush1.msra.mxu0 0.0
    %2822 = vmatprep.subr.mxu0 0.0
    %2823 = vmatpush1.msra.mxu0 0.0
    %2824 = vmatprep.subr.mxu0 0.0
    %2825 = vmatpush1.msra.mxu0 0.0
    %2826 = vmatprep.subr.mxu0 0.0
    %2827 = vmatpush1.msra.mxu0 0.0
    %2828 = vmatprep.subr.mxu0 0.0
    %2829 = vmatpush1.msra.mxu0 0.0
    %2830 = vmatprep.subr.mxu0 0.0
    %2831 = vmatpush1.msra.mxu0 0.0
    %2832 = vmatprep.subr.mxu0 0.0
    %2833 = vmatpush1.msra.mxu0 0.0
    %2834 = vmatprep.subr.mxu0 0.0
    %2835 = vmatpush1.msra.mxu0 0.0
    %2836 = vmatprep.subr.mxu0 0.0
    %2837 = vmatpush1.msra.mxu0 0.0
    %2838 = vmatprep.subr.mxu0 0.0
    %2839 = vmatpush1.msra.mxu0 0.0
    %2840 = vmatprep.subr.mxu0 0.0
    %2841 = vmatpush1.msra.mxu0 0.0
    %2842 = vmatprep.subr.mxu0 0.0
    %2843 = vmatpush1.msra.mxu0 0.0
    %2844 = vmatprep.subr.mxu0 0.0
    %2845 = vmatpush1.msra.mxu0 0.0
    %2846 = vmatprep.subr.mxu0 0.0
    %2847 = vmatpush1.msra.mxu0 0.0
    %2848 = vmatprep.subr.mxu0 0.0
    %2849 = vmatpush1.msra.mxu0 0.0
    %2850 = vmatprep.subr.mxu0 0.0
    %2851 = vmatpush1.msra.mxu0 0.0
    %2852 = vmatprep.subr.mxu0 0.0
    %2853 = vmatpush1.msra.mxu0 0.0
    %2854 = vmatprep.subr.mxu0 0.0
    %2855 = vmatpush1.msra.mxu0 0.0
    %2856 = vmatprep.subr.mxu0 0.0
    %2857 = vmatpush1.msra.mxu0 0.0
    %2858 = vmatprep.subr.mxu0 0.0
    %2859 = vmatpush1.msra.mxu0 0.0
    %2860 = vmatprep.subr.mxu0 0.0
    %2861 = vmatpush1.msra.mxu0 0.0
    %2862 = vmatprep.subr.mxu0 0.0
    %2863 = vmatpush1.msra.mxu0 0.0
    %2864 = vmatprep.subr.mxu0 0.0
    %2865 = vmatpush1.msra.mxu0 0.0
    %2866 = vmatprep.subr.mxu0 0.0
    %2867 = vmatpush1.msra.mxu0 0.0
    %2868 = vmatprep.subr.mxu0 0.0
    %2869 = vmatpush1.msra.mxu0 0.0
    %2870 = vmatprep.subr.mxu0 0.0
    %2871 = vmatpush1.msra.mxu0 0.0
    %2872 = vmatprep.subr.mxu0 0.0
    %2873 = vmatpush1.msra.mxu0 0.0
    %2874 = vmatprep.mubr.f32.mxu0 0.0
    %2875 = vmatmul.mubr.f32.gmra.mrb[0].mxu0 %v2808
    %v2876 = vpop.f32.mrb[0].mxu0
    %v2877 = vadd.f32 0.0, %v2876
    %v2878 = vpop.f32.mrb[0].mxu0
    %2879 = vdwg.mxu0
    %2880 = vxpose.xlu0.b32.start [1/16] %v2560, 128
    %2881 = vxpose.xlu0.b32.cont [2/16] 0.0, 128
    %2882 = vxpose.xlu0.b32.cont [3/16] 0.0, 128
    %2883 = vxpose.xlu0.b32.cont [4/16] 0.0, 128
    %2884 = vxpose.xlu0.b32.cont [5/16] 0.0, 128
    %2885 = vxpose.xlu0.b32.cont [6/16] 0.0, 128
    %2886 = vxpose.xlu0.b32.cont [7/16] 0.0, 128
    %2887 = vxpose.xlu0.b32.cont [8/16] 0.0, 128
    %2888 = vxpose.xlu0.b32.cont [9/16] 0.0, 128
    %2889 = vxpose.xlu0.b32.cont [10/16] 0.0, 128
    %2890 = vxpose.xlu0.b32.cont [11/16] 0.0, 128
    %2891 = vxpose.xlu0.b32.cont [12/16] 0.0, 128
    %2892 = vxpose.xlu0.b32.cont [13/16] 0.0, 128
    %2893 = vxpose.xlu0.b32.cont [14/16] 0.0, 128
    %2894 = vxpose.xlu0.b32.cont [15/16] 0.0, 128
    %2895 = vxpose.xlu0.b32.end [16/16] 0.0, 128
    %v2896 = vpop.trf.xlu0
    %v2897 = vpop.trf.xlu0
    %v2898 = vpop.trf.xlu0
    %v2899 = vpop.trf.xlu0
    %v2900 = vpop.trf.xlu0
    %v2901 = vpop.trf.xlu0
    %v2902 = vpop.trf.xlu0
    %v2903 = vpop.trf.xlu0
    %v2904 = vpop.trf.xlu0
    %v2905 = vpop.trf.xlu0
    %v2906 = vpop.trf.xlu0
    %v2907 = vpop.trf.xlu0
    %v2908 = vpop.trf.xlu0
    %v2909 = vpop.trf.xlu0
    %v2910 = vpop.trf.xlu0
    %v2911 = vpop.trf.xlu0
    %v2913 = vsel %vm282, %v2896, 0
    %2915 = vmatprep.subr.mxu0 0.0
    %2916 = vmatpush1.msra.mxu0 %v80
    %2917 = vmatprep.subr.mxu0 0.0
    %2918 = vmatpush1.msra.mxu0 0.0
    %2919 = vmatprep.subr.mxu0 0.0
    %2920 = vmatpush1.msra.mxu0 0.0
    %2921 = vmatprep.subr.mxu0 0.0
    %2922 = vmatpush1.msra.mxu0 0.0
    %2923 = vmatprep.subr.mxu0 0.0
    %2924 = vmatpush1.msra.mxu0 0.0
    %2925 = vmatprep.subr.mxu0 0.0
    %2926 = vmatpush1.msra.mxu0 0.0
    %2927 = vmatprep.subr.mxu0 0.0
    %2928 = vmatpush1.msra.mxu0 0.0
    %2929 = vmatprep.subr.mxu0 0.0
    %2930 = vmatpush1.msra.mxu0 0.0
    %2931 = vmatprep.subr.mxu0 0.0
    %2932 = vmatpush1.msra.mxu0 0.0
    %2933 = vmatprep.subr.mxu0 0.0
    %2934 = vmatpush1.msra.mxu0 0.0
    %2935 = vmatprep.subr.mxu0 0.0
    %2936 = vmatpush1.msra.mxu0 0.0
    %2937 = vmatprep.subr.mxu0 0.0
    %2938 = vmatpush1.msra.mxu0 0.0
    %2939 = vmatprep.subr.mxu0 0.0
    %2940 = vmatpush1.msra.mxu0 0.0
    %2941 = vmatprep.subr.mxu0 0.0
    %2942 = vmatpush1.msra.mxu0 0.0
    %2943 = vmatprep.subr.mxu0 0.0
    %2944 = vmatpush1.msra.mxu0 0.0
    %2945 = vmatprep.subr.mxu0 0.0
    %2946 = vmatpush1.msra.mxu0 0.0
    %2947 = vmatprep.subr.mxu0 0.0
    %2948 = vmatpush1.msra.mxu0 0.0
    %2949 = vmatprep.subr.mxu0 0.0
    %2950 = vmatpush1.msra.mxu0 0.0
    %2951 = vmatprep.subr.mxu0 0.0
    %2952 = vmatpush1.msra.mxu0 0.0
    %2953 = vmatprep.subr.mxu0 0.0
    %2954 = vmatpush1.msra.mxu0 0.0
    %2955 = vmatprep.subr.mxu0 0.0
    %2956 = vmatpush1.msra.mxu0 0.0
    %2957 = vmatprep.subr.mxu0 0.0
    %2958 = vmatpush1.msra.mxu0 0.0
    %2959 = vmatprep.subr.mxu0 0.0
    %2960 = vmatpush1.msra.mxu0 0.0
    %2961 = vmatprep.subr.mxu0 0.0
    %2962 = vmatpush1.msra.mxu0 0.0
    %2963 = vmatprep.subr.mxu0 0.0
    %2964 = vmatpush1.msra.mxu0 0.0
    %2965 = vmatprep.subr.mxu0 0.0
    %2966 = vmatpush1.msra.mxu0 0.0
    %2967 = vmatprep.subr.mxu0 0.0
    %2968 = vmatpush1.msra.mxu0 0.0
    %2969 = vmatprep.subr.mxu0 0.0
    %2970 = vmatpush1.msra.mxu0 0.0
    %2971 = vmatprep.subr.mxu0 0.0
    %2972 = vmatpush1.msra.mxu0 0.0
    %2973 = vmatprep.subr.mxu0 0.0
    %2974 = vmatpush1.msra.mxu0 0.0
    %2975 = vmatprep.subr.mxu0 0.0
    %2976 = vmatpush1.msra.mxu0 0.0
    %2977 = vmatprep.subr.mxu0 0.0
    %2978 = vmatpush1.msra.mxu0 0.0
    %2979 = vmatprep.mubr.f32.mxu0 0.0
    %2980 = vmatmul.mubr.f32.gmra.mrb[0].mxu0 %v2913
    %v2981 = vpop.f32.mrb[0].mxu0
    %v2982 = vadd.f32 0.0, %v2981
    %v2983 = vpop.f32.mrb[0].mxu0
    %2984 = vdwg.mxu0
    %2985 = vxpose.xlu0.b32.start [1/16] %v2561, 128
    %2986 = vxpose.xlu0.b32.cont [2/16] 0.0, 128
    %2987 = vxpose.xlu0.b32.cont [3/16] 0.0, 128
    %2988 = vxpose.xlu0.b32.cont [4/16] 0.0, 128
    %2989 = vxpose.xlu0.b32.cont [5/16] 0.0, 128
    %2990 = vxpose.xlu0.b32.cont [6/16] 0.0, 128
    %2991 = vxpose.xlu0.b32.cont [7/16] 0.0, 128
    %2992 = vxpose.xlu0.b32.cont [8/16] 0.0, 128
    %2993 = vxpose.xlu0.b32.cont [9/16] 0.0, 128
    %2994 = vxpose.xlu0.b32.cont [10/16] 0.0, 128
    %2995 = vxpose.xlu0.b32.cont [11/16] 0.0, 128
    %2996 = vxpose.xlu0.b32.cont [12/16] 0.0, 128
    %2997 = vxpose.xlu0.b32.cont [13/16] 0.0, 128
    %2998 = vxpose.xlu0.b32.cont [14/16] 0.0, 128
    %2999 = vxpose.xlu0.b32.cont [15/16] 0.0, 128
    %3000 = vxpose.xlu0.b32.end [16/16] 0.0, 128
    %v3001 = vpop.trf.xlu0
    %v3002 = vpop.trf.xlu0
    %v3003 = vpop.trf.xlu0
    %v3004 = vpop.trf.xlu0
    %v3005 = vpop.trf.xlu0
    %v3006 = vpop.trf.xlu0
    %v3007 = vpop.trf.xlu0
    %v3008 = vpop.trf.xlu0
    %v3009 = vpop.trf.xlu0
    %v3010 = vpop.trf.xlu0
    %v3011 = vpop.trf.xlu0
    %v3012 = vpop.trf.xlu0
    %v3013 = vpop.trf.xlu0
    %v3014 = vpop.trf.xlu0
    %v3015 = vpop.trf.xlu0
    %v3016 = vpop.trf.xlu0
    %v3018 = vsel %vm282, %v3001, 0
    %3020 = vmatprep.subr.mxu0 0.0
    %3021 = vmatpush1.msra.mxu0 %v81
    %3022 = vmatprep.subr.mxu0 0.0
    %3023 = vmatpush1.msra.mxu0 0.0
    %3024 = vmatprep.subr.mxu0 0.0
    %3025 = vmatpush1.msra.mxu0 0.0
    %3026 = vmatprep.subr.mxu0 0.0
    %3027 = vmatpush1.msra.mxu0 0.0
    %3028 = vmatprep.subr.mxu0 0.0
    %3029 = vmatpush1.msra.mxu0 0.0
    %3030 = vmatprep.subr.mxu0 0.0
    %3031 = vmatpush1.msra.mxu0 0.0
    %3032 = vmatprep.subr.mxu0 0.0
    %3033 = vmatpush1.msra.mxu0 0.0
    %3034 = vmatprep.subr.mxu0 0.0
    %3035 = vmatpush1.msra.mxu0 0.0
    %3036 = vmatprep.subr.mxu0 0.0
    %3037 = vmatpush1.msra.mxu0 0.0
    %3038 = vmatprep.subr.mxu0 0.0
    %3039 = vmatpush1.msra.mxu0 0.0
    %3040 = vmatprep.subr.mxu0 0.0
    %3041 = vmatpush1.msra.mxu0 0.0
    %3042 = vmatprep.subr.mxu0 0.0
    %3043 = vmatpush1.msra.mxu0 0.0
    %3044 = vmatprep.subr.mxu0 0.0
    %3045 = vmatpush1.msra.mxu0 0.0
    %3046 = vmatprep.subr.mxu0 0.0
    %3047 = vmatpush1.msra.mxu0 0.0
    %3048 = vmatprep.subr.mxu0 0.0
    %3049 = vmatpush1.msra.mxu0 0.0
    %3050 = vmatprep.subr.mxu0 0.0
    %3051 = vmatpush1.msra.mxu0 0.0
    %3052 = vmatprep.subr.mxu0 0.0
    %3053 = vmatpush1.msra.mxu0 0.0
    %3054 = vmatprep.subr.mxu0 0.0
    %3055 = vmatpush1.msra.mxu0 0.0
    %3056 = vmatprep.subr.mxu0 0.0
    %3057 = vmatpush1.msra.mxu0 0.0
    %3058 = vmatprep.subr.mxu0 0.0
    %3059 = vmatpush1.msra.mxu0 0.0
    %3060 = vmatprep.subr.mxu0 0.0
    %3061 = vmatpush1.msra.mxu0 0.0
    %3062 = vmatprep.subr.mxu0 0.0
    %3063 = vmatpush1.msra.mxu0 0.0
    %3064 = vmatprep.subr.mxu0 0.0
    %3065 = vmatpush1.msra.mxu0 0.0
    %3066 = vmatprep.subr.mxu0 0.0
    %3067 = vmatpush1.msra.mxu0 0.0
    %3068 = vmatprep.subr.mxu0 0.0
    %3069 = vmatpush1.msra.mxu0 0.0
    %3070 = vmatprep.subr.mxu0 0.0
    %3071 = vmatpush1.msra.mxu0 0.0
    %3072 = vmatprep.subr.mxu0 0.0
    %3073 = vmatpush1.msra.mxu0 0.0
    %3074 = vmatprep.subr.mxu0 0.0
    %3075 = vmatpush1.msra.mxu0 0.0
    %3076 = vmatprep.subr.mxu0 0.0
    %3077 = vmatpush1.msra.mxu0 0.0
    %3078 = vmatprep.subr.mxu0 0.0
    %3079 = vmatpush1.msra.mxu0 0.0
    %3080 = vmatprep.subr.mxu0 0.0
    %3081 = vmatpush1.msra.mxu0 0.0
    %3082 = vmatprep.subr.mxu0 0.0
    %3083 = vmatpush1.msra.mxu0 0.0
    %3084 = vmatprep.mubr.f32.mxu0 0.0
    %3085 = vmatmul.mubr.f32.gmra.mrb[0].mxu0 %v3018
    %v3086 = vpop.f32.mrb[0].mxu0
    %v3087 = vadd.f32 0.0, %v3086
    %v3088 = vpop.f32.mrb[0].mxu0
    %3089 = vdwg.mxu0
    %3090 = vxpose.xlu0.b32.start [1/16] %v2562, 128
    %3091 = vxpose.xlu0.b32.cont [2/16] 0.0, 128
    %3092 = vxpose.xlu0.b32.cont [3/16] 0.0, 128
    %3093 = vxpose.xlu0.b32.cont [4/16] 0.0, 128
    %3094 = vxpose.xlu0.b32.cont [5/16] 0.0, 128
    %3095 = vxpose.xlu0.b32.cont [6/16] 0.0, 128
    %3096 = vxpose.xlu0.b32.cont [7/16] 0.0, 128
    %3097 = vxpose.xlu0.b32.cont [8/16] 0.0, 128
    %3098 = vxpose.xlu0.b32.cont [9/16] 0.0, 128
    %3099 = vxpose.xlu0.b32.cont [10/16] 0.0, 128
    %3100 = vxpose.xlu0.b32.cont [11/16] 0.0, 128
    %3101 = vxpose.xlu0.b32.cont [12/16] 0.0, 128
    %3102 = vxpose.xlu0.b32.cont [13/16] 0.0, 128
    %3103 = vxpose.xlu0.b32.cont [14/16] 0.0, 128
    %3104 = vxpose.xlu0.b32.cont [15/16] 0.0, 128
    %3105 = vxpose.xlu0.b32.end [16/16] 0.0, 128
    %v3106 = vpop.trf.xlu0
    %v3107 = vpop.trf.xlu0
    %v3108 = vpop.trf.xlu0
    %v3109 = vpop.trf.xlu0
    %v3110 = vpop.trf.xlu0
    %v3111 = vpop.trf.xlu0
    %v3112 = vpop.trf.xlu0
    %v3113 = vpop.trf.xlu0
    %v3114 = vpop.trf.xlu0
    %v3115 = vpop.trf.xlu0
    %v3116 = vpop.trf.xlu0
    %v3117 = vpop.trf.xlu0
    %v3118 = vpop.trf.xlu0
    %v3119 = vpop.trf.xlu0
    %v3120 = vpop.trf.xlu0
    %v3121 = vpop.trf.xlu0
    %v3123 = vsel %vm282, %v3106, 0
    %3125 = vmatprep.subr.mxu0 0.0
    %3126 = vmatpush1.msra.mxu0 %v82
    %3127 = vmatprep.subr.mxu0 0.0
    %3128 = vmatpush1.msra.mxu0 0.0
    %3129 = vmatprep.subr.mxu0 0.0
    %3130 = vmatpush1.msra.mxu0 0.0
    %3131 = vmatprep.subr.mxu0 0.0
    %3132 = vmatpush1.msra.mxu0 0.0
    %3133 = vmatprep.subr.mxu0 0.0
    %3134 = vmatpush1.msra.mxu0 0.0
    %3135 = vmatprep.subr.mxu0 0.0
    %3136 = vmatpush1.msra.mxu0 0.0
    %3137 = vmatprep.subr.mxu0 0.0
    %3138 = vmatpush1.msra.mxu0 0.0
    %3139 = vmatprep.subr.mxu0 0.0
    %3140 = vmatpush1.msra.mxu0 0.0
    %3141 = vmatprep.subr.mxu0 0.0
    %3142 = vmatpush1.msra.mxu0 0.0
    %3143 = vmatprep.subr.mxu0 0.0
    %3144 = vmatpush1.msra.mxu0 0.0
    %3145 = vmatprep.subr.mxu0 0.0
    %3146 = vmatpush1.msra.mxu0 0.0
    %3147 = vmatprep.subr.mxu0 0.0
    %3148 = vmatpush1.msra.mxu0 0.0
    %3149 = vmatprep.subr.mxu0 0.0
    %3150 = vmatpush1.msra.mxu0 0.0
    %3151 = vmatprep.subr.mxu0 0.0
    %3152 = vmatpush1.msra.mxu0 0.0
    %3153 = vmatprep.subr.mxu0 0.0
    %3154 = vmatpush1.msra.mxu0 0.0
    %3155 = vmatprep.subr.mxu0 0.0
    %3156 = vmatpush1.msra.mxu0 0.0
    %3157 = vmatprep.subr.mxu0 0.0
    %3158 = vmatpush1.msra.mxu0 0.0
    %3159 = vmatprep.subr.mxu0 0.0
    %3160 = vmatpush1.msra.mxu0 0.0
    %3161 = vmatprep.subr.mxu0 0.0
    %3162 = vmatpush1.msra.mxu0 0.0
    %3163 = vmatprep.subr.mxu0 0.0
    %3164 = vmatpush1.msra.mxu0 0.0
    %3165 = vmatprep.subr.mxu0 0.0
    %3166 = vmatpush1.msra.mxu0 0.0
    %3167 = vmatprep.subr.mxu0 0.0
    %3168 = vmatpush1.msra.mxu0 0.0
    %3169 = vmatprep.subr.mxu0 0.0
    %3170 = vmatpush1.msra.mxu0 0.0
    %3171 = vmatprep.subr.mxu0 0.0
    %3172 = vmatpush1.msra.mxu0 0.0
    %3173 = vmatprep.subr.mxu0 0.0
    %3174 = vmatpush1.msra.mxu0 0.0
    %3175 = vmatprep.subr.mxu0 0.0
    %3176 = vmatpush1.msra.mxu0 0.0
    %3177 = vmatprep.subr.mxu0 0.0
    %3178 = vmatpush1.msra.mxu0 0.0
    %3179 = vmatprep.subr.mxu0 0.0
    %3180 = vmatpush1.msra.mxu0 0.0
    %3181 = vmatprep.subr.mxu0 0.0
    %3182 = vmatpush1.msra.mxu0 0.0
    %3183 = vmatprep.subr.mxu0 0.0
    %3184 = vmatpush1.msra.mxu0 0.0
    %3185 = vmatprep.subr.mxu0 0.0
    %3186 = vmatpush1.msra.mxu0 0.0
    %3187 = vmatprep.subr.mxu0 0.0
    %3188 = vmatpush1.msra.mxu0 0.0
    %3189 = vmatprep.mubr.f32.mxu0 0.0
    %3190 = vmatmul.mubr.f32.gmra.mrb[0].mxu0 %v3123
    %v3191 = vpop.f32.mrb[0].mxu0
    %v3192 = vadd.f32 0.0, %v3191
    %v3193 = vpop.f32.mrb[0].mxu0
    %3194 = vdwg.mxu0
    %3195 = vxpose.xlu0.b32.start [1/16] %v2563, 128
    %3196 = vxpose.xlu0.b32.cont [2/16] 0.0, 128
    %3197 = vxpose.xlu0.b32.cont [3/16] 0.0, 128
    %3198 = vxpose.xlu0.b32.cont [4/16] 0.0, 128
    %3199 = vxpose.xlu0.b32.cont [5/16] 0.0, 128
    %3200 = vxpose.xlu0.b32.cont [6/16] 0.0, 128
    %3201 = vxpose.xlu0.b32.cont [7/16] 0.0, 128
    %3202 = vxpose.xlu0.b32.cont [8/16] 0.0, 128
    %3203 = vxpose.xlu0.b32.cont [9/16] 0.0, 128
    %3204 = vxpose.xlu0.b32.cont [10/16] 0.0, 128
    %3205 = vxpose.xlu0.b32.cont [11/16] 0.0, 128
    %3206 = vxpose.xlu0.b32.cont [12/16] 0.0, 128
    %3207 = vxpose.xlu0.b32.cont [13/16] 0.0, 128
    %3208 = vxpose.xlu0.b32.cont [14/16] 0.0, 128
    %3209 = vxpose.xlu0.b32.cont [15/16] 0.0, 128
    %3210 = vxpose.xlu0.b32.end [16/16] 0.0, 128
    %v3211 = vpop.trf.xlu0
    %v3212 = vpop.trf.xlu0
    %v3213 = vpop.trf.xlu0
    %v3214 = vpop.trf.xlu0
    %v3215 = vpop.trf.xlu0
    %v3216 = vpop.trf.xlu0
    %v3217 = vpop.trf.xlu0
    %v3218 = vpop.trf.xlu0
    %v3219 = vpop.trf.xlu0
    %v3220 = vpop.trf.xlu0
    %v3221 = vpop.trf.xlu0
    %v3222 = vpop.trf.xlu0
    %v3223 = vpop.trf.xlu0
    %v3224 = vpop.trf.xlu0
    %v3225 = vpop.trf.xlu0
    %v3226 = vpop.trf.xlu0
    %v3228 = vsel %vm282, %v3211, 0
    %3230 = vmatprep.subr.mxu0 0.0
    %3231 = vmatpush1.msra.mxu0 %v83
    %3232 = vmatprep.subr.mxu0 0.0
    %3233 = vmatpush1.msra.mxu0 0.0
    %3234 = vmatprep.subr.mxu0 0.0
    %3235 = vmatpush1.msra.mxu0 0.0
    %3236 = vmatprep.subr.mxu0 0.0
    %3237 = vmatpush1.msra.mxu0 0.0
    %3238 = vmatprep.subr.mxu0 0.0
    %3239 = vmatpush1.msra.mxu0 0.0
    %3240 = vmatprep.subr.mxu0 0.0
    %3241 = vmatpush1.msra.mxu0 0.0
    %3242 = vmatprep.subr.mxu0 0.0
    %3243 = vmatpush1.msra.mxu0 0.0
    %3244 = vmatprep.subr.mxu0 0.0
    %3245 = vmatpush1.msra.mxu0 0.0
    %3246 = vmatprep.subr.mxu0 0.0
    %3247 = vmatpush1.msra.mxu0 0.0
    %3248 = vmatprep.subr.mxu0 0.0
    %3249 = vmatpush1.msra.mxu0 0.0
    %3250 = vmatprep.subr.mxu0 0.0
    %3251 = vmatpush1.msra.mxu0 0.0
    %3252 = vmatprep.subr.mxu0 0.0
    %3253 = vmatpush1.msra.mxu0 0.0
    %3254 = vmatprep.subr.mxu0 0.0
    %3255 = vmatpush1.msra.mxu0 0.0
    %3256 = vmatprep.subr.mxu0 0.0
    %3257 = vmatpush1.msra.mxu0 0.0
    %3258 = vmatprep.subr.mxu0 0.0
    %3259 = vmatpush1.msra.mxu0 0.0
    %3260 = vmatprep.subr.mxu0 0.0
    %3261 = vmatpush1.msra.mxu0 0.0
    %3262 = vmatprep.subr.mxu0 0.0
    %3263 = vmatpush1.msra.mxu0 0.0
    %3264 = vmatprep.subr.mxu0 0.0
    %3265 = vmatpush1.msra.mxu0 0.0
    %3266 = vmatprep.subr.mxu0 0.0
    %3267 = vmatpush1.msra.mxu0 0.0
    %3268 = vmatprep.subr.mxu0 0.0
    %3269 = vmatpush1.msra.mxu0 0.0
    %3270 = vmatprep.subr.mxu0 0.0
    %3271 = vmatpush1.msra.mxu0 0.0
    %3272 = vmatprep.subr.mxu0 0.0
    %3273 = vmatpush1.msra.mxu0 0.0
    %3274 = vmatprep.subr.mxu0 0.0
    %3275 = vmatpush1.msra.mxu0 0.0
    %3276 = vmatprep.subr.mxu0 0.0
    %3277 = vmatpush1.msra.mxu0 0.0
    %3278 = vmatprep.subr.mxu0 0.0
    %3279 = vmatpush1.msra.mxu0 0.0
    %3280 = vmatprep.subr.mxu0 0.0
    %3281 = vmatpush1.msra.mxu0 0.0
    %3282 = vmatprep.subr.mxu0 0.0
    %3283 = vmatpush1.msra.mxu0 0.0
    %3284 = vmatprep.subr.mxu0 0.0
    %3285 = vmatpush1.msra.mxu0 0.0
    %3286 = vmatprep.subr.mxu0 0.0
    %3287 = vmatpush1.msra.mxu0 0.0
    %3288 = vmatprep.subr.mxu0 0.0
    %3289 = vmatpush1.msra.mxu0 0.0
    %3290 = vmatprep.subr.mxu0 0.0
    %3291 = vmatpush1.msra.mxu0 0.0
    %3292 = vmatprep.subr.mxu0 0.0
    %3293 = vmatpush1.msra.mxu0 0.0
    %3294 = vmatprep.mubr.f32.mxu0 0.0
    %3295 = vmatmul.mubr.f32.gmra.mrb[0].mxu0 %v3228
    %v3296 = vpop.f32.mrb[0].mxu0
    %v3297 = vadd.f32 0.0, %v3296
    %v3298 = vpop.f32.mrb[0].mxu0
    %3299 = vdwg.mxu0
    %3300 = vxpose.xlu0.b32.start [1/16] %v2564, 128
    %3301 = vxpose.xlu0.b32.cont [2/16] 0.0, 128
    %3302 = vxpose.xlu0.b32.cont [3/16] 0.0, 128
    %3303 = vxpose.xlu0.b32.cont [4/16] 0.0, 128
    %3304 = vxpose.xlu0.b32.cont [5/16] 0.0, 128
    %3305 = vxpose.xlu0.b32.cont [6/16] 0.0, 128
    %3306 = vxpose.xlu0.b32.cont [7/16] 0.0, 128
    %3307 = vxpose.xlu0.b32.cont [8/16] 0.0, 128
    %3308 = vxpose.xlu0.b32.cont [9/16] 0.0, 128
    %3309 = vxpose.xlu0.b32.cont [10/16] 0.0, 128
    %3310 = vxpose.xlu0.b32.cont [11/16] 0.0, 128
    %3311 = vxpose.xlu0.b32.cont [12/16] 0.0, 128
    %3312 = vxpose.xlu0.b32.cont [13/16] 0.0, 128
    %3313 = vxpose.xlu0.b32.cont [14/16] 0.0, 128
    %3314 = vxpose.xlu0.b32.cont [15/16] 0.0, 128
    %3315 = vxpose.xlu0.b32.end [16/16] 0.0, 128
    %v3316 = vpop.trf.xlu0
    %v3317 = vpop.trf.xlu0
    %v3318 = vpop.trf.xlu0
    %v3319 = vpop.trf.xlu0
    %v3320 = vpop.trf.xlu0
    %v3321 = vpop.trf.xlu0
    %v3322 = vpop.trf.xlu0
    %v3323 = vpop.trf.xlu0
    %v3324 = vpop.trf.xlu0
    %v3325 = vpop.trf.xlu0
    %v3326 = vpop.trf.xlu0
    %v3327 = vpop.trf.xlu0
    %v3328 = vpop.trf.xlu0
    %v3329 = vpop.trf.xlu0
    %v3330 = vpop.trf.xlu0
    %v3331 = vpop.trf.xlu0
    %v3333 = vsel %vm282, %v3316, 0
    %3335 = vmatprep.subr.mxu0 0.0
    %3336 = vmatpush1.msra.mxu0 %v84
    %3337 = vmatprep.subr.mxu0 0.0
    %3338 = vmatpush1.msra.mxu0 0.0
    %3339 = vmatprep.subr.mxu0 0.0
    %3340 = vmatpush1.msra.mxu0 0.0
    %3341 = vmatprep.subr.mxu0 0.0
    %3342 = vmatpush1.msra.mxu0 0.0
    %3343 = vmatprep.subr.mxu0 0.0
    %3344 = vmatpush1.msra.mxu0 0.0
    %3345 = vmatprep.subr.mxu0 0.0
    %3346 = vmatpush1.msra.mxu0 0.0
    %3347 = vmatprep.subr.mxu0 0.0
    %3348 = vmatpush1.msra.mxu0 0.0
    %3349 = vmatprep.subr.mxu0 0.0
    %3350 = vmatpush1.msra.mxu0 0.0
    %3351 = vmatprep.subr.mxu0 0.0
    %3352 = vmatpush1.msra.mxu0 0.0
    %3353 = vmatprep.subr.mxu0 0.0
    %3354 = vmatpush1.msra.mxu0 0.0
    %3355 = vmatprep.subr.mxu0 0.0
    %3356 = vmatpush1.msra.mxu0 0.0
    %3357 = vmatprep.subr.mxu0 0.0
    %3358 = vmatpush1.msra.mxu0 0.0
    %3359 = vmatprep.subr.mxu0 0.0
    %3360 = vmatpush1.msra.mxu0 0.0
    %3361 = vmatprep.subr.mxu0 0.0
    %3362 = vmatpush1.msra.mxu0 0.0
    %3363 = vmatprep.subr.mxu0 0.0
    %3364 = vmatpush1.msra.mxu0 0.0
    %3365 = vmatprep.subr.mxu0 0.0
    %3366 = vmatpush1.msra.mxu0 0.0
    %3367 = vmatprep.subr.mxu0 0.0
    %3368 = vmatpush1.msra.mxu0 0.0
    %3369 = vmatprep.subr.mxu0 0.0
    %3370 = vmatpush1.msra.mxu0 0.0
    %3371 = vmatprep.subr.mxu0 0.0
    %3372 = vmatpush1.msra.mxu0 0.0
    %3373 = vmatprep.subr.mxu0 0.0
    %3374 = vmatpush1.msra.mxu0 0.0
    %3375 = vmatprep.subr.mxu0 0.0
    %3376 = vmatpush1.msra.mxu0 0.0
    %3377 = vmatprep.subr.mxu0 0.0
    %3378 = vmatpush1.msra.mxu0 0.0
    %3379 = vmatprep.subr.mxu0 0.0
    %3380 = vmatpush1.msra.mxu0 0.0
    %3381 = vmatprep.subr.mxu0 0.0
    %3382 = vmatpush1.msra.mxu0 0.0
    %3383 = vmatprep.subr.mxu0 0.0
    %3384 = vmatpush1.msra.mxu0 0.0
    %3385 = vmatprep.subr.mxu0 0.0
    %3386 = vmatpush1.msra.mxu0 0.0
    %3387 = vmatprep.subr.mxu0 0.0
    %3388 = vmatpush1.msra.mxu0 0.0
    %3389 = vmatprep.subr.mxu0 0.0
    %3390 = vmatpush1.msra.mxu0 0.0
    %3391 = vmatprep.subr.mxu0 0.0
    %3392 = vmatpush1.msra.mxu0 0.0
    %3393 = vmatprep.subr.mxu0 0.0
    %3394 = vmatpush1.msra.mxu0 0.0
    %3395 = vmatprep.subr.mxu0 0.0
    %3396 = vmatpush1.msra.mxu0 0.0
    %3397 = vmatprep.subr.mxu0 0.0
    %3398 = vmatpush1.msra.mxu0 0.0
    %3399 = vmatprep.mubr.f32.mxu0 0.0
    %3400 = vmatmul.mubr.f32.gmra.mrb[0].mxu0 %v3333
    %v3401 = vpop.f32.mrb[0].mxu0
    %v3402 = vadd.f32 0.0, %v3401
    %v3403 = vpop.f32.mrb[0].mxu0
    %3404 = vdwg.mxu0
    %v3405 = vmul.f32 %v2667, %v1091
    %v3406 = vmul.f32 %v2772, %v1091
    %v3407 = vmul.f32 %v2877, %v1091
    %v3408 = vmul.f32 %v2982, %v1091
    %v3409 = vmul.f32 %v3087, %v1091
    %v3410 = vmul.f32 %v3192, %v1091
    %v3411 = vmul.f32 %v3297, %v1091
    %v3412 = vmul.f32 %v3402, %v1091
    %v3421 = vcombine.low %v3405, %v3406
    %v3422 = vcombine.low %v3407, %v3408
    %v3423 = vcombine.low %v3409, %v3410
    %v3424 = vcombine.low %v3411, %v3412
    %v3425 = vsel %vm94, %v3421, 0
    %v3427 = vsel %vm94, %v3422, 0
    %v3429 = vsel %vm94, %v3423, 0
    %v3431 = vsel %vm94, %v3424, 0
    %3433 = vmatprep.subr.mxu0 0.0
    %3434 = vmatpush1.msra.mxu0 %v1100
    %3435 = vmatprep.subr.mxu0 0.0
    %3436 = vmatpush1.msra.mxu0 %v1101
    %3437 = vmatprep.subr.mxu0 0.0
    %3438 = vmatpush1.msra.mxu0 %v1102
    %3439 = vmatprep.subr.mxu0 0.0
    %3440 = vmatpush1.msra.mxu0 %v1103
    %3441 = vmatprep.subr.mxu0 0.0
    %3442 = vmatpush1.msra.mxu0 0.0
    %3443 = vmatprep.subr.mxu0 0.0
    %3444 = vmatpush1.msra.mxu0 0.0
    %3445 = vmatprep.subr.mxu0 0.0
    %3446 = vmatpush1.msra.mxu0 0.0
    %3447 = vmatprep.subr.mxu0 0.0
    %3448 = vmatpush1.msra.mxu0 0.0
    %3449 = vmatprep.subr.mxu0 0.0
    %3450 = vmatpush1.msra.mxu0 0.0
    %3451 = vmatprep.subr.mxu0 0.0
    %3452 = vmatpush1.msra.mxu0 0.0
    %3453 = vmatprep.subr.mxu0 0.0
    %3454 = vmatpush1.msra.mxu0 0.0
    %3455 = vmatprep.subr.mxu0 0.0
    %3456 = vmatpush1.msra.mxu0 0.0
    %3457 = vmatprep.subr.mxu0 0.0
    %3458 = vmatpush1.msra.mxu0 0.0
    %3459 = vmatprep.subr.mxu0 0.0
    %3460 = vmatpush1.msra.mxu0 0.0
    %3461 = vmatprep.subr.mxu0 0.0
    %3462 = vmatpush1.msra.mxu0 0.0
    %3463 = vmatprep.subr.mxu0 0.0
    %3464 = vmatpush1.msra.mxu0 0.0
    %3465 = vmatprep.subr.mxu0 0.0
    %3466 = vmatpush1.msra.mxu0 0.0
    %3467 = vmatprep.subr.mxu0 0.0
    %3468 = vmatpush1.msra.mxu0 0.0
    %3469 = vmatprep.subr.mxu0 0.0
    %3470 = vmatpush1.msra.mxu0 0.0
    %3471 = vmatprep.subr.mxu0 0.0
    %3472 = vmatpush1.msra.mxu0 0.0
    %3473 = vmatprep.subr.mxu0 0.0
    %3474 = vmatpush1.msra.mxu0 0.0
    %3475 = vmatprep.subr.mxu0 0.0
    %3476 = vmatpush1.msra.mxu0 0.0
    %3477 = vmatprep.subr.mxu0 0.0
    %3478 = vmatpush1.msra.mxu0 0.0
    %3479 = vmatprep.subr.mxu0 0.0
    %3480 = vmatpush1.msra.mxu0 0.0
    %3481 = vmatprep.subr.mxu0 0.0
    %3482 = vmatpush1.msra.mxu0 0.0
    %3483 = vmatprep.subr.mxu0 0.0
    %3484 = vmatpush1.msra.mxu0 0.0
    %3485 = vmatprep.subr.mxu0 0.0
    %3486 = vmatpush1.msra.mxu0 0.0
    %3487 = vmatprep.subr.mxu0 0.0
    %3488 = vmatpush1.msra.mxu0 0.0
    %3489 = vmatprep.subr.mxu0 0.0
    %3490 = vmatpush1.msra.mxu0 0.0
    %3491 = vmatprep.subr.mxu0 0.0
    %3492 = vmatpush1.msra.mxu0 0.0
    %3493 = vmatprep.subr.mxu0 0.0
    %3494 = vmatpush1.msra.mxu0 0.0
    %3495 = vmatprep.subr.mxu0 0.0
    %3496 = vmatpush1.msra.mxu0 0.0
    %3497 = vmatprep.mubr.f32.mxu0 0.0
    %3498 = vmatmul.mubr.f32.gmra.mrb[0].mxu0 %v3425
    %v3499 = vpop.f32.mrb[0].mxu0
    %v3500 = vadd.f32 0.0, %v3499
    %v3501 = vpop.f32.mrb[0].mxu0
    %3502 = vmatprep.mubr.f32.mxu0 0.0
    %3503 = vmatmul.mubr.f32.gmra.mrb[0].mxu0 %v3427
    %v3504 = vpop.f32.mrb[0].mxu0
    %v3505 = vadd.f32 0.0, %v3504
    %v3506 = vpop.f32.mrb[0].mxu0
    %3507 = vmatprep.mubr.f32.mxu0 0.0
    %3508 = vmatmul.mubr.f32.gmra.mrb[0].mxu0 %v3429
    %v3509 = vpop.f32.mrb[0].mxu0
    %v3510 = vadd.f32 0.0, %v3509
    %v3511 = vpop.f32.mrb[0].mxu0
    %3512 = vmatprep.mubr.f32.mxu0 0.0
    %3513 = vmatmul.mubr.f32.gmra.mrb[0].mxu0 %v3431
    %v3514 = vpop.f32.mrb[0].mxu0
    %v3515 = vadd.f32 0.0, %v3514
    %v3516 = vpop.f32.mrb[0].mxu0
    %3517 = vdwg.mxu0
    %v3522 = vcombine.high %v3500, %v3500
    %v3523 = vcombine.high %v3505, %v3505
    %v3524 = vcombine.high %v3510, %v3510
    %v3525 = vcombine.high %v3515, %v3515
    %v3530 = vsel %vm1221, %v2557, 0.0
    %v3531 = vrot.slane %v3530, 4
    %v3532 = vadd.f32 %v3530, %v3531
    %v3533 = vrot.slane %v3532, 2
    %v3534 = vadd.f32 %v3532, %v3533
    %v3535 = vrot.slane %v3534, 1
    %v3536 = vadd.f32 %v3534, %v3535
    %v3537 = vsel %vm1221, %v2558, 0.0
    %v3538 = vrot.slane %v3537, 4
    %v3539 = vadd.f32 %v3537, %v3538
    %v3540 = vrot.slane %v3539, 2
    %v3541 = vadd.f32 %v3539, %v3540
    %v3542 = vrot.slane %v3541, 1
    %v3543 = vadd.f32 %v3541, %v3542
    %v3544 = vsel %vm1221, %v2559, 0.0
    %v3545 = vrot.slane %v3544, 4
    %v3546 = vadd.f32 %v3544, %v3545
    %v3547 = vrot.slane %v3546, 2
    %v3548 = vadd.f32 %v3546, %v3547
    %v3549 = vrot.slane %v3548, 1
    %v3550 = vadd.f32 %v3548, %v3549
    %v3551 = vsel %vm1221, %v2560, 0.0
    %v3552 = vrot.slane %v3551, 4
    %v3553 = vadd.f32 %v3551, %v3552
    %v3554 = vrot.slane %v3553, 2
    %v3555 = vadd.f32 %v3553, %v3554
    %v3556 = vrot.slane %v3555, 1
    %v3557 = vadd.f32 %v3555, %v3556
    %v3558 = vsel %vm1221, %v2561, 0.0
    %v3559 = vrot.slane %v3558, 4
    %v3560 = vadd.f32 %v3558, %v3559
    %v3561 = vrot.slane %v3560, 2
    %v3562 = vadd.f32 %v3560, %v3561
    %v3563 = vrot.slane %v3562, 1
    %v3564 = vadd.f32 %v3562, %v3563
    %v3565 = vsel %vm1221, %v2562, 0.0
    %v3566 = vrot.slane %v3565, 4
    %v3567 = vadd.f32 %v3565, %v3566
    %v3568 = vrot.slane %v3567, 2
    %v3569 = vadd.f32 %v3567, %v3568
    %v3570 = vrot.slane %v3569, 1
    %v3571 = vadd.f32 %v3569, %v3570
    %v3572 = vsel %vm1221, %v2563, 0.0
    %v3573 = vrot.slane %v3572, 4
    %v3574 = vadd.f32 %v3572, %v3573
    %v3575 = vrot.slane %v3574, 2
    %v3576 = vadd.f32 %v3574, %v3575
    %v3577 = vrot.slane %v3576, 1
    %v3578 = vadd.f32 %v3576, %v3577
    %v3579 = vsel %vm1221, %v2564, 0.0
    %v3580 = vrot.slane %v3579, 4
    %v3581 = vadd.f32 %v3579, %v3580
    %v3582 = vrot.slane %v3581, 2
    %v3583 = vadd.f32 %v3581, %v3582
    %v3584 = vrot.slane %v3583, 1
    %v3585 = vadd.f32 %v3583, %v3584
    %3586 = vxpose.xlu0.b32.start [1/16] %v3536, 128
    %3587 = vxpose.xlu0.b32.cont [2/16] 0.0, 128
    %3588 = vxpose.xlu0.b32.cont [3/16] 0.0, 128
    %3589 = vxpose.xlu0.b32.cont [4/16] 0.0, 128
    %3590 = vxpose.xlu0.b32.cont [5/16] 0.0, 128
    %3591 = vxpose.xlu0.b32.cont [6/16] 0.0, 128
    %3592 = vxpose.xlu0.b32.cont [7/16] 0.0, 128
    %3593 = vxpose.xlu0.b32.cont [8/16] 0.0, 128
    %3594 = vxpose.xlu0.b32.cont [9/16] 0.0, 128
    %3595 = vxpose.xlu0.b32.cont [10/16] 0.0, 128
    %3596 = vxpose.xlu0.b32.cont [11/16] 0.0, 128
    %3597 = vxpose.xlu0.b32.cont [12/16] 0.0, 128
    %3598 = vxpose.xlu0.b32.cont [13/16] 0.0, 128
    %3599 = vxpose.xlu0.b32.cont [14/16] 0.0, 128
    %3600 = vxpose.xlu0.b32.cont [15/16] 0.0, 128
    %3601 = vxpose.xlu0.b32.end [16/16] 0.0, 128
    %v3602 = vpop.trf.xlu0
    %v3603 = vpop.trf.xlu0
    %v3604 = vpop.trf.xlu0
    %v3605 = vpop.trf.xlu0
    %v3606 = vpop.trf.xlu0
    %v3607 = vpop.trf.xlu0
    %v3608 = vpop.trf.xlu0
    %v3609 = vpop.trf.xlu0
    %v3610 = vpop.trf.xlu0
    %v3611 = vpop.trf.xlu0
    %v3612 = vpop.trf.xlu0
    %v3613 = vpop.trf.xlu0
    %v3614 = vpop.trf.xlu0
    %v3615 = vpop.trf.xlu0
    %v3616 = vpop.trf.xlu0
    %v3617 = vpop.trf.xlu0
    %3618 = vxpose.xlu0.b32.start [1/16] %v3543, 128
    %3619 = vxpose.xlu0.b32.cont [2/16] 0.0, 128
    %3620 = vxpose.xlu0.b32.cont [3/16] 0.0, 128
    %3621 = vxpose.xlu0.b32.cont [4/16] 0.0, 128
    %3622 = vxpose.xlu0.b32.cont [5/16] 0.0, 128
    %3623 = vxpose.xlu0.b32.cont [6/16] 0.0, 128
    %3624 = vxpose.xlu0.b32.cont [7/16] 0.0, 128
    %3625 = vxpose.xlu0.b32.cont [8/16] 0.0, 128
    %3626 = vxpose.xlu0.b32.cont [9/16] 0.0, 128
    %3627 = vxpose.xlu0.b32.cont [10/16] 0.0, 128
    %3628 = vxpose.xlu0.b32.cont [11/16] 0.0, 128
    %3629 = vxpose.xlu0.b32.cont [12/16] 0.0, 128
    %3630 = vxpose.xlu0.b32.cont [13/16] 0.0, 128
    %3631 = vxpose.xlu0.b32.cont [14/16] 0.0, 128
    %3632 = vxpose.xlu0.b32.cont [15/16] 0.0, 128
    %3633 = vxpose.xlu0.b32.end [16/16] 0.0, 128
    %v3634 = vpop.trf.xlu0
    %v3635 = vpop.trf.xlu0
    %v3636 = vpop.trf.xlu0
    %v3637 = vpop.trf.xlu0
    %v3638 = vpop.trf.xlu0
    %v3639 = vpop.trf.xlu0
    %v3640 = vpop.trf.xlu0
    %v3641 = vpop.trf.xlu0
    %v3642 = vpop.trf.xlu0
    %v3643 = vpop.trf.xlu0
    %v3644 = vpop.trf.xlu0
    %v3645 = vpop.trf.xlu0
    %v3646 = vpop.trf.xlu0
    %v3647 = vpop.trf.xlu0
    %v3648 = vpop.trf.xlu0
    %v3649 = vpop.trf.xlu0
    %3650 = vxpose.xlu0.b32.start [1/16] %v3550, 128
    %3651 = vxpose.xlu0.b32.cont [2/16] 0.0, 128
    %3652 = vxpose.xlu0.b32.cont [3/16] 0.0, 128
    %3653 = vxpose.xlu0.b32.cont [4/16] 0.0, 128
    %3654 = vxpose.xlu0.b32.cont [5/16] 0.0, 128
    %3655 = vxpose.xlu0.b32.cont [6/16] 0.0, 128
    %3656 = vxpose.xlu0.b32.cont [7/16] 0.0, 128
    %3657 = vxpose.xlu0.b32.cont [8/16] 0.0, 128
    %3658 = vxpose.xlu0.b32.cont [9/16] 0.0, 128
    %3659 = vxpose.xlu0.b32.cont [10/16] 0.0, 128
    %3660 = vxpose.xlu0.b32.cont [11/16] 0.0, 128
    %3661 = vxpose.xlu0.b32.cont [12/16] 0.0, 128
    %3662 = vxpose.xlu0.b32.cont [13/16] 0.0, 128
    %3663 = vxpose.xlu0.b32.cont [14/16] 0.0, 128
    %3664 = vxpose.xlu0.b32.cont [15/16] 0.0, 128
    %3665 = vxpose.xlu0.b32.end [16/16] 0.0, 128
    %v3666 = vpop.trf.xlu0
    %v3667 = vpop.trf.xlu0
    %v3668 = vpop.trf.xlu0
    %v3669 = vpop.trf.xlu0
    %v3670 = vpop.trf.xlu0
    %v3671 = vpop.trf.xlu0
    %v3672 = vpop.trf.xlu0
    %v3673 = vpop.trf.xlu0
    %v3674 = vpop.trf.xlu0
    %v3675 = vpop.trf.xlu0
    %v3676 = vpop.trf.xlu0
    %v3677 = vpop.trf.xlu0
    %v3678 = vpop.trf.xlu0
    %v3679 = vpop.trf.xlu0
    %v3680 = vpop.trf.xlu0
    %v3681 = vpop.trf.xlu0
    %3682 = vxpose.xlu0.b32.start [1/16] %v3557, 128
    %3683 = vxpose.xlu0.b32.cont [2/16] 0.0, 128
    %3684 = vxpose.xlu0.b32.cont [3/16] 0.0, 128
    %3685 = vxpose.xlu0.b32.cont [4/16] 0.0, 128
    %3686 = vxpose.xlu0.b32.cont [5/16] 0.0, 128
    %3687 = vxpose.xlu0.b32.cont [6/16] 0.0, 128
    %3688 = vxpose.xlu0.b32.cont [7/16] 0.0, 128
    %3689 = vxpose.xlu0.b32.cont [8/16] 0.0, 128
    %3690 = vxpose.xlu0.b32.cont [9/16] 0.0, 128
    %3691 = vxpose.xlu0.b32.cont [10/16] 0.0, 128
    %3692 = vxpose.xlu0.b32.cont [11/16] 0.0, 128
    %3693 = vxpose.xlu0.b32.cont [12/16] 0.0, 128
    %3694 = vxpose.xlu0.b32.cont [13/16] 0.0, 128
    %3695 = vxpose.xlu0.b32.cont [14/16] 0.0, 128
    %3696 = vxpose.xlu0.b32.cont [15/16] 0.0, 128
    %3697 = vxpose.xlu0.b32.end [16/16] 0.0, 128
    %v3698 = vpop.trf.xlu0
    %v3699 = vpop.trf.xlu0
    %v3700 = vpop.trf.xlu0
    %v3701 = vpop.trf.xlu0
    %v3702 = vpop.trf.xlu0
    %v3703 = vpop.trf.xlu0
    %v3704 = vpop.trf.xlu0
    %v3705 = vpop.trf.xlu0
    %v3706 = vpop.trf.xlu0
    %v3707 = vpop.trf.xlu0
    %v3708 = vpop.trf.xlu0
    %v3709 = vpop.trf.xlu0
    %v3710 = vpop.trf.xlu0
    %v3711 = vpop.trf.xlu0
    %v3712 = vpop.trf.xlu0
    %v3713 = vpop.trf.xlu0
    %3714 = vxpose.xlu0.b32.start [1/16] %v3564, 128
    %3715 = vxpose.xlu0.b32.cont [2/16] 0.0, 128
    %3716 = vxpose.xlu0.b32.cont [3/16] 0.0, 128
    %3717 = vxpose.xlu0.b32.cont [4/16] 0.0, 128
    %3718 = vxpose.xlu0.b32.cont [5/16] 0.0, 128
    %3719 = vxpose.xlu0.b32.cont [6/16] 0.0, 128
    %3720 = vxpose.xlu0.b32.cont [7/16] 0.0, 128
    %3721 = vxpose.xlu0.b32.cont [8/16] 0.0, 128
    %3722 = vxpose.xlu0.b32.cont [9/16] 0.0, 128
    %3723 = vxpose.xlu0.b32.cont [10/16] 0.0, 128
    %3724 = vxpose.xlu0.b32.cont [11/16] 0.0, 128
    %3725 = vxpose.xlu0.b32.cont [12/16] 0.0, 128
    %3726 = vxpose.xlu0.b32.cont [13/16] 0.0, 128
    %3727 = vxpose.xlu0.b32.cont [14/16] 0.0, 128
    %3728 = vxpose.xlu0.b32.cont [15/16] 0.0, 128
    %3729 = vxpose.xlu0.b32.end [16/16] 0.0, 128
    %v3730 = vpop.trf.xlu0
    %v3731 = vpop.trf.xlu0
    %v3732 = vpop.trf.xlu0
    %v3733 = vpop.trf.xlu0
    %v3734 = vpop.trf.xlu0
    %v3735 = vpop.trf.xlu0
    %v3736 = vpop.trf.xlu0
    %v3737 = vpop.trf.xlu0
    %v3738 = vpop.trf.xlu0
    %v3739 = vpop.trf.xlu0
    %v3740 = vpop.trf.xlu0
    %v3741 = vpop.trf.xlu0
    %v3742 = vpop.trf.xlu0
    %v3743 = vpop.trf.xlu0
    %v3744 = vpop.trf.xlu0
    %v3745 = vpop.trf.xlu0
    %3746 = vxpose.xlu0.b32.start [1/16] %v3571, 128
    %3747 = vxpose.xlu0.b32.cont [2/16] 0.0, 128
    %3748 = vxpose.xlu0.b32.cont [3/16] 0.0, 128
    %3749 = vxpose.xlu0.b32.cont [4/16] 0.0, 128
    %3750 = vxpose.xlu0.b32.cont [5/16] 0.0, 128
    %3751 = vxpose.xlu0.b32.cont [6/16] 0.0, 128
    %3752 = vxpose.xlu0.b32.cont [7/16] 0.0, 128
    %3753 = vxpose.xlu0.b32.cont [8/16] 0.0, 128
    %3754 = vxpose.xlu0.b32.cont [9/16] 0.0, 128
    %3755 = vxpose.xlu0.b32.cont [10/16] 0.0, 128
    %3756 = vxpose.xlu0.b32.cont [11/16] 0.0, 128
    %3757 = vxpose.xlu0.b32.cont [12/16] 0.0, 128
    %3758 = vxpose.xlu0.b32.cont [13/16] 0.0, 128
    %3759 = vxpose.xlu0.b32.cont [14/16] 0.0, 128
    %3760 = vxpose.xlu0.b32.cont [15/16] 0.0, 128
    %3761 = vxpose.xlu0.b32.end [16/16] 0.0, 128
    %v3762 = vpop.trf.xlu0
    %v3763 = vpop.trf.xlu0
    %v3764 = vpop.trf.xlu0
    %v3765 = vpop.trf.xlu0
    %v3766 = vpop.trf.xlu0
    %v3767 = vpop.trf.xlu0
    %v3768 = vpop.trf.xlu0
    %v3769 = vpop.trf.xlu0
    %v3770 = vpop.trf.xlu0
    %v3771 = vpop.trf.xlu0
    %v3772 = vpop.trf.xlu0
    %v3773 = vpop.trf.xlu0
    %v3774 = vpop.trf.xlu0
    %v3775 = vpop.trf.xlu0
    %v3776 = vpop.trf.xlu0
    %v3777 = vpop.trf.xlu0
    %3778 = vxpose.xlu0.b32.start [1/16] %v3578, 128
    %3779 = vxpose.xlu0.b32.cont [2/16] 0.0, 128
    %3780 = vxpose.xlu0.b32.cont [3/16] 0.0, 128
    %3781 = vxpose.xlu0.b32.cont [4/16] 0.0, 128
    %3782 = vxpose.xlu0.b32.cont [5/16] 0.0, 128
    %3783 = vxpose.xlu0.b32.cont [6/16] 0.0, 128
    %3784 = vxpose.xlu0.b32.cont [7/16] 0.0, 128
    %3785 = vxpose.xlu0.b32.cont [8/16] 0.0, 128
    %3786 = vxpose.xlu0.b32.cont [9/16] 0.0, 128
    %3787 = vxpose.xlu0.b32.cont [10/16] 0.0, 128
    %3788 = vxpose.xlu0.b32.cont [11/16] 0.0, 128
    %3789 = vxpose.xlu0.b32.cont [12/16] 0.0, 128
    %3790 = vxpose.xlu0.b32.cont [13/16] 0.0, 128
    %3791 = vxpose.xlu0.b32.cont [14/16] 0.0, 128
    %3792 = vxpose.xlu0.b32.cont [15/16] 0.0, 128
    %3793 = vxpose.xlu0.b32.end [16/16] 0.0, 128
    %v3794 = vpop.trf.xlu0
    %v3795 = vpop.trf.xlu0
    %v3796 = vpop.trf.xlu0
    %v3797 = vpop.trf.xlu0
    %v3798 = vpop.trf.xlu0
    %v3799 = vpop.trf.xlu0
    %v3800 = vpop.trf.xlu0
    %v3801 = vpop.trf.xlu0
    %v3802 = vpop.trf.xlu0
    %v3803 = vpop.trf.xlu0
    %v3804 = vpop.trf.xlu0
    %v3805 = vpop.trf.xlu0
    %v3806 = vpop.trf.xlu0
    %v3807 = vpop.trf.xlu0
    %v3808 = vpop.trf.xlu0
    %v3809 = vpop.trf.xlu0
    %3810 = vxpose.xlu0.b32.start [1/16] %v3585, 128
    %3811 = vxpose.xlu0.b32.cont [2/16] 0.0, 128
    %3812 = vxpose.xlu0.b32.cont [3/16] 0.0, 128
    %3813 = vxpose.xlu0.b32.cont [4/16] 0.0, 128
    %3814 = vxpose.xlu0.b32.cont [5/16] 0.0, 128
    %3815 = vxpose.xlu0.b32.cont [6/16] 0.0, 128
    %3816 = vxpose.xlu0.b32.cont [7/16] 0.0, 128
    %3817 = vxpose.xlu0.b32.cont [8/16] 0.0, 128
    %3818 = vxpose.xlu0.b32.cont [9/16] 0.0, 128
    %3819 = vxpose.xlu0.b32.cont [10/16] 0.0, 128
    %3820 = vxpose.xlu0.b32.cont [11/16] 0.0, 128
    %3821 = vxpose.xlu0.b32.cont [12/16] 0.0, 128
    %3822 = vxpose.xlu0.b32.cont [13/16] 0.0, 128
    %3823 = vxpose.xlu0.b32.cont [14/16] 0.0, 128
    %3824 = vxpose.xlu0.b32.cont [15/16] 0.0, 128
    %3825 = vxpose.xlu0.b32.end [16/16] 0.0, 128
    %v3826 = vpop.trf.xlu0
    %v3827 = vpop.trf.xlu0
    %v3828 = vpop.trf.xlu0
    %v3829 = vpop.trf.xlu0
    %v3830 = vpop.trf.xlu0
    %v3831 = vpop.trf.xlu0
    %v3832 = vpop.trf.xlu0
    %v3833 = vpop.trf.xlu0
    %v3834 = vpop.trf.xlu0
    %v3835 = vpop.trf.xlu0
    %v3836 = vpop.trf.xlu0
    %v3837 = vpop.trf.xlu0
    %v3838 = vpop.trf.xlu0
    %v3839 = vpop.trf.xlu0
    %v3840 = vpop.trf.xlu0
    %v3841 = vpop.trf.xlu0
    %3843 = vset.pattern.permute.xlu0 0
    %3844 = vperm.xlu0 %3843, %v3602
    %v3845 = vpop.permute.xlu0 %3844
    %3848 = vset.pattern.permute.xlu0 0
    %3849 = vperm.xlu0 %3848, %v3634
    %v3850 = vpop.permute.xlu0 %3849
    %3853 = vset.pattern.permute.xlu0 0
    %3854 = vperm.xlu0 %3853, %v3666
    %v3855 = vpop.permute.xlu0 %3854
    %3858 = vset.pattern.permute.xlu0 0
    %3859 = vperm.xlu0 %3858, %v3698
    %v3860 = vpop.permute.xlu0 %3859
    %3863 = vset.pattern.permute.xlu0 0
    %3864 = vperm.xlu0 %3863, %v3730
    %v3865 = vpop.permute.xlu0 %3864
    %3868 = vset.pattern.permute.xlu0 0
    %3869 = vperm.xlu0 %3868, %v3762
    %v3870 = vpop.permute.xlu0 %3869
    %3873 = vset.pattern.permute.xlu0 0
    %3874 = vperm.xlu0 %3873, %v3794
    %v3875 = vpop.permute.xlu0 %3874
    %3878 = vset.pattern.permute.xlu0 0
    %3879 = vperm.xlu0 %3878, %v3826
    %v3880 = vpop.permute.xlu0 %3879
    %v3882 = vmul.f32 %v3845, %v1534
    %v3883 = vmul.f32 %v3850, %v1534
    %v3884 = vmul.f32 %v3855, %v1534
    %v3885 = vmul.f32 %v3860, %v1534
    %v3886 = vmul.f32 %v3865, %v1534
    %v3887 = vmul.f32 %v3870, %v1534
    %v3888 = vmul.f32 %v3875, %v1534
    %v3889 = vmul.f32 %v3880, %v1534
    %v3890 = vadd.f32 %v3500, %v3882
    %v3891 = vadd.f32 %v3522, %v3883
    %v3892 = vadd.f32 %v3505, %v3884
    %v3893 = vadd.f32 %v3523, %v3885
    %v3894 = vadd.f32 %v3510, %v3886
    %v3895 = vadd.f32 %v3524, %v3887
    %v3896 = vadd.f32 %v3515, %v3888
    %v3897 = vadd.f32 %v3525, %v3889
    %v3898 = vsel %vm1591, %v3890, 0.0
    %3899 = vadd.xlane.f32.xlu0 %v3898
    %v3900 = vpop.xlane.xlu0 %3899
    %v3901 = vsel %vm1591, %v3891, 0.0
    %3902 = vadd.xlane.f32.xlu0 %v3901
    %v3903 = vpop.xlane.xlu0 %3902
    %v3904 = vsel %vm1591, %v3892, 0.0
    %3905 = vadd.xlane.f32.xlu0 %v3904
    %v3906 = vpop.xlane.xlu0 %3905
    %v3907 = vsel %vm1591, %v3893, 0.0
    %3908 = vadd.xlane.f32.xlu0 %v3907
    %v3909 = vpop.xlane.xlu0 %3908
    %v3910 = vsel %vm1591, %v3894, 0.0
    %3911 = vadd.xlane.f32.xlu0 %v3910
    %v3912 = vpop.xlane.xlu0 %3911
    %v3913 = vsel %vm1591, %v3895, 0.0
    %3914 = vadd.xlane.f32.xlu0 %v3913
    %v3915 = vpop.xlane.xlu0 %3914
    %v3916 = vsel %vm1591, %v3896, 0.0
    %3917 = vadd.xlane.f32.xlu0 %v3916
    %v3918 = vpop.xlane.xlu0 %3917
    %v3919 = vsel %vm1591, %v3897, 0.0
    %3920 = vadd.xlane.f32.xlu0 %v3919
    %v3921 = vpop.xlane.xlu0 %3920
    %v3922 = vmul.f32 %v3900, %v1616
    %v3923 = vmul.f32 %v3903, %v1616
    %v3924 = vmul.f32 %v3906, %v1616
    %v3925 = vmul.f32 %v3909, %v1616
    %v3926 = vmul.f32 %v3912, %v1616
    %v3927 = vmul.f32 %v3915, %v1616
    %v3928 = vmul.f32 %v3918, %v1616
    %v3929 = vmul.f32 %v3921, %v1616
    %v3930 = vsub.f32 %v3890, %v3922
    %v3931 = vsub.f32 %v3891, %v3923
    %v3932 = vsub.f32 %v3892, %v3924
    %v3933 = vsub.f32 %v3893, %v3925
    %v3934 = vsub.f32 %v3894, %v3926
    %v3935 = vsub.f32 %v3895, %v3927
    %v3936 = vsub.f32 %v3896, %v3928
    %v3937 = vsub.f32 %v3897, %v3929
    %v3938 = vmul.f32 %v3930, %v3930
    %v3939 = vmul.f32 %v3931, %v3931
    %v3940 = vmul.f32 %v3932, %v3932
    %v3941 = vmul.f32 %v3933, %v3933
    %v3942 = vmul.f32 %v3934, %v3934
    %v3943 = vmul.f32 %v3935, %v3935
    %v3944 = vmul.f32 %v3936, %v3936
    %v3945 = vmul.f32 %v3937, %v3937
    %v3946 = vsel %vm1591, %v3938, 0.0
    %3947 = vadd.xlane.f32.xlu0 %v3946
    %v3948 = vpop.xlane.xlu0 %3947
    %v3949 = vsel %vm1591, %v3939, 0.0
    %3950 = vadd.xlane.f32.xlu0 %v3949
    %v3951 = vpop.xlane.xlu0 %3950
    %v3952 = vsel %vm1591, %v3940, 0.0
    %3953 = vadd.xlane.f32.xlu0 %v3952
    %v3954 = vpop.xlane.xlu0 %3953
    %v3955 = vsel %vm1591, %v3941, 0.0
    %3956 = vadd.xlane.f32.xlu0 %v3955
    %v3957 = vpop.xlane.xlu0 %3956
    %v3958 = vsel %vm1591, %v3942, 0.0
    %3959 = vadd.xlane.f32.xlu0 %v3958
    %v3960 = vpop.xlane.xlu0 %3959
    %v3961 = vsel %vm1591, %v3943, 0.0
    %3962 = vadd.xlane.f32.xlu0 %v3961
    %v3963 = vpop.xlane.xlu0 %3962
    %v3964 = vsel %vm1591, %v3944, 0.0
    %3965 = vadd.xlane.f32.xlu0 %v3964
    %v3966 = vpop.xlane.xlu0 %3965
    %v3967 = vsel %vm1591, %v3945, 0.0
    %3968 = vadd.xlane.f32.xlu0 %v3967
    %v3969 = vpop.xlane.xlu0 %3968
    %v3970 = vmul.f32 %v3948, %v1616
    %v3971 = vmul.f32 %v3951, %v1616
    %v3972 = vmul.f32 %v3954, %v1616
    %v3973 = vmul.f32 %v3957, %v1616
    %v3974 = vmul.f32 %v3960, %v1616
    %v3975 = vmul.f32 %v3963, %v1616
    %v3976 = vmul.f32 %v3966, %v1616
    %v3977 = vmul.f32 %v3969, %v1616
    %v3978 = vadd.f32 %v3970, 1e-05
    %v3979 = vadd.f32 %v3971, 1e-05
    %v3980 = vadd.f32 %v3972, 1e-05
    %v3981 = vadd.f32 %v3973, 1e-05
    %v3982 = vadd.f32 %v3974, 1e-05
    %v3983 = vadd.f32 %v3975, 1e-05
    %v3984 = vadd.f32 %v3976, 1e-05
    %v3985 = vadd.f32 %v3977, 1e-05
    %v3986 = vrsqrt.pop %v3978
    %v3987 = vrsqrt.pop %v3979
    %v3988 = vrsqrt.pop %v3980
    %v3989 = vrsqrt.pop %v3981
    %v3990 = vrsqrt.pop %v3982
    %v3991 = vrsqrt.pop %v3983
    %v3992 = vrsqrt.pop %v3984
    %v3993 = vrsqrt.pop %v3985
    %v3994 = vmul.f32 %v3930, %v3986
    %v3995 = vmul.f32 %v3931, %v3987
    %v3996 = vmul.f32 %v3932, %v3988
    %v3997 = vmul.f32 %v3933, %v3989
    %v3998 = vmul.f32 %v3934, %v3990
    %v3999 = vmul.f32 %v3935, %v3991
    %v4000 = vmul.f32 %v3936, %v3992
    %v4001 = vmul.f32 %v3937, %v3993
    %4002 = vst.msk [vmem:[#allocation7] sm:$0xf] %vm1591, %v3994
    %4003 = vst.msk [vmem:[#allocation7 + $0x4] sm:$0xf] %vm1591, %v3995
    %4004 = vst.msk [vmem:[#allocation7 + $0x8] sm:$0xf] %vm1591, %v3996
    %4005 = vst.msk [vmem:[#allocation7 + $0xc] sm:$0xf] %vm1591, %v3997
    %4006 = vst.msk [vmem:[#allocation7 + $0x10] sm:$0xf] %vm1591, %v3998
    %4007 = vst.msk [vmem:[#allocation7 + $0x14] sm:$0xf] %vm1591, %v3999
    %4008 = vst.msk [vmem:[#allocation7 + $0x18] sm:$0xf] %vm1591, %v4000
    %4009 = vst.msk [vmem:[#allocation7 + $0x1c] sm:$0xf] %vm1591, %v4001
    // Predicated region
    $region62: #{tpu_custom_call.1} parent=1 // pred_check
      _
    $region63: #{tpu_custom_call.1} parent=1 // pred_check_branch
      %4011 = sbr.rel (0) target = $region65
    $region64: #{tpu_custom_call.1} parent=1 // pred_region
      %s4013 = ssub.s32 512, 512
      %4014 = vsyncadd [#allocation4], %s4013
      %s4015 = sshll.u32 [#allocation7], 4
      %s4016 = int_to_ptr.vmem [resolvable:$true] %s4015
      %4021 = dma.vmem_to_hbm [thread:$0]  %s4016, 512, %s13, [#allocation4], 64, 64, 4
    $region65: #{tpu_custom_call.1} parent=1 // pred_fallthru
      _
    // Predicated region
    $region66: #{tpu_custom_call.1} parent=1 // pred_check
      _
    $region67: #{tpu_custom_call.1} parent=1 // pred_check_branch
      %4023 = sbr.rel (0) target = $region69
    $region68: #{tpu_custom_call.1} parent=1 // pred_region
      %4024 = dma.done [#allocation4], 512
    $region69: #{tpu_custom_call.1} parent=1 // pred_fallthru
      _
    %4025 = vsyncpa [#allocation3], 1
    %4026 = vsyncpa [#allocation6], 1
    %4027 = vsyncpa [#allocation4], 1

</llo_original>
